<compile_context>
chip_gen: v6e
topology: v6e:2x2x1
jax: 0.10.0
libtpu: 0.0.40
codegen_flags: <defaults>
</compile_context>

<pallas_src>
import functools
import math

import jax
import jax.numpy as jnp
from jax import lax
from jax.experimental import pallas as pl
from jax.experimental.pallas import tpu as pltpu


# ----------------------------- shared in-kernel helpers -----------------------------

def _mha_ln_epilogue(x, q, k, v, mask, wo_ref, bo_ref, g_ref, b_ref, o_ref,
                     num_heads, scale, eps):
    """Multi-head attention core + output proj + residual + LayerNorm.

    x, q, k, v are f32 VMEM values ([T,D], [T,D], [S,D], [S,D]); mask is the
    additive f32 [T,S] mask shared by all heads.
    """
    D = x.shape[-1]
    hd = D // num_heads

    ctx_parts = []
    for h in range(num_heads):                       # static unroll (small H)
        qh = (q[:, h * hd:(h + 1) * hd] * scale).astype(jnp.bfloat16)
        kh = k[:, h * hd:(h + 1) * hd].astype(jnp.bfloat16)
        vh = v[:, h * hd:(h + 1) * hd].astype(jnp.bfloat16)
        # q @ k^T without materializing a transpose.
        s = lax.dot_general(qh, kh, (((1,), (1,)), ((), ())),
                            preferred_element_type=jnp.float32) + mask
        s = s - jnp.max(s, axis=-1, keepdims=True)
        p = jnp.exp(s)
        p = p * pl.reciprocal(jnp.sum(p, axis=-1, keepdims=True), approx=True)
        ctx_parts.append(jnp.dot(p.astype(jnp.bfloat16), vh,
                                 preferred_element_type=jnp.float32))
    ctx = jnp.concatenate(ctx_parts, axis=-1)        # [T, D]

    attn_out = jnp.dot(ctx.astype(jnp.bfloat16),
                       wo_ref[...].astype(jnp.bfloat16),
                       preferred_element_type=jnp.float32) + bo_ref[...]

    y = x + attn_out                                 # residual (f32)
    mean = jnp.mean(y, axis=-1, keepdims=True)
    var = jnp.mean((y - mean) ** 2, axis=-1, keepdims=True)
    yn = (y - mean) * lax.rsqrt(var + eps)
    o_ref[0] = (yn * g_ref[...] + b_ref[...]).astype(o_ref.dtype)


# ----------------------------- Pallas kernels -----------------------------

def _self_attn_kernel(x_ref, mask_ref, wqkv_ref, bqkv_ref, wo_ref, bo_ref,
                      g_ref, b_ref, o_ref, *, num_heads, scale, eps):
    x = x_ref[0].astype(jnp.float32)                 # [T, D]
    D = x.shape[-1]
    qkv = jnp.dot(x.astype(jnp.bfloat16), wqkv_ref[...].astype(jnp.bfloat16),
                  preferred_element_type=jnp.float32) + bqkv_ref[...]
    q = qkv[:, :D]
    k = qkv[:, D:2 * D]
    v = qkv[:, 2 * D:]
    _mha_ln_epilogue(x, q, k, v, mask_ref[0], wo_ref, bo_ref, g_ref, b_ref,
                     o_ref, num_heads, scale, eps)


def _cross_attn_kernel(x_ref, kv_ref, mask_ref, wq_ref, bq_ref, wkv_ref,
                       bkv_ref, wo_ref, bo_ref, g_ref, b_ref, o_ref, *,
                       num_heads, scale, eps):
    x = x_ref[0].astype(jnp.float32)                 # [T, D]
    kv = kv_ref[0].astype(jnp.float32)               # [S, D]
    D = x.shape[-1]
    q = jnp.dot(x.astype(jnp.bfloat16), wq_ref[...].astype(jnp.bfloat16),
                preferred_element_type=jnp.float32) + bq_ref[...]
    kvp = jnp.dot(kv.astype(jnp.bfloat16), wkv_ref[...].astype(jnp.bfloat16),
                  preferred_element_type=jnp.float32) + bkv_ref[...]
    k = kvp[:, :D]
    v = kvp[:, D:]
    _mha_ln_epilogue(x, q, k, v, mask_ref[0], wo_ref, bo_ref, g_ref, b_ref,
                     o_ref, num_heads, scale, eps)


def _ffn_ln_kernel(x_ref, w1_ref, b1_ref, w2_ref, b2_ref, g_ref, bln_ref,
                   o_ref, *, eps):
    # conv1(k=1) -> ReLU -> conv2(k=1) -> +residual -> LayerNorm, fully in VMEM.
    x = x_ref[...].astype(jnp.float32)               # [TM, D]
    h = jnp.dot(x.astype(jnp.bfloat16), w1_ref[...].astype(jnp.bfloat16),
                preferred_element_type=jnp.float32) + b1_ref[...]
    h = jnp.maximum(h, 0.0)
    y = jnp.dot(h.astype(jnp.bfloat16), w2_ref[...].astype(jnp.bfloat16),
                preferred_element_type=jnp.float32) + b2_ref[...]
    y = y + x                                        # residual
    mean = jnp.mean(y, axis=-1, keepdims=True)
    var = jnp.mean((y - mean) ** 2, axis=-1, keepdims=True)
    yn = (y - mean) * lax.rsqrt(var + eps)
    o_ref[...] = (yn * g_ref[...] + bln_ref[...]).astype(o_ref.dtype)


def _proj_kernel(x_ref, w_ref, b_ref, o_ref):
    # Lane-dense output projection: y = x @ w + b (Dout padded to 128n outside).
    y = jnp.dot(x_ref[...].astype(jnp.bfloat16), w_ref[...].astype(jnp.bfloat16),
                preferred_element_type=jnp.float32) + b_ref[...]
    o_ref[...] = y.astype(o_ref.dtype)


# ----------------------------- pallas_call wrappers -----------------------------

def _row_tile(M, target=512):
    """Largest row tile (multiple of 8) dividing M, capped at `target`."""
    if M <= target:
        return M
    for tm in range(target - target % 8, 0, -8):
        if M % tm == 0:
            return tm
    return M


def self_attention_block(p, hidden, mask, gamma, beta, num_heads, eps=1e-5):
    B, T, D = hidden.shape
    hd = D // num_heads
    scale = hd ** -0.5
    if mask is None:
        mask = jnp.zeros((B, T, T), jnp.float32)
    wqkv = jnp.concatenate([p["q_w"], p["k_w"], p["v_w"]], axis=1)      # [D, 3D]
    bqkv = jnp.concatenate([p["q_b"], p["k_b"], p["v_b"]]).reshape(1, 3 * D)
    kernel = functools.partial(_self_attn_kernel, num_heads=num_heads,
                               scale=scale, eps=eps)
    return pl.pallas_call(
        kernel,
        out_shape=jax.ShapeDtypeStruct((B, T, D), hidden.dtype),
        grid=(B,),
        in_specs=[
            pl.BlockSpec((1, T, D), lambda b: (b, 0, 0)),
            pl.BlockSpec((1, T, T), lambda b: (b, 0, 0)),
            pl.BlockSpec((D, 3 * D), lambda b: (0, 0)),
            pl.BlockSpec((1, 3 * D), lambda b: (0, 0)),
            pl.BlockSpec((D, D), lambda b: (0, 0)),
            pl.BlockSpec((1, D), lambda b: (0, 0)),
            pl.BlockSpec((1, D), lambda b: (0, 0)),
            pl.BlockSpec((1, D), lambda b: (0, 0)),
        ],
        out_specs=pl.BlockSpec((1, T, D), lambda b: (b, 0, 0)),
        compiler_params=pltpu.CompilerParams(dimension_semantics=("parallel",)),
    )(hidden, mask, wqkv, bqkv, p["o_w"], p["o_b"].reshape(1, D),
      gamma.reshape(1, D), beta.reshape(1, D))


def cross_attention_block(p, hidden, kv, mask, gamma, beta, num_heads, eps=1e-5):
    B, T, D = hidden.shape
    S = kv.shape[1]
    hd = D // num_heads
    scale = hd ** -0.5
    if mask is None:
        mask = jnp.zeros((B, T, S), jnp.float32)
    wkv = jnp.concatenate([p["k_w"], p["v_w"]], axis=1)                 # [D, 2D]
    bkv = jnp.concatenate([p["k_b"], p["v_b"]]).reshape(1, 2 * D)
    kernel = functools.partial(_cross_attn_kernel, num_heads=num_heads,
                               scale=scale, eps=eps)
    return pl.pallas_call(
        kernel,
        out_shape=jax.ShapeDtypeStruct((B, T, D), hidden.dtype),
        grid=(B,),
        in_specs=[
            pl.BlockSpec((1, T, D), lambda b: (b, 0, 0)),
            pl.BlockSpec((1, S, D), lambda b: (b, 0, 0)),
            pl.BlockSpec((1, T, S), lambda b: (b, 0, 0)),
            pl.BlockSpec((D, D), lambda b: (0, 0)),
            pl.BlockSpec((1, D), lambda b: (0, 0)),
            pl.BlockSpec((D, 2 * D), lambda b: (0, 0)),
            pl.BlockSpec((1, 2 * D), lambda b: (0, 0)),
            pl.BlockSpec((D, D), lambda b: (0, 0)),
            pl.BlockSpec((1, D), lambda b: (0, 0)),
            pl.BlockSpec((1, D), lambda b: (0, 0)),
            pl.BlockSpec((1, D), lambda b: (0, 0)),
        ],
        out_specs=pl.BlockSpec((1, T, D), lambda b: (b, 0, 0)),
        compiler_params=pltpu.CompilerParams(dimension_semantics=("parallel",)),
    )(hidden, kv, mask, p["q_w"], p["q_b"].reshape(1, D), wkv, bkv,
      p["o_w"], p["o_b"].reshape(1, D), gamma.reshape(1, D), beta.reshape(1, D))


def ffn_ln_block(x, ffn_p, gamma, beta, eps=1e-5):
    B, S, D = x.shape
    FF = ffn_p["w1"].shape[1]
    M = B * S
    x2 = x.reshape(M, D)
    TM = _row_tile(M)
    kernel = functools.partial(_ffn_ln_kernel, eps=eps)
    out = pl.pallas_call(
        kernel,
        out_shape=jax.ShapeDtypeStruct((M, D), x.dtype),
        grid=(M // TM,),
        in_specs=[
            pl.BlockSpec((TM, D), lambda i: (i, 0)),
            pl.BlockSpec((D, FF), lambda i: (0, 0)),
            pl.BlockSpec((1, FF), lambda i: (0, 0)),
            pl.BlockSpec((FF, D), lambda i: (0, 0)),
            pl.BlockSpec((1, D), lambda i: (0, 0)),
            pl.BlockSpec((1, D), lambda i: (0, 0)),
            pl.BlockSpec((1, D), lambda i: (0, 0)),
        ],
        out_specs=pl.BlockSpec((TM, D), lambda i: (i, 0)),
        compiler_params=pltpu.CompilerParams(dimension_semantics=("parallel",)),
    )(x2, ffn_p["w1"], ffn_p["b1"].reshape(1, FF), ffn_p["w2"],
      ffn_p["b2"].reshape(1, D), gamma.reshape(1, D), beta.reshape(1, D))
    return out.reshape(B, S, D)


def projection(x, w, b):
    """Final logits projection with lane-dense (128-multiple) output width."""
    B, S, D = x.shape
    M = B * S
    Dout = w.shape[1]
    Dpad = ((Dout + 127) // 128) * 128
    if Dpad != Dout:
        w = jnp.pad(w, ((0, 0), (0, Dpad - Dout)))
        b = jnp.pad(b, (0, Dpad - Dout))
    x2 = x.reshape(M, D)
    TM = _row_tile(M)
    out = pl.pallas_call(
        _proj_kernel,
        out_shape=jax.ShapeDtypeStruct((M, Dpad), jnp.float32),
        grid=(M // TM,),
        in_specs=[
            pl.BlockSpec((TM, D), lambda i: (i, 0)),
            pl.BlockSpec((D, Dpad), lambda i: (0, 0)),
            pl.BlockSpec((1, Dpad), lambda i: (0, 0)),
        ],
        out_specs=pl.BlockSpec((TM, Dpad), lambda i: (i, 0)),
        compiler_params=pltpu.CompilerParams(dimension_semantics=("parallel",)),
    )(x2, w, b.reshape(1, Dpad))
    return out[:, :Dout].reshape(B, S, Dout)


# ----------------------------- model glue (plain JAX) -----------------------------

def expand_mask(mask, tgt_len=None):
    # torch _expand_mask semantics but kept at [B, T, S] (heads broadcast in-kernel):
    # 0 where attended, finfo.min where masked.
    B, S = mask.shape
    T = tgt_len if tgt_len is not None else S
    expanded = jnp.broadcast_to(mask[:, None, :].astype(jnp.float32), (B, T, S))
    inverted = 1.0 - expanded
    neg = jnp.finfo(jnp.float32).min
    # Note: fully-masked rows softmax to a uniform distribution, matching PyTorch.
    return jnp.where(inverted.astype(bool), neg, inverted)


def encoder_layer_forward(p, x, mask, num_heads):
    h = self_attention_block(p["self_attn"], x, mask,
                             p["ln_self_g"], p["ln_self_b"], num_heads)
    return ffn_ln_block(h, p["ffn"], p["ln_final_g"], p["ln_final_b"])


def decoder_layer_forward(p, x, enc_hidden, self_mask, enc_mask, num_heads):
    h = self_attention_block(p["self_attn"], x, self_mask,
                             p["ln_self_g"], p["ln_self_b"], num_heads)
    if enc_hidden is not None:
        h = cross_attention_block(p["cross_attn"], h, enc_hidden, enc_mask,
                                  p["ln_enc_g"], p["ln_enc_b"], num_heads)
    return ffn_ln_block(h, p["ffn"], p["ln_final_g"], p["ln_final_b"])


def encoder_forward(p, input_ids, attention_mask, pe, num_heads):
    B, S = input_ids.shape
    emb = jnp.take(p["embed"], input_ids, axis=0) + pe[None, :S, :]
    mask = expand_mask(attention_mask) if attention_mask is not None else None
    h = emb
    for layer_p in p["layers"]:
        h = encoder_layer_forward(layer_p, h, mask, num_heads)
    len_logits = projection(h, p["len_w"], p["len_b"])
    return h, len_logits


def decoder_forward(p, input_ids, attention_mask, enc_hidden,
                    enc_attention_mask, pe, num_heads):
    B, T = input_ids.shape
    emb = jnp.take(p["embed"], input_ids, axis=0) + pe[None, :T, :]
    self_mask = expand_mask(attention_mask)
    enc_mask = None
    if enc_hidden is not None and enc_attention_mask is not None:
        enc_mask = expand_mask(enc_attention_mask, tgt_len=T)
    h = emb
    for layer_p in p["layers"]:
        h = decoder_layer_forward(layer_p, h, enc_hidden, self_mask, enc_mask,
                                  num_heads)
    return h


def natransformer_forward(params, cfg, input_ids, attention_mask,
                          morph_input_ids, tag_input_ids, dec_attention_mask):
    nh = cfg["n_heads"]
    pe = params["pe"]

    enc_outputs, len_logits = encoder_forward(
        params["encoder"], input_ids, attention_mask, pe, nh)

    morph_dec = decoder_forward(params["morph_decoder"], morph_input_ids,
                                dec_attention_mask, enc_outputs, attention_mask,
                                pe, nh)
    tag_dec = decoder_forward(params["tag_decoder"], tag_input_ids,
                              dec_attention_mask, enc_outputs, attention_mask,
                              pe, nh)

    dec_mask_exp = expand_mask(dec_attention_mask)
    morph_dec = decoder_layer_forward(params["morph_decoder"]["layers"][0],
                                      morph_dec, tag_dec, dec_mask_exp,
                                      dec_mask_exp, nh)
    tag_dec = decoder_layer_forward(params["tag_decoder"]["layers"][0],
                                    tag_dec, morph_dec, dec_mask_exp,
                                    dec_mask_exp, nh)

    morph_logits = projection(morph_dec, params["morph_proj_w"], params["morph_proj_b"])
    tag_logits = projection(tag_dec, params["tag_proj_w"], params["tag_proj_b"])

    # TODO(synk): CrossEntropyLoss branch skipped (labels=None -> loss=None, matching the module).
    loss = None
    return morph_logits, tag_logits, len_logits, loss


# ----------------------------- deterministic param init -----------------------------

def _init_lin(key, din, dout, scale=0.05):
    k1, k2 = jax.random.split(key)
    w = jax.random.normal(k1, (din, dout), jnp.float32) * scale
    b = jax.random.normal(k2, (dout,), jnp.float32) * scale
    return w, b


def _init_attn(key, d):
    ks = jax.random.split(key, 4)
    qw, qb = _init_lin(ks[0], d, d)
    kw, kb = _init_lin(ks[1], d, d)
    vw, vb = _init_lin(ks[2], d, d)
    ow, ob = _init_lin(ks[3], d, d)
    return {"q_w": qw, "q_b": qb, "k_w": kw, "k_b": kb,
            "v_w": vw, "v_b": vb, "o_w": ow, "o_b": ob}


def _init_ffn(key, d, ff):
    k1, k2 = jax.random.split(key)
    w1, b1 = _init_lin(k1, d, ff)
    w2, b2 = _init_lin(k2, ff, d)
    return {"w1": w1, "b1": b1, "w2": w2, "b2": b2}


def _init_ln(d):
    return jnp.ones((d,), jnp.float32), jnp.zeros((d,), jnp.float32)


def _init_encoder_layer(key, d, ff):
    k1, k2 = jax.random.split(key)
    g1, b1 = _init_ln(d)
    g2, b2 = _init_ln(d)
    return {"self_attn": _init_attn(k1, d), "ffn": _init_ffn(k2, d, ff),
            "ln_self_g": g1, "ln_self_b": b1, "ln_final_g": g2, "ln_final_b": b2}


def _init_decoder_layer(key, d, ff):
    k1, k2, k3 = jax.random.split(key, 3)
    g1, b1 = _init_ln(d)
    g2, b2 = _init_ln(d)
    g3, b3 = _init_ln(d)
    return {"self_attn": _init_attn(k1, d), "cross_attn": _init_attn(k2, d),
            "ffn": _init_ffn(k3, d, ff),
            "ln_self_g": g1, "ln_self_b": b1,
            "ln_enc_g": g2, "ln_enc_b": b2,
            "ln_final_g": g3, "ln_final_b": b3}


def _init_embed(key, vocab, d, pad_id):
    e = jax.random.normal(key, (vocab, d), jnp.float32) * 0.05
    return e.at[pad_id].set(0.0)  # nn.Embedding zero-inits the padding row


def positional_encoding(max_len, d_model):
    position = jnp.arange(max_len, dtype=jnp.float32)[:, None]
    div_term = jnp.exp(jnp.arange(0, d_model, 2, dtype=jnp.float32)
                       * -(math.log(10000.0) / d_model))
    pe = jnp.zeros((max_len, d_model), jnp.float32)
    pe = pe.at[:, 0::2].set(jnp.sin(position * div_term))
    pe = pe.at[:, 1::2].set(jnp.cos(position * div_term))
    return pe


def init_params(key, cfg):
    d, ff = cfg["d_model"], cfg["feedforward"]
    keys = jax.random.split(key, 16)

    enc_layers = [_init_encoder_layer(keys[i], d, ff) for i in range(cfg["n_layers"])]
    len_w, len_b = _init_lin(keys[8], d, 111)
    encoder = {"embed": _init_embed(keys[9], cfg["src_vocab"], d, cfg["pad_id"]),
               "layers": enc_layers, "len_w": len_w, "len_b": len_b}

    morph_dec = {"embed": _init_embed(keys[10], cfg["morph_vocab"], d, cfg["pad_id"]),
                 "layers": [_init_decoder_layer(keys[11], d, ff)]}
    tag_dec = {"embed": _init_embed(keys[12], cfg["tag_vocab"], d, cfg["pad_id"]),
               "layers": [_init_decoder_layer(keys[13], d, ff)]}

    mp_w, mp_b = _init_lin(keys[14], d, cfg["morph_vocab"])
    tp_w, tp_b = _init_lin(keys[15], d, cfg["tag_vocab"])

    return {"encoder": encoder, "morph_decoder": morph_dec, "tag_decoder": tag_dec,
            "morph_proj_w": mp_w, "morph_proj_b": mp_b,
            "tag_proj_w": tp_w, "tag_proj_b": tp_b,
            "pe": positional_encoding(cfg["max_len"], d)}


# ----------------------------- main -----------------------------

if __name__ == "__main__":
    cfg = {"d_model": 32, "n_heads": 4, "feedforward": 64, "n_layers": 1,
           "max_len": 16, "dropout": 0.0, "pad_id": 0,
           "src_vocab": 20, "morph_vocab": 24, "tag_vocab": 18}

    B, S_enc, T_dec = 2, 8, 8

    key = jax.random.PRNGKey(0)
    kp, k1, k2, k3 = jax.random.split(key, 4)
    params = init_params(kp, cfg)

    input_ids = jax.random.randint(k1, (B, S_enc), 1, cfg["src_vocab"])
    morph_input_ids = jax.random.randint(k2, (B, T_dec), 1, cfg["morph_vocab"])
    tag_input_ids = jax.random.randint(k3, (B, T_dec), 1, cfg["tag_vocab"])

    attention_mask = jnp.ones((B, S_enc), jnp.float32).at[1, -2:].set(0.0)
    dec_attention_mask = jnp.ones((B, T_dec), jnp.float32).at[1, -1:].set(0.0)

    fwd = jax.jit(functools.partial(natransformer_forward, params, cfg))
    morph_logits, tag_logits, len_logits, loss = fwd(
        input_ids, attention_mask, morph_input_ids, tag_input_ids, dec_attention_mask)

    jax.block_until_ready((morph_logits, tag_logits, len_logits))

    assert morph_logits.shape == (B, T_dec, cfg["morph_vocab"])
    assert tag_logits.shape == (B, T_dec, cfg["tag_vocab"])
    assert len_logits.shape == (B, S_enc, 111)
    assert loss is None
    assert bool(jnp.isfinite(morph_logits).all())
    assert bool(jnp.isfinite(tag_logits).all())
    assert bool(jnp.isfinite(len_logits).all())

    print("KERNEL_OK")
</pallas_src>

<mosaic_0001>
module attributes {stable_mosaic.version = 11 : i64} {
  func.func @_ffn_ln_kernel(%arg0: i32, %arg1: memref<16x32xf32, #tpu.memory_space<vmem>>, %arg2: memref<32x64xf32, #tpu.memory_space<vmem>>, %arg3: memref<1x64xf32, #tpu.memory_space<vmem>>, %arg4: memref<64x32xf32, #tpu.memory_space<vmem>>, %arg5: memref<1x32xf32, #tpu.memory_space<vmem>>, %arg6: memref<1x32xf32, #tpu.memory_space<vmem>>, %arg7: memref<1x32xf32, #tpu.memory_space<vmem>>, %arg8: memref<16x32xf32, #tpu.memory_space<vmem>>) attributes {dimension_semantics = [#tpu.dimension_semantics<parallel>], iteration_bounds = array<i64: 1>, scalar_prefetch = 0 : i64, scratch_operands = 0 : i64, tpu.core_type = #tpu.core_type<tc>, window_params = [{transform_indices = @transform_0, window_bounds = array<i64: 16, 32>}, {pipeline_mode = #tpu.pipeline_mode<synchronous>, transform_indices = @transform_1, window_bounds = array<i64: 32, 64>}, {pipeline_mode = #tpu.pipeline_mode<synchronous>, transform_indices = @transform_2, window_bounds = array<i64: 1, 64>}, {pipeline_mode = #tpu.pipeline_mode<synchronous>, transform_indices = @transform_3, window_bounds = array<i64: 64, 32>}, {pipeline_mode = #tpu.pipeline_mode<synchronous>, transform_indices = @transform_4, window_bounds = array<i64: 1, 32>}, {pipeline_mode = #tpu.pipeline_mode<synchronous>, transform_indices = @transform_5, window_bounds = array<i64: 1, 32>}, {pipeline_mode = #tpu.pipeline_mode<synchronous>, transform_indices = @transform_6, window_bounds = array<i64: 1, 32>}, {transform_indices = @transform_7, window_bounds = array<i64: 16, 32>}]} {
    %c0 = arith.constant 0 : index
    %c0_0 = arith.constant 0 : index
    %0 = vector.load %arg1[%c0, %c0_0] : memref<16x32xf32, #tpu.memory_space<vmem>>, vector<16x32xf32>
    %1 = arith.truncf %0 : vector<16x32xf32> to vector<16x32xbf16>
    %c0_1 = arith.constant 0 : index
    %c0_2 = arith.constant 0 : index
    %2 = vector.load %arg2[%c0_1, %c0_2] : memref<32x64xf32, #tpu.memory_space<vmem>>, vector<32x64xf32>
    %3 = arith.truncf %2 : vector<32x64xf32> to vector<32x64xbf16>
    %cst = arith.constant dense<0.000000e+00> : vector<16x64xf32>
    %4 = tpu.matmul %1, %3, %cst {dimension_numbers = #tpu.dot_dimension_numbers<[1], [0], [0], [1], [0, 0, 1, 1], [], []>} : vector<16x32xbf16>, vector<32x64xbf16>, vector<16x64xf32> -> vector<16x64xf32>
    %c0_3 = arith.constant 0 : index
    %c0_4 = arith.constant 0 : index
    %5 = vector.load %arg3[%c0_3, %c0_4] : memref<1x64xf32, #tpu.memory_space<vmem>>, vector<1x64xf32>
    %6 = vector.broadcast %5 : vector<1x64xf32> to vector<16x64xf32>
    %7 = arith.addf %4, %6 : vector<16x64xf32>
    %cst_5 = arith.constant 0.000000e+00 : f32
    %8 = vector.broadcast %cst_5 : f32 to vector<16x64xf32>
    %9 = arith.maximumf %7, %8 : vector<16x64xf32>
    %10 = arith.truncf %9 : vector<16x64xf32> to vector<16x64xbf16>
    %c0_6 = arith.constant 0 : index
    %c0_7 = arith.constant 0 : index
    %11 = vector.load %arg4[%c0_6, %c0_7] : memref<64x32xf32, #tpu.memory_space<vmem>>, vector<64x32xf32>
    %12 = arith.truncf %11 : vector<64x32xf32> to vector<64x32xbf16>
    %cst_8 = arith.constant dense<0.000000e+00> : vector<16x32xf32>
    %13 = tpu.matmul %10, %12, %cst_8 {dimension_numbers = #tpu.dot_dimension_numbers<[1], [0], [0], [1], [0, 0, 1, 1], [], []>} : vector<16x64xbf16>, vector<64x32xbf16>, vector<16x32xf32> -> vector<16x32xf32>
    %c0_9 = arith.constant 0 : index
    %c0_10 = arith.constant 0 : index
    %14 = vector.load %arg5[%c0_9, %c0_10] : memref<1x32xf32, #tpu.memory_space<vmem>>, vector<1x32xf32>
    %15 = vector.broadcast %14 : vector<1x32xf32> to vector<16x32xf32>
    %16 = arith.addf %13, %15 : vector<16x32xf32>
    %17 = arith.addf %16, %0 : vector<16x32xf32>
    %cst_11 = arith.constant dense<0.000000e+00> : vector<16xf32>
    %18 = vector.multi_reduction <add>, %17, %cst_11 [1] : vector<16x32xf32> to vector<16xf32>
    %19 = vector.shape_cast %18 : vector<16xf32> to vector<16x1xf32>
    %cst_12 = arith.constant 3.200000e+01 : f32
    %20 = vector.broadcast %cst_12 : f32 to vector<16x1xf32>
    %21 = arith.divf %19, %20 : vector<16x1xf32>
    %22 = vector.broadcast %21 : vector<16x1xf32> to vector<16x32xf32>
    %23 = arith.subf %17, %22 : vector<16x32xf32>
    %24 = arith.mulf %23, %23 : vector<16x32xf32>
    %cst_13 = arith.constant dense<0.000000e+00> : vector<16xf32>
    %25 = vector.multi_reduction <add>, %24, %cst_13 [1] : vector<16x32xf32> to vector<16xf32>
    %26 = vector.shape_cast %25 : vector<16xf32> to vector<16x1xf32>
    %cst_14 = arith.constant 3.200000e+01 : f32
    %27 = vector.broadcast %cst_14 : f32 to vector<16x1xf32>
    %28 = arith.divf %26, %27 : vector<16x1xf32>
    %29 = vector.broadcast %21 : vector<16x1xf32> to vector<16x32xf32>
    %30 = arith.subf %17, %29 : vector<16x32xf32>
    %cst_15 = arith.constant 9.99999974E-6 : f32
    %31 = vector.broadcast %cst_15 : f32 to vector<16x1xf32>
    %32 = arith.addf %28, %31 : vector<16x1xf32>
    %33 = math.rsqrt %32 : vector<16x1xf32>
    %34 = vector.broadcast %33 : vector<16x1xf32> to vector<16x32xf32>
    %35 = arith.mulf %30, %34 : vector<16x32xf32>
    %c0_16 = arith.constant 0 : index
    %c0_17 = arith.constant 0 : index
    %36 = vector.load %arg6[%c0_16, %c0_17] : memref<1x32xf32, #tpu.memory_space<vmem>>, vector<1x32xf32>
    %37 = vector.broadcast %36 : vector<1x32xf32> to vector<16x32xf32>
    %38 = arith.mulf %35, %37 : vector<16x32xf32>
    %c0_18 = arith.constant 0 : index
    %c0_19 = arith.constant 0 : index
    %39 = vector.load %arg7[%c0_18, %c0_19] : memref<1x32xf32, #tpu.memory_space<vmem>>, vector<1x32xf32>
    %40 = vector.broadcast %39 : vector<1x32xf32> to vector<16x32xf32>
    %41 = arith.addf %38, %40 : vector<16x32xf32>
    %c0_20 = arith.constant 0 : index
    %c0_21 = arith.constant 0 : index
    %42 = vector.load %arg8[%c0_20, %c0_21] : memref<16x32xf32, #tpu.memory_space<vmem>>, vector<16x32xf32>
    tpu.vector_store %arg8[%c0_20, %c0_21], %41 {strides = array<i32>} : memref<16x32xf32, #tpu.memory_space<vmem>>, vector<16x32xf32>,
    return
  }
  func.func @transform_0(%arg0: i32) -> (i32, i32) {
    %c0_i32 = arith.constant 0 : i32
    %c0_i32_0 = arith.constant 0 : i32
    return %arg0, %c0_i32 : i32, i32
  }
  func.func @transform_1(%arg0: i32) -> (i32, i32) {
    %c0_i32 = arith.constant 0 : i32
    %c0_i32_0 = arith.constant 0 : i32
    %c0_i32_1 = arith.constant 0 : i32
    return %c0_i32, %c0_i32_0 : i32, i32
  }
  func.func @transform_2(%arg0: i32) -> (i32, i32) {
    %c0_i32 = arith.constant 0 : i32
    %c0_i32_0 = arith.constant 0 : i32
    %c0_i32_1 = arith.constant 0 : i32
    return %c0_i32, %c0_i32_0 : i32, i32
  }
  func.func @transform_3(%arg0: i32) -> (i32, i32) {
    %c0_i32 = arith.constant 0 : i32
    %c0_i32_0 = arith.constant 0 : i32
    %c0_i32_1 = arith.constant 0 : i32
    return %c0_i32, %c0_i32_0 : i32, i32
  }
  func.func @transform_4(%arg0: i32) -> (i32, i32) {
    %c0_i32 = arith.constant 0 : i32
    %c0_i32_0 = arith.constant 0 : i32
    %c0_i32_1 = arith.constant 0 : i32
    return %c0_i32, %c0_i32_0 : i32, i32
  }
  func.func @transform_5(%arg0: i32) -> (i32, i32) {
    %c0_i32 = arith.constant 0 : i32
    %c0_i32_0 = arith.constant 0 : i32
    %c0_i32_1 = arith.constant 0 : i32
    return %c0_i32, %c0_i32_0 : i32, i32
  }
  func.func @transform_6(%arg0: i32) -> (i32, i32) {
    %c0_i32 = arith.constant 0 : i32
    %c0_i32_0 = arith.constant 0 : i32
    %c0_i32_1 = arith.constant 0 : i32
    return %c0_i32, %c0_i32_0 : i32, i32
  }
  func.func @transform_7(%arg0: i32) -> (i32, i32) {
    %c0_i32 = arith.constant 0 : i32
    %c0_i32_0 = arith.constant 0 : i32
    return %arg0, %c0_i32 : i32, i32
  }
}

module attributes {stable_mosaic.version = 11 : i64} {
  func.func @_proj_kernel(%arg0: i32, %arg1: memref<16x32xf32, #tpu.memory_space<vmem>>, %arg2: memref<32x128xf32, #tpu.memory_space<vmem>>, %arg3: memref<1x128xf32, #tpu.memory_space<vmem>>, %arg4: memref<16x128xf32, #tpu.memory_space<vmem>>) attributes {dimension_semantics = [#tpu.dimension_semantics<parallel>], iteration_bounds = array<i64: 1>, scalar_prefetch = 0 : i64, scratch_operands = 0 : i64, tpu.core_type = #tpu.core_type<tc>, window_params = [{transform_indices = @transform_0, window_bounds = array<i64: 16, 32>}, {pipeline_mode = #tpu.pipeline_mode<synchronous>, transform_indices = @transform_1, window_bounds = array<i64: 32, 128>}, {pipeline_mode = #tpu.pipeline_mode<synchronous>, transform_indices = @transform_2, window_bounds = array<i64: 1, 128>}, {transform_indices = @transform_3, window_bounds = array<i64: 16, 128>}]} {
    %c0 = arith.constant 0 : index
    %c0_0 = arith.constant 0 : index
    %0 = vector.load %arg1[%c0, %c0_0] : memref<16x32xf32, #tpu.memory_space<vmem>>, vector<16x32xf32>
    %1 = arith.truncf %0 : vector<16x32xf32> to vector<16x32xbf16>
    %c0_1 = arith.constant 0 : index
    %c0_2 = arith.constant 0 : index
    %2 = vector.load %arg2[%c0_1, %c0_2] : memref<32x128xf32, #tpu.memory_space<vmem>>, vector<32x128xf32>
    %3 = arith.truncf %2 : vector<32x128xf32> to vector<32x128xbf16>
    %cst = arith.constant dense<0.000000e+00> : vector<16x128xf32>
    %4 = tpu.matmul %1, %3, %cst {dimension_numbers = #tpu.dot_dimension_numbers<[1], [0], [0], [1], [0, 0, 1, 1], [], []>} : vector<16x32xbf16>, vector<32x128xbf16>, vector<16x128xf32> -> vector<16x128xf32>
    %c0_3 = arith.constant 0 : index
    %c0_4 = arith.constant 0 : index
    %5 = vector.load %arg3[%c0_3, %c0_4] : memref<1x128xf32, #tpu.memory_space<vmem>>, vector<1x128xf32>
    %6 = vector.broadcast %5 : vector<1x128xf32> to vector<16x128xf32>
    %7 = arith.addf %4, %6 : vector<16x128xf32>
    %c0_5 = arith.constant 0 : index
    %c0_6 = arith.constant 0 : index
    %8 = vector.load %arg4[%c0_5, %c0_6] : memref<16x128xf32, #tpu.memory_space<vmem>>, vector<16x128xf32>
    tpu.vector_store %arg4[%c0_5, %c0_6], %7 {strides = array<i32>} : memref<16x128xf32, #tpu.memory_space<vmem>>, vector<16x128xf32>,
    return
  }
  func.func @transform_0(%arg0: i32) -> (i32, i32) {
    %c0_i32 = arith.constant 0 : i32
    %c0_i32_0 = arith.constant 0 : i32
    return %arg0, %c0_i32 : i32, i32
  }
  func.func @transform_1(%arg0: i32) -> (i32, i32) {
    %c0_i32 = arith.constant 0 : i32
    %c0_i32_0 = arith.constant 0 : i32
    %c0_i32_1 = arith.constant 0 : i32
    return %c0_i32, %c0_i32_0 : i32, i32
  }
  func.func @transform_2(%arg0: i32) -> (i32, i32) {
    %c0_i32 = arith.constant 0 : i32
    %c0_i32_0 = arith.constant 0 : i32
    %c0_i32_1 = arith.constant 0 : i32
    return %c0_i32, %c0_i32_0 : i32, i32
  }
  func.func @transform_3(%arg0: i32) -> (i32, i32) {
    %c0_i32 = arith.constant 0 : i32
    %c0_i32_0 = arith.constant 0 : i32
    return %arg0, %c0_i32 : i32, i32
  }
}

module attributes {stable_mosaic.version = 11 : i64} {
  func.func @_self_attn_kernel(%arg0: i32, %arg1: memref<1x8x32xf32, #tpu.memory_space<vmem>>, %arg2: memref<1x8x8xf32, #tpu.memory_space<vmem>>, %arg3: memref<32x96xf32, #tpu.memory_space<vmem>>, %arg4: memref<1x96xf32, #tpu.memory_space<vmem>>, %arg5: memref<32x32xf32, #tpu.memory_space<vmem>>, %arg6: memref<1x32xf32, #tpu.memory_space<vmem>>, %arg7: memref<1x32xf32, #tpu.memory_space<vmem>>, %arg8: memref<1x32xf32, #tpu.memory_space<vmem>>, %arg9: memref<1x8x32xf32, #tpu.memory_space<vmem>>) attributes {dimension_semantics = [#tpu.dimension_semantics<parallel>], iteration_bounds = array<i64: 2>, scalar_prefetch = 0 : i64, scratch_operands = 0 : i64, tpu.core_type = #tpu.core_type<tc>, window_params = [{transform_indices = @transform_0, window_bounds = array<i64: 1, 8, 32>}, {transform_indices = @transform_1, window_bounds = array<i64: 1, 8, 8>}, {pipeline_mode = #tpu.pipeline_mode<synchronous>, transform_indices = @transform_2, window_bounds = array<i64: 32, 96>}, {pipeline_mode = #tpu.pipeline_mode<synchronous>, transform_indices = @transform_3, window_bounds = array<i64: 1, 96>}, {pipeline_mode = #tpu.pipeline_mode<synchronous>, transform_indices = @transform_4, window_bounds = array<i64: 32, 32>}, {pipeline_mode = #tpu.pipeline_mode<synchronous>, transform_indices = @transform_5, window_bounds = array<i64: 1, 32>}, {pipeline_mode = #tpu.pipeline_mode<synchronous>, transform_indices = @transform_6, window_bounds = array<i64: 1, 32>}, {pipeline_mode = #tpu.pipeline_mode<synchronous>, transform_indices = @transform_7, window_bounds = array<i64: 1, 32>}, {transform_indices = @transform_8, window_bounds = array<i64: 1, 8, 32>}]} {
    %c0 = arith.constant 0 : index
    %c0_0 = arith.constant 0 : index
    %c0_1 = arith.constant 0 : index
    %0 = vector.load %arg1[%c0, %c0_0, %c0_1] : memref<1x8x32xf32, #tpu.memory_space<vmem>>, vector<1x8x32xf32>
    %1 = vector.shape_cast %0 : vector<1x8x32xf32> to vector<8x32xf32>
    %2 = arith.truncf %1 : vector<8x32xf32> to vector<8x32xbf16>
    %c0_2 = arith.constant 0 : index
    %c0_3 = arith.constant 0 : index
    %3 = vector.load %arg3[%c0_2, %c0_3] : memref<32x96xf32, #tpu.memory_space<vmem>>, vector<32x96xf32>
    %4 = arith.truncf %3 : vector<32x96xf32> to vector<32x96xbf16>
    %cst = arith.constant dense<0.000000e+00> : vector<8x96xf32>
    %5 = tpu.matmul %2, %4, %cst {dimension_numbers = #tpu.dot_dimension_numbers<[1], [0], [0], [1], [0, 0, 1, 1], [], []>} : vector<8x32xbf16>, vector<32x96xbf16>, vector<8x96xf32> -> vector<8x96xf32>
    %c0_4 = arith.constant 0 : index
    %c0_5 = arith.constant 0 : index
    %6 = vector.load %arg4[%c0_4, %c0_5] : memref<1x96xf32, #tpu.memory_space<vmem>>, vector<1x96xf32>
    %7 = vector.broadcast %6 : vector<1x96xf32> to vector<8x96xf32>
    %8 = arith.addf %5, %7 : vector<8x96xf32>
    %9 = vector.extract_strided_slice %8 {offsets = [0, 0], sizes = [8, 32], strides = [1, 1]} : vector<8x96xf32> to vector<8x32xf32>
    %10 = vector.extract_strided_slice %8 {offsets = [0, 32], sizes = [8, 32], strides = [1, 1]} : vector<8x96xf32> to vector<8x32xf32>
    %11 = vector.extract_strided_slice %8 {offsets = [0, 64], sizes = [8, 32], strides = [1, 1]} : vector<8x96xf32> to vector<8x32xf32>
    %c0_6 = arith.constant 0 : index
    %c0_7 = arith.constant 0 : index
    %c0_8 = arith.constant 0 : index
    %12 = vector.load %arg2[%c0_6, %c0_7, %c0_8] : memref<1x8x8xf32, #tpu.memory_space<vmem>>, vector<1x8x8xf32>
    %13 = vector.shape_cast %12 : vector<1x8x8xf32> to vector<8x8xf32>
    %14 = vector.extract_strided_slice %9 {offsets = [0, 0], sizes = [8, 8], strides = [1, 1]} : vector<8x32xf32> to vector<8x8xf32>
    %cst_9 = arith.constant 0.353553385 : f32
    %15 = vector.broadcast %cst_9 : f32 to vector<8x8xf32>
    %16 = arith.mulf %14, %15 : vector<8x8xf32>
    %17 = arith.truncf %16 : vector<8x8xf32> to vector<8x8xbf16>
    %18 = vector.extract_strided_slice %10 {offsets = [0, 0], sizes = [8, 8], strides = [1, 1]} : vector<8x32xf32> to vector<8x8xf32>
    %19 = arith.truncf %18 : vector<8x8xf32> to vector<8x8xbf16>
    %20 = vector.extract_strided_slice %11 {offsets = [0, 0], sizes = [8, 8], strides = [1, 1]} : vector<8x32xf32> to vector<8x8xf32>
    %21 = arith.truncf %20 : vector<8x8xf32> to vector<8x8xbf16>
    %cst_10 = arith.constant dense<0.000000e+00> : vector<8x8xf32>
    %22 = tpu.matmul %17, %19, %cst_10 {dimension_numbers = #tpu.dot_dimension_numbers<[1], [1], [0], [0], [0, 0, 1, 0], [], []>} : vector<8x8xbf16>, vector<8x8xbf16>, vector<8x8xf32> -> vector<8x8xf32>
    %23 = arith.addf %22, %13 : vector<8x8xf32>
    %cst_11 = arith.constant dense<0xFF800000> : vector<8xf32>
    %24 = vector.multi_reduction <maximumf>, %23, %cst_11 [1] : vector<8x8xf32> to vector<8xf32>
    %25 = vector.shape_cast %24 : vector<8xf32> to vector<8x1xf32>
    %26 = vector.broadcast %25 : vector<8x1xf32> to vector<8x8xf32>
    %27 = arith.subf %23, %26 : vector<8x8xf32>
    %28 = math.exp %27 : vector<8x8xf32>
    %cst_12 = arith.constant dense<0.000000e+00> : vector<8xf32>
    %29 = vector.multi_reduction <add>, %28, %cst_12 [1] : vector<8x8xf32> to vector<8xf32>
    %30 = vector.shape_cast %29 : vector<8xf32> to vector<8x1xf32>
    %31 = tpu.reciprocal %30 {approx = true} : vector<8x1xf32> -> vector<8x1xf32>
    %32 = vector.broadcast %31 : vector<8x1xf32> to vector<8x8xf32>
    %33 = arith.mulf %28, %32 : vector<8x8xf32>
    %34 = arith.truncf %33 : vector<8x8xf32> to vector<8x8xbf16>
    %cst_13 = arith.constant dense<0.000000e+00> : vector<8x8xf32>
    %35 = tpu.matmul %34, %21, %cst_13 {dimension_numbers = #tpu.dot_dimension_numbers<[1], [0], [0], [1], [0, 0, 1, 1], [], []>} : vector<8x8xbf16>, vector<8x8xbf16>, vector<8x8xf32> -> vector<8x8xf32>
    %36 = vector.extract_strided_slice %9 {offsets = [0, 8], sizes = [8, 8], strides = [1, 1]} : vector<8x32xf32> to vector<8x8xf32>
    %cst_14 = arith.constant 0.353553385 : f32
    %37 = vector.broadcast %cst_14 : f32 to vector<8x8xf32>
    %38 = arith.mulf %36, %37 : vector<8x8xf32>
    %39 = arith.truncf %38 : vector<8x8xf32> to vector<8x8xbf16>
    %40 = vector.extract_strided_slice %10 {offsets = [0, 8], sizes = [8, 8], strides = [1, 1]} : vector<8x32xf32> to vector<8x8xf32>
    %41 = arith.truncf %40 : vector<8x8xf32> to vector<8x8xbf16>
    %42 = vector.extract_strided_slice %11 {offsets = [0, 8], sizes = [8, 8], strides = [1, 1]} : vector<8x32xf32> to vector<8x8xf32>
    %43 = arith.truncf %42 : vector<8x8xf32> to vector<8x8xbf16>
    %cst_15 = arith.constant dense<0.000000e+00> : vector<8x8xf32>
    %44 = tpu.matmul %39, %41, %cst_15 {dimension_numbers = #tpu.dot_dimension_numbers<[1], [1], [0], [0], [0, 0, 1, 0], [], []>} : vector<8x8xbf16>, vector<8x8xbf16>, vector<8x8xf32> -> vector<8x8xf32>
    %45 = arith.addf %44, %13 : vector<8x8xf32>
    %cst_16 = arith.constant dense<0xFF800000> : vector<8xf32>
    %46 = vector.multi_reduction <maximumf>, %45, %cst_16 [1] : vector<8x8xf32> to vector<8xf32>
    %47 = vector.shape_cast %46 : vector<8xf32> to vector<8x1xf32>
    %48 = vector.broadcast %47 : vector<8x1xf32> to vector<8x8xf32>
    %49 = arith.subf %45, %48 : vector<8x8xf32>
    %50 = math.exp %49 : vector<8x8xf32>
    %cst_17 = arith.constant dense<0.000000e+00> : vector<8xf32>
    %51 = vector.multi_reduction <add>, %50, %cst_17 [1] : vector<8x8xf32> to vector<8xf32>
    %52 = vector.shape_cast %51 : vector<8xf32> to vector<8x1xf32>
    %53 = tpu.reciprocal %52 {approx = true} : vector<8x1xf32> -> vector<8x1xf32>
    %54 = vector.broadcast %53 : vector<8x1xf32> to vector<8x8xf32>
    %55 = arith.mulf %50, %54 : vector<8x8xf32>
    %56 = arith.truncf %55 : vector<8x8xf32> to vector<8x8xbf16>
    %cst_18 = arith.constant dense<0.000000e+00> : vector<8x8xf32>
    %57 = tpu.matmul %56, %43, %cst_18 {dimension_numbers = #tpu.dot_dimension_numbers<[1], [0], [0], [1], [0, 0, 1, 1], [], []>} : vector<8x8xbf16>, vector<8x8xbf16>, vector<8x8xf32> -> vector<8x8xf32>
    %58 = vector.extract_strided_slice %9 {offsets = [0, 16], sizes = [8, 8], strides = [1, 1]} : vector<8x32xf32> to vector<8x8xf32>
    %cst_19 = arith.constant 0.353553385 : f32
    %59 = vector.broadcast %cst_19 : f32 to vector<8x8xf32>
    %60 = arith.mulf %58, %59 : vector<8x8xf32>
    %61 = arith.truncf %60 : vector<8x8xf32> to vector<8x8xbf16>
    %62 = vector.extract_strided_slice %10 {offsets = [0, 16], sizes = [8, 8], strides = [1, 1]} : vector<8x32xf32> to vector<8x8xf32>
    %63 = arith.truncf %62 : vector<8x8xf32> to vector<8x8xbf16>
    %64 = vector.extract_strided_slice %11 {offsets = [0, 16], sizes = [8, 8], strides = [1, 1]} : vector<8x32xf32> to vector<8x8xf32>
    %65 = arith.truncf %64 : vector<8x8xf32> to vector<8x8xbf16>
    %cst_20 = arith.constant dense<0.000000e+00> : vector<8x8xf32>
    %66 = tpu.matmul %61, %63, %cst_20 {dimension_numbers = #tpu.dot_dimension_numbers<[1], [1], [0], [0], [0, 0, 1, 0], [], []>} : vector<8x8xbf16>, vector<8x8xbf16>, vector<8x8xf32> -> vector<8x8xf32>
    %67 = arith.addf %66, %13 : vector<8x8xf32>
    %cst_21 = arith.constant dense<0xFF800000> : vector<8xf32>
    %68 = vector.multi_reduction <maximumf>, %67, %cst_21 [1] : vector<8x8xf32> to vector<8xf32>
    %69 = vector.shape_cast %68 : vector<8xf32> to vector<8x1xf32>
    %70 = vector.broadcast %69 : vector<8x1xf32> to vector<8x8xf32>
    %71 = arith.subf %67, %70 : vector<8x8xf32>
    %72 = math.exp %71 : vector<8x8xf32>
    %cst_22 = arith.constant dense<0.000000e+00> : vector<8xf32>
    %73 = vector.multi_reduction <add>, %72, %cst_22 [1] : vector<8x8xf32> to vector<8xf32>
    %74 = vector.shape_cast %73 : vector<8xf32> to vector<8x1xf32>
    %75 = tpu.reciprocal %74 {approx = true} : vector<8x1xf32> -> vector<8x1xf32>
    %76 = vector.broadcast %75 : vector<8x1xf32> to vector<8x8xf32>
    %77 = arith.mulf %72, %76 : vector<8x8xf32>
    %78 = arith.truncf %77 : vector<8x8xf32> to vector<8x8xbf16>
    %cst_23 = arith.constant dense<0.000000e+00> : vector<8x8xf32>
    %79 = tpu.matmul %78, %65, %cst_23 {dimension_numbers = #tpu.dot_dimension_numbers<[1], [0], [0], [1], [0, 0, 1, 1], [], []>} : vector<8x8xbf16>, vector<8x8xbf16>, vector<8x8xf32> -> vector<8x8xf32>
    %80 = vector.extract_strided_slice %9 {offsets = [0, 24], sizes = [8, 8], strides = [1, 1]} : vector<8x32xf32> to vector<8x8xf32>
    %cst_24 = arith.constant 0.353553385 : f32
    %81 = vector.broadcast %cst_24 : f32 to vector<8x8xf32>
    %82 = arith.mulf %80, %81 : vector<8x8xf32>
    %83 = arith.truncf %82 : vector<8x8xf32> to vector<8x8xbf16>
    %84 = vector.extract_strided_slice %10 {offsets = [0, 24], sizes = [8, 8], strides = [1, 1]} : vector<8x32xf32> to vector<8x8xf32>
    %85 = arith.truncf %84 : vector<8x8xf32> to vector<8x8xbf16>
    %86 = vector.extract_strided_slice %11 {offsets = [0, 24], sizes = [8, 8], strides = [1, 1]} : vector<8x32xf32> to vector<8x8xf32>
    %87 = arith.truncf %86 : vector<8x8xf32> to vector<8x8xbf16>
    %cst_25 = arith.constant dense<0.000000e+00> : vector<8x8xf32>
    %88 = tpu.matmul %83, %85, %cst_25 {dimension_numbers = #tpu.dot_dimension_numbers<[1], [1], [0], [0], [0, 0, 1, 0], [], []>} : vector<8x8xbf16>, vector<8x8xbf16>, vector<8x8xf32> -> vector<8x8xf32>
    %89 = arith.addf %88, %13 : vector<8x8xf32>
    %cst_26 = arith.constant dense<0xFF800000> : vector<8xf32>
    %90 = vector.multi_reduction <maximumf>, %89, %cst_26 [1] : vector<8x8xf32> to vector<8xf32>
    %91 = vector.shape_cast %90 : vector<8xf32> to vector<8x1xf32>
    %92 = vector.broadcast %91 : vector<8x1xf32> to vector<8x8xf32>
    %93 = arith.subf %89, %92 : vector<8x8xf32>
    %94 = math.exp %93 : vector<8x8xf32>
    %cst_27 = arith.constant dense<0.000000e+00> : vector<8xf32>
    %95 = vector.multi_reduction <add>, %94, %cst_27 [1] : vector<8x8xf32> to vector<8xf32>
    %96 = vector.shape_cast %95 : vector<8xf32> to vector<8x1xf32>
    %97 = tpu.reciprocal %96 {approx = true} : vector<8x1xf32> -> vector<8x1xf32>
    %98 = vector.broadcast %97 : vector<8x1xf32> to vector<8x8xf32>
    %99 = arith.mulf %94, %98 : vector<8x8xf32>
    %100 = arith.truncf %99 : vector<8x8xf32> to vector<8x8xbf16>
    %cst_28 = arith.constant dense<0.000000e+00> : vector<8x8xf32>
    %101 = tpu.matmul %100, %87, %cst_28 {dimension_numbers = #tpu.dot_dimension_numbers<[1], [0], [0], [1], [0, 0, 1, 1], [], []>} : vector<8x8xbf16>, vector<8x8xbf16>, vector<8x8xf32> -> vector<8x8xf32>
    %102 = tpu.concatenate %35, %57, %79, %101 in 1 : vector<8x8xf32>, vector<8x8xf32>, vector<8x8xf32>, vector<8x8xf32> -> vector<8x32xf32>
    %103 = arith.truncf %102 : vector<8x32xf32> to vector<8x32xbf16>
    %c0_29 = arith.constant 0 : index
    %c0_30 = arith.constant 0 : index
    %104 = vector.load %arg5[%c0_29, %c0_30] : memref<32x32xf32, #tpu.memory_space<vmem>>, vector<32x32xf32>
    %105 = arith.truncf %104 : vector<32x32xf32> to vector<32x32xbf16>
    %cst_31 = arith.constant dense<0.000000e+00> : vector<8x32xf32>
    %106 = tpu.matmul %103, %105, %cst_31 {dimension_numbers = #tpu.dot_dimension_numbers<[1], [0], [0], [1], [0, 0, 1, 1], [], []>} : vector<8x32xbf16>, vector<32x32xbf16>, vector<8x32xf32> -> vector<8x32xf32>
    %c0_32 = arith.constant 0 : index
    %c0_33 = arith.constant 0 : index
    %107 = vector.load %arg6[%c0_32, %c0_33] : memref<1x32xf32, #tpu.memory_space<vmem>>, vector<1x32xf32>
    %108 = vector.broadcast %107 : vector<1x32xf32> to vector<8x32xf32>
    %109 = arith.addf %106, %108 : vector<8x32xf32>
    %110 = arith.addf %1, %109 : vector<8x32xf32>
    %cst_34 = arith.constant dense<0.000000e+00> : vector<8xf32>
    %111 = vector.multi_reduction <add>, %110, %cst_34 [1] : vector<8x32xf32> to vector<8xf32>
    %112 = vector.shape_cast %111 : vector<8xf32> to vector<8x1xf32>
    %cst_35 = arith.constant 3.200000e+01 : f32
    %113 = vector.broadcast %cst_35 : f32 to vector<8x1xf32>
    %114 = arith.divf %112, %113 : vector<8x1xf32>
    %115 = vector.broadcast %114 : vector<8x1xf32> to vector<8x32xf32>
    %116 = arith.subf %110, %115 : vector<8x32xf32>
    %117 = arith.mulf %116, %116 : vector<8x32xf32>
    %cst_36 = arith.constant dense<0.000000e+00> : vector<8xf32>
    %118 = vector.multi_reduction <add>, %117, %cst_36 [1] : vector<8x32xf32> to vector<8xf32>
    %119 = vector.shape_cast %118 : vector<8xf32> to vector<8x1xf32>
    %cst_37 = arith.constant 3.200000e+01 : f32
    %120 = vector.broadcast %cst_37 : f32 to vector<8x1xf32>
    %121 = arith.divf %119, %120 : vector<8x1xf32>
    %122 = vector.broadcast %114 : vector<8x1xf32> to vector<8x32xf32>
    %123 = arith.subf %110, %122 : vector<8x32xf32>
    %cst_38 = arith.constant 9.99999974E-6 : f32
    %124 = vector.broadcast %cst_38 : f32 to vector<8x1xf32>
    %125 = arith.addf %121, %124 : vector<8x1xf32>
    %126 = math.rsqrt %125 : vector<8x1xf32>
    %127 = vector.broadcast %126 : vector<8x1xf32> to vector<8x32xf32>
    %128 = arith.mulf %123, %127 : vector<8x32xf32>
    %c0_39 = arith.constant 0 : index
    %c0_40 = arith.constant 0 : index
    %129 = vector.load %arg7[%c0_39, %c0_40] : memref<1x32xf32, #tpu.memory_space<vmem>>, vector<1x32xf32>
    %130 = vector.broadcast %129 : vector<1x32xf32> to vector<8x32xf32>
    %131 = arith.mulf %128, %130 : vector<8x32xf32>
    %c0_41 = arith.constant 0 : index
    %c0_42 = arith.constant 0 : index
    %132 = vector.load %arg8[%c0_41, %c0_42] : memref<1x32xf32, #tpu.memory_space<vmem>>, vector<1x32xf32>
    %133 = vector.broadcast %132 : vector<1x32xf32> to vector<8x32xf32>
    %134 = arith.addf %131, %133 : vector<8x32xf32>
    %c0_43 = arith.constant 0 : index
    %c0_44 = arith.constant 0 : index
    %c0_45 = arith.constant 0 : index
    %135 = vector.load %arg9[%c0_43, %c0_44, %c0_45] : memref<1x8x32xf32, #tpu.memory_space<vmem>>, vector<1x8x32xf32>
    %136 = vector.shape_cast %135 : vector<1x8x32xf32> to vector<8x32xf32>
    %137 = vector.shape_cast %134 : vector<8x32xf32> to vector<1x8x32xf32>
    tpu.vector_store %arg9[%c0_43, %c0_44, %c0_45], %137 {strides = array<i32>} : memref<1x8x32xf32, #tpu.memory_space<vmem>>, vector<1x8x32xf32>,
    return
  }
  func.func @transform_0(%arg0: i32) -> (i32, i32, i32) {
    %c0_i32 = arith.constant 0 : i32
    %c0_i32_0 = arith.constant 0 : i32
    %c0_i32_1 = arith.constant 0 : i32
    return %arg0, %c0_i32, %c0_i32_0 : i32, i32, i32
  }
  func.func @transform_1(%arg0: i32) -> (i32, i32, i32) {
    %c0_i32 = arith.constant 0 : i32
    %c0_i32_0 = arith.constant 0 : i32
    %c0_i32_1 = arith.constant 0 : i32
    return %arg0, %c0_i32, %c0_i32_0 : i32, i32, i32
  }
  func.func @transform_2(%arg0: i32) -> (i32, i32) {
    %c0_i32 = arith.constant 0 : i32
    %c0_i32_0 = arith.constant 0 : i32
    %c0_i32_1 = arith.constant 0 : i32
    return %c0_i32, %c0_i32_0 : i32, i32
  }
  func.func @transform_3(%arg0: i32) -> (i32, i32) {
    %c0_i32 = arith.constant 0 : i32
    %c0_i32_0 = arith.constant 0 : i32
    %c0_i32_1 = arith.constant 0 : i32
    return %c0_i32, %c0_i32_0 : i32, i32
  }
  func.func @transform_4(%arg0: i32) -> (i32, i32) {
    %c0_i32 = arith.constant 0 : i32
    %c0_i32_0 = arith.constant 0 : i32
    %c0_i32_1 = arith.constant 0 : i32
    return %c0_i32, %c0_i32_0 : i32, i32
  }
  func.func @transform_5(%arg0: i32) -> (i32, i32) {
    %c0_i32 = arith.constant 0 : i32
    %c0_i32_0 = arith.constant 0 : i32
    %c0_i32_1 = arith.constant 0 : i32
    return %c0_i32, %c0_i32_0 : i32, i32
  }
  func.func @transform_6(%arg0: i32) -> (i32, i32) {
    %c0_i32 = arith.constant 0 : i32
    %c0_i32_0 = arith.constant 0 : i32
    %c0_i32_1 = arith.constant 0 : i32
    return %c0_i32, %c0_i32_0 : i32, i32
  }
  func.func @transform_7(%arg0: i32) -> (i32, i32) {
    %c0_i32 = arith.constant 0 : i32
    %c0_i32_0 = arith.constant 0 : i32
    %c0_i32_1 = arith.constant 0 : i32
    return %c0_i32, %c0_i32_0 : i32, i32
  }
  func.func @transform_8(%arg0: i32) -> (i32, i32, i32) {
    %c0_i32 = arith.constant 0 : i32
    %c0_i32_0 = arith.constant 0 : i32
    %c0_i32_1 = arith.constant 0 : i32
    return %arg0, %c0_i32, %c0_i32_0 : i32, i32, i32
  }
}

module attributes {stable_mosaic.version = 11 : i64} {
  func.func @_cross_attn_kernel(%arg0: i32, %arg1: memref<1x8x32xf32, #tpu.memory_space<vmem>>, %arg2: memref<1x8x32xf32, #tpu.memory_space<vmem>>, %arg3: memref<1x8x8xf32, #tpu.memory_space<vmem>>, %arg4: memref<32x32xf32, #tpu.memory_space<vmem>>, %arg5: memref<1x32xf32, #tpu.memory_space<vmem>>, %arg6: memref<32x64xf32, #tpu.memory_space<vmem>>, %arg7: memref<1x64xf32, #tpu.memory_space<vmem>>, %arg8: memref<32x32xf32, #tpu.memory_space<vmem>>, %arg9: memref<1x32xf32, #tpu.memory_space<vmem>>, %arg10: memref<1x32xf32, #tpu.memory_space<vmem>>, %arg11: memref<1x32xf32, #tpu.memory_space<vmem>>, %arg12: memref<1x8x32xf32, #tpu.memory_space<vmem>>) attributes {dimension_semantics = [#tpu.dimension_semantics<parallel>], iteration_bounds = array<i64: 2>, scalar_prefetch = 0 : i64, scratch_operands = 0 : i64, tpu.core_type = #tpu.core_type<tc>, window_params = [{transform_indices = @transform_0, window_bounds = array<i64: 1, 8, 32>}, {transform_indices = @transform_1, window_bounds = array<i64: 1, 8, 32>}, {transform_indices = @transform_2, window_bounds = array<i64: 1, 8, 8>}, {pipeline_mode = #tpu.pipeline_mode<synchronous>, transform_indices = @transform_3, window_bounds = array<i64: 32, 32>}, {pipeline_mode = #tpu.pipeline_mode<synchronous>, transform_indices = @transform_4, window_bounds = array<i64: 1, 32>}, {pipeline_mode = #tpu.pipeline_mode<synchronous>, transform_indices = @transform_5, window_bounds = array<i64: 32, 64>}, {pipeline_mode = #tpu.pipeline_mode<synchronous>, transform_indices = @transform_6, window_bounds = array<i64: 1, 64>}, {pipeline_mode = #tpu.pipeline_mode<synchronous>, transform_indices = @transform_7, window_bounds = array<i64: 32, 32>}, {pipeline_mode = #tpu.pipeline_mode<synchronous>, transform_indices = @transform_8, window_bounds = array<i64: 1, 32>}, {pipeline_mode = #tpu.pipeline_mode<synchronous>, transform_indices = @transform_9, window_bounds = array<i64: 1, 32>}, {pipeline_mode = #tpu.pipeline_mode<synchronous>, transform_indices = @transform_10, window_bounds = array<i64: 1, 32>}, {transform_indices = @transform_11, window_bounds = array<i64: 1, 8, 32>}]} {
    %c0 = arith.constant 0 : index
    %c0_0 = arith.constant 0 : index
    %c0_1 = arith.constant 0 : index
    %0 = vector.load %arg1[%c0, %c0_0, %c0_1] : memref<1x8x32xf32, #tpu.memory_space<vmem>>, vector<1x8x32xf32>
    %1 = vector.shape_cast %0 : vector<1x8x32xf32> to vector<8x32xf32>
    %c0_2 = arith.constant 0 : index
    %c0_3 = arith.constant 0 : index
    %c0_4 = arith.constant 0 : index
    %2 = vector.load %arg2[%c0_2, %c0_3, %c0_4] : memref<1x8x32xf32, #tpu.memory_space<vmem>>, vector<1x8x32xf32>
    %3 = vector.shape_cast %2 : vector<1x8x32xf32> to vector<8x32xf32>
    %4 = arith.truncf %1 : vector<8x32xf32> to vector<8x32xbf16>
    %c0_5 = arith.constant 0 : index
    %c0_6 = arith.constant 0 : index
    %5 = vector.load %arg4[%c0_5, %c0_6] : memref<32x32xf32, #tpu.memory_space<vmem>>, vector<32x32xf32>
    %6 = arith.truncf %5 : vector<32x32xf32> to vector<32x32xbf16>
    %cst = arith.constant dense<0.000000e+00> : vector<8x32xf32>
    %7 = tpu.matmul %4, %6, %cst {dimension_numbers = #tpu.dot_dimension_numbers<[1], [0], [0], [1], [0, 0, 1, 1], [], []>} : vector<8x32xbf16>, vector<32x32xbf16>, vector<8x32xf32> -> vector<8x32xf32>
    %c0_7 = arith.constant 0 : index
    %c0_8 = arith.constant 0 : index
    %8 = vector.load %arg5[%c0_7, %c0_8] : memref<1x32xf32, #tpu.memory_space<vmem>>, vector<1x32xf32>
    %9 = vector.broadcast %8 : vector<1x32xf32> to vector<8x32xf32>
    %10 = arith.addf %7, %9 : vector<8x32xf32>
    %11 = arith.truncf %3 : vector<8x32xf32> to vector<8x32xbf16>
    %c0_9 = arith.constant 0 : index
    %c0_10 = arith.constant 0 : index
    %12 = vector.load %arg6[%c0_9, %c0_10] : memref<32x64xf32, #tpu.memory_space<vmem>>, vector<32x64xf32>
    %13 = arith.truncf %12 : vector<32x64xf32> to vector<32x64xbf16>
    %cst_11 = arith.constant dense<0.000000e+00> : vector<8x64xf32>
    %14 = tpu.matmul %11, %13, %cst_11 {dimension_numbers = #tpu.dot_dimension_numbers<[1], [0], [0], [1], [0, 0, 1, 1], [], []>} : vector<8x32xbf16>, vector<32x64xbf16>, vector<8x64xf32> -> vector<8x64xf32>
    %c0_12 = arith.constant 0 : index
    %c0_13 = arith.constant 0 : index
    %15 = vector.load %arg7[%c0_12, %c0_13] : memref<1x64xf32, #tpu.memory_space<vmem>>, vector<1x64xf32>
    %16 = vector.broadcast %15 : vector<1x64xf32> to vector<8x64xf32>
    %17 = arith.addf %14, %16 : vector<8x64xf32>
    %18 = vector.extract_strided_slice %17 {offsets = [0, 0], sizes = [8, 32], strides = [1, 1]} : vector<8x64xf32> to vector<8x32xf32>
    %19 = vector.extract_strided_slice %17 {offsets = [0, 32], sizes = [8, 32], strides = [1, 1]} : vector<8x64xf32> to vector<8x32xf32>
    %c0_14 = arith.constant 0 : index
    %c0_15 = arith.constant 0 : index
    %c0_16 = arith.constant 0 : index
    %20 = vector.load %arg3[%c0_14, %c0_15, %c0_16] : memref<1x8x8xf32, #tpu.memory_space<vmem>>, vector<1x8x8xf32>
    %21 = vector.shape_cast %20 : vector<1x8x8xf32> to vector<8x8xf32>
    %22 = vector.extract_strided_slice %10 {offsets = [0, 0], sizes = [8, 8], strides = [1, 1]} : vector<8x32xf32> to vector<8x8xf32>
    %cst_17 = arith.constant 0.353553385 : f32
    %23 = vector.broadcast %cst_17 : f32 to vector<8x8xf32>
    %24 = arith.mulf %22, %23 : vector<8x8xf32>
    %25 = arith.truncf %24 : vector<8x8xf32> to vector<8x8xbf16>
    %26 = vector.extract_strided_slice %18 {offsets = [0, 0], sizes = [8, 8], strides = [1, 1]} : vector<8x32xf32> to vector<8x8xf32>
    %27 = arith.truncf %26 : vector<8x8xf32> to vector<8x8xbf16>
    %28 = vector.extract_strided_slice %19 {offsets = [0, 0], sizes = [8, 8], strides = [1, 1]} : vector<8x32xf32> to vector<8x8xf32>
    %29 = arith.truncf %28 : vector<8x8xf32> to vector<8x8xbf16>
    %cst_18 = arith.constant dense<0.000000e+00> : vector<8x8xf32>
    %30 = tpu.matmul %25, %27, %cst_18 {dimension_numbers = #tpu.dot_dimension_numbers<[1], [1], [0], [0], [0, 0, 1, 0], [], []>} : vector<8x8xbf16>, vector<8x8xbf16>, vector<8x8xf32> -> vector<8x8xf32>
    %31 = arith.addf %30, %21 : vector<8x8xf32>
    %cst_19 = arith.constant dense<0xFF800000> : vector<8xf32>
    %32 = vector.multi_reduction <maximumf>, %31, %cst_19 [1] : vector<8x8xf32> to vector<8xf32>
    %33 = vector.shape_cast %32 : vector<8xf32> to vector<8x1xf32>
    %34 = vector.broadcast %33 : vector<8x1xf32> to vector<8x8xf32>
    %35 = arith.subf %31, %34 : vector<8x8xf32>
    %36 = math.exp %35 : vector<8x8xf32>
    %cst_20 = arith.constant dense<0.000000e+00> : vector<8xf32>
    %37 = vector.multi_reduction <add>, %36, %cst_20 [1] : vector<8x8xf32> to vector<8xf32>
    %38 = vector.shape_cast %37 : vector<8xf32> to vector<8x1xf32>
    %39 = tpu.reciprocal %38 {approx = true} : vector<8x1xf32> -> vector<8x1xf32>
    %40 = vector.broadcast %39 : vector<8x1xf32> to vector<8x8xf32>
    %41 = arith.mulf %36, %40 : vector<8x8xf32>
    %42 = arith.truncf %41 : vector<8x8xf32> to vector<8x8xbf16>
    %cst_21 = arith.constant dense<0.000000e+00> : vector<8x8xf32>
    %43 = tpu.matmul %42, %29, %cst_21 {dimension_numbers = #tpu.dot_dimension_numbers<[1], [0], [0], [1], [0, 0, 1, 1], [], []>} : vector<8x8xbf16>, vector<8x8xbf16>, vector<8x8xf32> -> vector<8x8xf32>
    %44 = vector.extract_strided_slice %10 {offsets = [0, 8], sizes = [8, 8], strides = [1, 1]} : vector<8x32xf32> to vector<8x8xf32>
    %cst_22 = arith.constant 0.353553385 : f32
    %45 = vector.broadcast %cst_22 : f32 to vector<8x8xf32>
    %46 = arith.mulf %44, %45 : vector<8x8xf32>
    %47 = arith.truncf %46 : vector<8x8xf32> to vector<8x8xbf16>
    %48 = vector.extract_strided_slice %18 {offsets = [0, 8], sizes = [8, 8], strides = [1, 1]} : vector<8x32xf32> to vector<8x8xf32>
    %49 = arith.truncf %48 : vector<8x8xf32> to vector<8x8xbf16>
    %50 = vector.extract_strided_slice %19 {offsets = [0, 8], sizes = [8, 8], strides = [1, 1]} : vector<8x32xf32> to vector<8x8xf32>
    %51 = arith.truncf %50 : vector<8x8xf32> to vector<8x8xbf16>
    %cst_23 = arith.constant dense<0.000000e+00> : vector<8x8xf32>
    %52 = tpu.matmul %47, %49, %cst_23 {dimension_numbers = #tpu.dot_dimension_numbers<[1], [1], [0], [0], [0, 0, 1, 0], [], []>} : vector<8x8xbf16>, vector<8x8xbf16>, vector<8x8xf32> -> vector<8x8xf32>
    %53 = arith.addf %52, %21 : vector<8x8xf32>
    %cst_24 = arith.constant dense<0xFF800000> : vector<8xf32>
    %54 = vector.multi_reduction <maximumf>, %53, %cst_24 [1] : vector<8x8xf32> to vector<8xf32>
    %55 = vector.shape_cast %54 : vector<8xf32> to vector<8x1xf32>
    %56 = vector.broadcast %55 : vector<8x1xf32> to vector<8x8xf32>
    %57 = arith.subf %53, %56 : vector<8x8xf32>
    %58 = math.exp %57 : vector<8x8xf32>
    %cst_25 = arith.constant dense<0.000000e+00> : vector<8xf32>
    %59 = vector.multi_reduction <add>, %58, %cst_25 [1] : vector<8x8xf32> to vector<8xf32>
    %60 = vector.shape_cast %59 : vector<8xf32> to vector<8x1xf32>
    %61 = tpu.reciprocal %60 {approx = true} : vector<8x1xf32> -> vector<8x1xf32>
    %62 = vector.broadcast %61 : vector<8x1xf32> to vector<8x8xf32>
    %63 = arith.mulf %58, %62 : vector<8x8xf32>
    %64 = arith.truncf %63 : vector<8x8xf32> to vector<8x8xbf16>
    %cst_26 = arith.constant dense<0.000000e+00> : vector<8x8xf32>
    %65 = tpu.matmul %64, %51, %cst_26 {dimension_numbers = #tpu.dot_dimension_numbers<[1], [0], [0], [1], [0, 0, 1, 1], [], []>} : vector<8x8xbf16>, vector<8x8xbf16>, vector<8x8xf32> -> vector<8x8xf32>
    %66 = vector.extract_strided_slice %10 {offsets = [0, 16], sizes = [8, 8], strides = [1, 1]} : vector<8x32xf32> to vector<8x8xf32>
    %cst_27 = arith.constant 0.353553385 : f32
    %67 = vector.broadcast %cst_27 : f32 to vector<8x8xf32>
    %68 = arith.mulf %66, %67 : vector<8x8xf32>
    %69 = arith.truncf %68 : vector<8x8xf32> to vector<8x8xbf16>
    %70 = vector.extract_strided_slice %18 {offsets = [0, 16], sizes = [8, 8], strides = [1, 1]} : vector<8x32xf32> to vector<8x8xf32>
    %71 = arith.truncf %70 : vector<8x8xf32> to vector<8x8xbf16>
    %72 = vector.extract_strided_slice %19 {offsets = [0, 16], sizes = [8, 8], strides = [1, 1]} : vector<8x32xf32> to vector<8x8xf32>
    %73 = arith.truncf %72 : vector<8x8xf32> to vector<8x8xbf16>
    %cst_28 = arith.constant dense<0.000000e+00> : vector<8x8xf32>
    %74 = tpu.matmul %69, %71, %cst_28 {dimension_numbers = #tpu.dot_dimension_numbers<[1], [1], [0], [0], [0, 0, 1, 0], [], []>} : vector<8x8xbf16>, vector<8x8xbf16>, vector<8x8xf32> -> vector<8x8xf32>
    %75 = arith.addf %74, %21 : vector<8x8xf32>
    %cst_29 = arith.constant dense<0xFF800000> : vector<8xf32>
    %76 = vector.multi_reduction <maximumf>, %75, %cst_29 [1] : vector<8x8xf32> to vector<8xf32>
    %77 = vector.shape_cast %76 : vector<8xf32> to vector<8x1xf32>
    %78 = vector.broadcast %77 : vector<8x1xf32> to vector<8x8xf32>
    %79 = arith.subf %75, %78 : vector<8x8xf32>
    %80 = math.exp %79 : vector<8x8xf32>
    %cst_30 = arith.constant dense<0.000000e+00> : vector<8xf32>
    %81 = vector.multi_reduction <add>, %80, %cst_30 [1] : vector<8x8xf32> to vector<8xf32>
    %82 = vector.shape_cast %81 : vector<8xf32> to vector<8x1xf32>
    %83 = tpu.reciprocal %82 {approx = true} : vector<8x1xf32> -> vector<8x1xf32>
    %84 = vector.broadcast %83 : vector<8x1xf32> to vector<8x8xf32>
    %85 = arith.mulf %80, %84 : vector<8x8xf32>
    %86 = arith.truncf %85 : vector<8x8xf32> to vector<8x8xbf16>
    %cst_31 = arith.constant dense<0.000000e+00> : vector<8x8xf32>
    %87 = tpu.matmul %86, %73, %cst_31 {dimension_numbers = #tpu.dot_dimension_numbers<[1], [0], [0], [1], [0, 0, 1, 1], [], []>} : vector<8x8xbf16>, vector<8x8xbf16>, vector<8x8xf32> -> vector<8x8xf32>
    %88 = vector.extract_strided_slice %10 {offsets = [0, 24], sizes = [8, 8], strides = [1, 1]} : vector<8x32xf32> to vector<8x8xf32>
    %cst_32 = arith.constant 0.353553385 : f32
    %89 = vector.broadcast %cst_32 : f32 to vector<8x8xf32>
    %90 = arith.mulf %88, %89 : vector<8x8xf32>
    %91 = arith.truncf %90 : vector<8x8xf32> to vector<8x8xbf16>
    %92 = vector.extract_strided_slice %18 {offsets = [0, 24], sizes = [8, 8], strides = [1, 1]} : vector<8x32xf32> to vector<8x8xf32>
    %93 = arith.truncf %92 : vector<8x8xf32> to vector<8x8xbf16>
    %94 = vector.extract_strided_slice %19 {offsets = [0, 24], sizes = [8, 8], strides = [1, 1]} : vector<8x32xf32> to vector<8x8xf32>
    %95 = arith.truncf %94 : vector<8x8xf32> to vector<8x8xbf16>
    %cst_33 = arith.constant dense<0.000000e+00> : vector<8x8xf32>
    %96 = tpu.matmul %91, %93, %cst_33 {dimension_numbers = #tpu.dot_dimension_numbers<[1], [1], [0], [0], [0, 0, 1, 0], [], []>} : vector<8x8xbf16>, vector<8x8xbf16>, vector<8x8xf32> -> vector<8x8xf32>
    %97 = arith.addf %96, %21 : vector<8x8xf32>
    %cst_34 = arith.constant dense<0xFF800000> : vector<8xf32>
    %98 = vector.multi_reduction <maximumf>, %97, %cst_34 [1] : vector<8x8xf32> to vector<8xf32>
    %99 = vector.shape_cast %98 : vector<8xf32> to vector<8x1xf32>
    %100 = vector.broadcast %99 : vector<8x1xf32> to vector<8x8xf32>
    %101 = arith.subf %97, %100 : vector<8x8xf32>
    %102 = math.exp %101 : vector<8x8xf32>
    %cst_35 = arith.constant dense<0.000000e+00> : vector<8xf32>
    %103 = vector.multi_reduction <add>, %102, %cst_35 [1] : vector<8x8xf32> to vector<8xf32>
    %104 = vector.shape_cast %103 : vector<8xf32> to vector<8x1xf32>
    %105 = tpu.reciprocal %104 {approx = true} : vector<8x1xf32> -> vector<8x1xf32>
    %106 = vector.broadcast %105 : vector<8x1xf32> to vector<8x8xf32>
    %107 = arith.mulf %102, %106 : vector<8x8xf32>
    %108 = arith.truncf %107 : vector<8x8xf32> to vector<8x8xbf16>
    %cst_36 = arith.constant dense<0.000000e+00> : vector<8x8xf32>
    %109 = tpu.matmul %108, %95, %cst_36 {dimension_numbers = #tpu.dot_dimension_numbers<[1], [0], [0], [1], [0, 0, 1, 1], [], []>} : vector<8x8xbf16>, vector<8x8xbf16>, vector<8x8xf32> -> vector<8x8xf32>
    %110 = tpu.concatenate %43, %65, %87, %109 in 1 : vector<8x8xf32>, vector<8x8xf32>, vector<8x8xf32>, vector<8x8xf32> -> vector<8x32xf32>
    %111 = arith.truncf %110 : vector<8x32xf32> to vector<8x32xbf16>
    %c0_37 = arith.constant 0 : index
    %c0_38 = arith.constant 0 : index
    %112 = vector.load %arg8[%c0_37, %c0_38] : memref<32x32xf32, #tpu.memory_space<vmem>>, vector<32x32xf32>
    %113 = arith.truncf %112 : vector<32x32xf32> to vector<32x32xbf16>
    %cst_39 = arith.constant dense<0.000000e+00> : vector<8x32xf32>
    %114 = tpu.matmul %111, %113, %cst_39 {dimension_numbers = #tpu.dot_dimension_numbers<[1], [0], [0], [1], [0, 0, 1, 1], [], []>} : vector<8x32xbf16>, vector<32x32xbf16>, vector<8x32xf32> -> vector<8x32xf32>
    %c0_40 = arith.constant 0 : index
    %c0_41 = arith.constant 0 : index
    %115 = vector.load %arg9[%c0_40, %c0_41] : memref<1x32xf32, #tpu.memory_space<vmem>>, vector<1x32xf32>
    %116 = vector.broadcast %115 : vector<1x32xf32> to vector<8x32xf32>
    %117 = arith.addf %114, %116 : vector<8x32xf32>
    %118 = arith.addf %1, %117 : vector<8x32xf32>
    %cst_42 = arith.constant dense<0.000000e+00> : vector<8xf32>
    %119 = vector.multi_reduction <add>, %118, %cst_42 [1] : vector<8x32xf32> to vector<8xf32>
    %120 = vector.shape_cast %119 : vector<8xf32> to vector<8x1xf32>
    %cst_43 = arith.constant 3.200000e+01 : f32
    %121 = vector.broadcast %cst_43 : f32 to vector<8x1xf32>
    %122 = arith.divf %120, %121 : vector<8x1xf32>
    %123 = vector.broadcast %122 : vector<8x1xf32> to vector<8x32xf32>
    %124 = arith.subf %118, %123 : vector<8x32xf32>
    %125 = arith.mulf %124, %124 : vector<8x32xf32>
    %cst_44 = arith.constant dense<0.000000e+00> : vector<8xf32>
    %126 = vector.multi_reduction <add>, %125, %cst_44 [1] : vector<8x32xf32> to vector<8xf32>
    %127 = vector.shape_cast %126 : vector<8xf32> to vector<8x1xf32>
    %cst_45 = arith.constant 3.200000e+01 : f32
    %128 = vector.broadcast %cst_45 : f32 to vector<8x1xf32>
    %129 = arith.divf %127, %128 : vector<8x1xf32>
    %130 = vector.broadcast %122 : vector<8x1xf32> to vector<8x32xf32>
    %131 = arith.subf %118, %130 : vector<8x32xf32>
    %cst_46 = arith.constant 9.99999974E-6 : f32
    %132 = vector.broadcast %cst_46 : f32 to vector<8x1xf32>
    %133 = arith.addf %129, %132 : vector<8x1xf32>
    %134 = math.rsqrt %133 : vector<8x1xf32>
    %135 = vector.broadcast %134 : vector<8x1xf32> to vector<8x32xf32>
    %136 = arith.mulf %131, %135 : vector<8x32xf32>
    %c0_47 = arith.constant 0 : index
    %c0_48 = arith.constant 0 : index
    %137 = vector.load %arg10[%c0_47, %c0_48] : memref<1x32xf32, #tpu.memory_space<vmem>>, vector<1x32xf32>
    %138 = vector.broadcast %137 : vector<1x32xf32> to vector<8x32xf32>
    %139 = arith.mulf %136, %138 : vector<8x32xf32>
    %c0_49 = arith.constant 0 : index
    %c0_50 = arith.constant 0 : index
    %140 = vector.load %arg11[%c0_49, %c0_50] : memref<1x32xf32, #tpu.memory_space<vmem>>, vector<1x32xf32>
    %141 = vector.broadcast %140 : vector<1x32xf32> to vector<8x32xf32>
    %142 = arith.addf %139, %141 : vector<8x32xf32>
    %c0_51 = arith.constant 0 : index
    %c0_52 = arith.constant 0 : index
    %c0_53 = arith.constant 0 : index
    %143 = vector.load %arg12[%c0_51, %c0_52, %c0_53] : memref<1x8x32xf32, #tpu.memory_space<vmem>>, vector<1x8x32xf32>
    %144 = vector.shape_cast %143 : vector<1x8x32xf32> to vector<8x32xf32>
    %145 = vector.shape_cast %142 : vector<8x32xf32> to vector<1x8x32xf32>
    tpu.vector_store %arg12[%c0_51, %c0_52, %c0_53], %145 {strides = array<i32>} : memref<1x8x32xf32, #tpu.memory_space<vmem>>, vector<1x8x32xf32>,
    return
  }
  func.func @transform_0(%arg0: i32) -> (i32, i32, i32) {
    %c0_i32 = arith.constant 0 : i32
    %c0_i32_0 = arith.constant 0 : i32
    %c0_i32_1 = arith.constant 0 : i32
    return %arg0, %c0_i32, %c0_i32_0 : i32, i32, i32
  }
  func.func @transform_1(%arg0: i32) -> (i32, i32, i32) {
    %c0_i32 = arith.constant 0 : i32
    %c0_i32_0 = arith.constant 0 : i32
    %c0_i32_1 = arith.constant 0 : i32
    return %arg0, %c0_i32, %c0_i32_0 : i32, i32, i32
  }
  func.func @transform_2(%arg0: i32) -> (i32, i32, i32) {
    %c0_i32 = arith.constant 0 : i32
    %c0_i32_0 = arith.constant 0 : i32
    %c0_i32_1 = arith.constant 0 : i32
    return %arg0, %c0_i32, %c0_i32_0 : i32, i32, i32
  }
  func.func @transform_3(%arg0: i32) -> (i32, i32) {
    %c0_i32 = arith.constant 0 : i32
    %c0_i32_0 = arith.constant 0 : i32
    %c0_i32_1 = arith.constant 0 : i32
    return %c0_i32, %c0_i32_0 : i32, i32
  }
  func.func @transform_4(%arg0: i32) -> (i32, i32) {
    %c0_i32 = arith.constant 0 : i32
    %c0_i32_0 = arith.constant 0 : i32
    %c0_i32_1 = arith.constant 0 : i32
    return %c0_i32, %c0_i32_0 : i32, i32
  }
  func.func @transform_5(%arg0: i32) -> (i32, i32) {
    %c0_i32 = arith.constant 0 : i32
    %c0_i32_0 = arith.constant 0 : i32
    %c0_i32_1 = arith.constant 0 : i32
    return %c0_i32, %c0_i32_0 : i32, i32
  }
  func.func @transform_6(%arg0: i32) -> (i32, i32) {
    %c0_i32 = arith.constant 0 : i32
    %c0_i32_0 = arith.constant 0 : i32
    %c0_i32_1 = arith.constant 0 : i32
    return %c0_i32, %c0_i32_0 : i32, i32
  }
  func.func @transform_7(%arg0: i32) -> (i32, i32) {
    %c0_i32 = arith.constant 0 : i32
    %c0_i32_0 = arith.constant 0 : i32
    %c0_i32_1 = arith.constant 0 : i32
    return %c0_i32, %c0_i32_0 : i32, i32
  }
  func.func @transform_8(%arg0: i32) -> (i32, i32) {
    %c0_i32 = arith.constant 0 : i32
    %c0_i32_0 = arith.constant 0 : i32
    %c0_i32_1 = arith.constant 0 : i32
    return %c0_i32, %c0_i32_0 : i32, i32
  }
  func.func @transform_9(%arg0: i32) -> (i32, i32) {
    %c0_i32 = arith.constant 0 : i32
    %c0_i32_0 = arith.constant 0 : i32
    %c0_i32_1 = arith.constant 0 : i32
    return %c0_i32, %c0_i32_0 : i32, i32
  }
  func.func @transform_10(%arg0: i32) -> (i32, i32) {
    %c0_i32 = arith.constant 0 : i32
    %c0_i32_0 = arith.constant 0 : i32
    %c0_i32_1 = arith.constant 0 : i32
    return %c0_i32, %c0_i32_0 : i32, i32
  }
  func.func @transform_11(%arg0: i32) -> (i32, i32, i32) {
    %c0_i32 = arith.constant 0 : i32
    %c0_i32_0 = arith.constant 0 : i32
    %c0_i32_1 = arith.constant 0 : i32
    return %arg0, %c0_i32, %c0_i32_0 : i32, i32, i32
  }
}

</mosaic_0001>

<llo_original>
// kernel: natransformer_forward.32
$region0: #{natransformer_forward.32}
  #allocation0 [shape = 'u32[]', space=smem, size = 0x4, offset = 0x4, fixed_abs, tag = 'smem constant byte address 0x4 - core index']
  #allocation1 [shape = 'u32[144,128]{1,0:T(1,128)}', space=vmem, size = 0x12000, scoped, tag = 'internal scratch']
  %s0 = inlined_call_operand.vmem [shape: f32[16,32], index: 0, kind: input, shape index: {}]
  %s1 = inlined_call_operand.vmem [shape: f32[32,128], index: 1, kind: input, shape index: {}]
  %s2 = inlined_call_operand.vmem [shape: f32[1,128], index: 2, kind: input, shape index: {}]
  %s3 = inlined_call_operand.vmem [shape: f32[16,128], index: 3, kind: output, shape index: {}]
  %s4 = sld [smem:[#allocation0]]
  $region22: #{natransformer_forward.32} parent=0
    _
  %s6 = ssub.s32 1, %s4
  %s7 = scalar_select 0, %s6, %s4
  // Predicated region
  $region2: #{natransformer_forward.32} parent=0 // pred_check
    _
  $region3: #{natransformer_forward.32} parent=0 // pred_check_branch
    %9 = sbr.rel (0) target = $region5
  $region4: #{natransformer_forward.32} parent=0 // pred_region
    _
  $region5: #{natransformer_forward.32} parent=0 // pred_fallthru
    _
  // Predicated region
  $region6: #{natransformer_forward.32} parent=0 // pred_check
    _
  $region7: #{natransformer_forward.32} parent=0 // pred_check_branch
    %11 = sbr.rel (0) target = $region9
  $region8: #{natransformer_forward.32} parent=0 // pred_region
    _
  $region9: #{natransformer_forward.32} parent=0 // pred_fallthru
    _
  // Predicated region
  $region10: #{natransformer_forward.32} parent=0 // pred_check
    _
  $region11: #{natransformer_forward.32} parent=0 // pred_check_branch
    %13 = sbr.rel (0) target = $region13
  $region12: #{natransformer_forward.32} parent=0 // pred_region
    _
  $region13: #{natransformer_forward.32} parent=0 // pred_fallthru
    _
  %v15 = vld [vmem:[%s0] sm:$0xff]
  %v16 = vld [vmem:[%s0 + $0x8] sm:$0xff]
  %v17 = vpack.c.bf16 %v16, %v15
  %v18 = vld [vmem:[%s1] sm:$0xff]
  %v19 = vld [vmem:[%s1 + $0x8] sm:$0xff]
  %v20 = vld [vmem:[%s1 + $0x10] sm:$0xff]
  %v21 = vld [vmem:[%s1 + $0x18] sm:$0xff]
  %v22 = vpack.c.bf16 %v19, %v18
  %v23 = vpack.c.bf16 %v21, %v20
  %v24 = vld [vmem:[%s2] sm:$0x1]
  %v26 = vlaneseq
  %v27 = vshrl.u32 %v26, 7
  %v28 = vsub.s32 0, %v27
  %v29 = vrot.slane %v24, %v28
  %vm31 = vcmask 261120
  %v33 = vsel %vm31, %v17, 0
  %35 = vmatprep.subr.bf16.mxu0 0
  %36 = vmatpush1.bf16.msra.mxu0 0
  %37 = vmatprep.subr.bf16.mxu0 0
  %38 = vmatpush1.bf16.msra.mxu0 0
  %39 = vmatprep.subr.bf16.mxu0 0
  %40 = vmatpush1.bf16.msra.mxu0 0
  %41 = vmatprep.subr.bf16.mxu0 0
  %42 = vmatpush1.bf16.msra.mxu0 0
  %43 = vmatprep.subr.bf16.mxu0 0
  %44 = vmatpush1.bf16.msra.mxu0 0
  %45 = vmatprep.subr.bf16.mxu0 0
  %46 = vmatpush1.bf16.msra.mxu0 0
  %47 = vmatprep.subr.bf16.mxu0 0
  %48 = vmatpush1.bf16.msra.mxu0 %v23
  %49 = vmatprep.subr.bf16.mxu0 0
  %50 = vmatpush1.bf16.msra.mxu0 %v22
  %51 = vmatprep.subr.bf16.mxu0 0
  %52 = vmatpush2.bf16.msra.mxu0 0
  %53 = vmatprep.subr.bf16.mxu0 0
  %54 = vmatpush2.bf16.msra.mxu0 0
  %55 = vmatprep.subr.bf16.mxu0 0
  %56 = vmatpush2.bf16.msra.mxu0 0
  %57 = vmatprep.subr.bf16.mxu0 0
  %58 = vmatpush2.bf16.msra.mxu0 0
  %59 = vmatprep.subr.bf16.mxu0 0
  %60 = vmatpush2.bf16.msra.mxu0 0
  %61 = vmatprep.subr.bf16.mxu0 0
  %62 = vmatpush2.bf16.msra.mxu0 0
  %63 = vmatprep.subr.bf16.mxu0 0
  %64 = vmatpush2.bf16.msra.mxu0 0
  %65 = vmatprep.subr.bf16.mxu0 0
  %66 = vmatpush2.bf16.msra.mxu0 0
  %67 = vmatprep.mubr.bf16.mxu0 0
  %68 = vmatmul.mubr.bf16.gmra.mxu0 %v33
  %v69 = vpop.f32.mrf.mxu0
  %v70 = vadd.f32 %v29, %v69
  %v71 = vpop.f32.mrf.mxu0
  %v72 = vpop.f32.mrf.mxu0
  %v73 = vadd.f32 %v29, %v72
  %v74 = vpop.f32.mrf.mxu0
  %75 = vdwg.mxu0
  %76 = vst [vmem:[%s3] sm:$0xff] %v70
  %77 = vst [vmem:[%s3 + $0x8] sm:$0xff] %v73
  // Predicated region
  $region14: #{natransformer_forward.32} parent=0 // pred_check
    _
  $region15: #{natransformer_forward.32} parent=0 // pred_check_branch
    %79 = sbr.rel (0) target = $region17
  $region16: #{natransformer_forward.32} parent=0 // pred_region
    _
  $region17: #{natransformer_forward.32} parent=0 // pred_fallthru
    _
  // Predicated region
  $region18: #{natransformer_forward.32} parent=0 // pred_check
    _
  $region19: #{natransformer_forward.32} parent=0 // pred_check_branch
    %81 = sbr.rel (0) target = $region21
  $region20: #{natransformer_forward.32} parent=0 // pred_region
    _
  $region21: #{natransformer_forward.32} parent=0 // pred_fallthru
    _

// kernel: natransformer_forward.18
$region0: #{natransformer_forward.18}
  #allocation0 [shape = 'u32[]', space=smem, size = 0x4, offset = 0x4, fixed_abs, tag = 'smem constant byte address 0x4 - core index']
  #allocation1 [shape = 'u32[144,128]{1,0:T(1,128)}', space=vmem, size = 0x12000, scoped, tag = 'internal scratch']
  %s0 = inlined_call_operand.vmem [shape: f32[16,32], index: 0, kind: input, shape index: {}]
  %s1 = inlined_call_operand.vmem [shape: f32[32,64], index: 1, kind: input, shape index: {}]
  %s2 = inlined_call_operand.vmem [shape: f32[1,64], index: 2, kind: input, shape index: {}]
  %s3 = inlined_call_operand.vmem [shape: f32[64,32], index: 3, kind: input, shape index: {}]
  %s4 = inlined_call_operand.vmem [shape: f32[1,32], index: 4, kind: input, shape index: {}]
  %s5 = inlined_call_operand.vmem [shape: f32[1,32], index: 5, kind: input, shape index: {}]
  %s6 = inlined_call_operand.vmem [shape: f32[1,32], index: 6, kind: input, shape index: {}]
  %s7 = inlined_call_operand.vmem [shape: f32[16,32], index: 7, kind: output, shape index: {}]
  %s8 = sld [smem:[#allocation0]]
  $region38: #{natransformer_forward.18} parent=0
    _
  %s10 = ssub.s32 1, %s8
  %s11 = scalar_select 0, %s10, %s8
  // Predicated region
  $region2: #{natransformer_forward.18} parent=0 // pred_check
    _
  $region3: #{natransformer_forward.18} parent=0 // pred_check_branch
    %13 = sbr.rel (0) target = $region5
  $region4: #{natransformer_forward.18} parent=0 // pred_region
    _
  $region5: #{natransformer_forward.18} parent=0 // pred_fallthru
    _
  // Predicated region
  $region6: #{natransformer_forward.18} parent=0 // pred_check
    _
  $region7: #{natransformer_forward.18} parent=0 // pred_check_branch
    %15 = sbr.rel (0) target = $region9
  $region8: #{natransformer_forward.18} parent=0 // pred_region
    _
  $region9: #{natransformer_forward.18} parent=0 // pred_fallthru
    _
  // Predicated region
  $region10: #{natransformer_forward.18} parent=0 // pred_check
    _
  $region11: #{natransformer_forward.18} parent=0 // pred_check_branch
    %17 = sbr.rel (0) target = $region13
  $region12: #{natransformer_forward.18} parent=0 // pred_region
    _
  $region13: #{natransformer_forward.18} parent=0 // pred_fallthru
    _
  // Predicated region
  $region14: #{natransformer_forward.18} parent=0 // pred_check
    _
  $region15: #{natransformer_forward.18} parent=0 // pred_check_branch
    %19 = sbr.rel (0) target = $region17
  $region16: #{natransformer_forward.18} parent=0 // pred_region
    _
  $region17: #{natransformer_forward.18} parent=0 // pred_fallthru
    _
  // Predicated region
  $region18: #{natransformer_forward.18} parent=0 // pred_check
    _
  $region19: #{natransformer_forward.18} parent=0 // pred_check_branch
    %21 = sbr.rel (0) target = $region21
  $region20: #{natransformer_forward.18} parent=0 // pred_region
    _
  $region21: #{natransformer_forward.18} parent=0 // pred_fallthru
    _
  // Predicated region
  $region22: #{natransformer_forward.18} parent=0 // pred_check
    _
  $region23: #{natransformer_forward.18} parent=0 // pred_check_branch
    %23 = sbr.rel (0) target = $region25
  $region24: #{natransformer_forward.18} parent=0 // pred_region
    _
  $region25: #{natransformer_forward.18} parent=0 // pred_fallthru
    _
  // Predicated region
  $region26: #{natransformer_forward.18} parent=0 // pred_check
    _
  $region27: #{natransformer_forward.18} parent=0 // pred_check_branch
    %25 = sbr.rel (0) target = $region29
  $region28: #{natransformer_forward.18} parent=0 // pred_region
    _
  $region29: #{natransformer_forward.18} parent=0 // pred_fallthru
    _
  %v27 = vld [vmem:[%s0] sm:$0xff]
  %v28 = vld [vmem:[%s0 + $0x8] sm:$0xff]
  %v29 = vpack.c.bf16 %v28, %v27
  %v30 = vld [vmem:[%s1] sm:$0xff]
  %v31 = vld [vmem:[%s1 + $0x8] sm:$0xff]
  %v32 = vld [vmem:[%s1 + $0x10] sm:$0xff]
  %v33 = vld [vmem:[%s1 + $0x18] sm:$0xff]
  %v34 = vpack.c.bf16 %v31, %v30
  %v35 = vpack.c.bf16 %v33, %v32
  %v36 = vld [vmem:[%s2] sm:$0x1]
  %v38 = vlaneseq
  %v39 = vshrl.u32 %v38, 7
  %v40 = vsub.s32 0, %v39
  %v41 = vrot.slane %v36, %v40
  %vm43 = vcmask 261120
  %v45 = vsel %vm43, %v29, 0
  %47 = vmatprep.subr.bf16.mxu0 0
  %48 = vmatpush1.bf16.msra.mxu0 0
  %49 = vmatprep.subr.bf16.mxu0 0
  %50 = vmatpush1.bf16.msra.mxu0 0
  %51 = vmatprep.subr.bf16.mxu0 0
  %52 = vmatpush1.bf16.msra.mxu0 0
  %53 = vmatprep.subr.bf16.mxu0 0
  %54 = vmatpush1.bf16.msra.mxu0 0
  %55 = vmatprep.subr.bf16.mxu0 0
  %56 = vmatpush1.bf16.msra.mxu0 0
  %57 = vmatprep.subr.bf16.mxu0 0
  %58 = vmatpush1.bf16.msra.mxu0 0
  %59 = vmatprep.subr.bf16.mxu0 0
  %60 = vmatpush1.bf16.msra.mxu0 %v35
  %61 = vmatprep.subr.bf16.mxu0 0
  %62 = vmatpush1.bf16.msra.mxu0 %v34
  %63 = vmatprep.subr.bf16.mxu0 0
  %64 = vmatpush2.bf16.msra.mxu0 0
  %65 = vmatprep.subr.bf16.mxu0 0
  %66 = vmatpush2.bf16.msra.mxu0 0
  %67 = vmatprep.subr.bf16.mxu0 0
  %68 = vmatpush2.bf16.msra.mxu0 0
  %69 = vmatprep.subr.bf16.mxu0 0
  %70 = vmatpush2.bf16.msra.mxu0 0
  %71 = vmatprep.subr.bf16.mxu0 0
  %72 = vmatpush2.bf16.msra.mxu0 0
  %73 = vmatprep.subr.bf16.mxu0 0
  %74 = vmatpush2.bf16.msra.mxu0 0
  %75 = vmatprep.subr.bf16.mxu0 0
  %76 = vmatpush2.bf16.msra.mxu0 0
  %77 = vmatprep.subr.bf16.mxu0 0
  %78 = vmatpush2.bf16.msra.mxu0 0
  %79 = vmatprep.mubr.bf16.mxu0 0
  %80 = vmatmul.mubr.bf16.gmra.mxu0 %v45
  %v81 = vpop.f32.mrf.mxu0
  %v82 = vadd.f32 %v41, %v81
  %v83 = vpop.f32.mrf.mxu0
  %v84 = vpop.f32.mrf.mxu0
  %v85 = vadd.f32 %v41, %v84
  %v86 = vpop.f32.mrf.mxu0
  %87 = vdwg.mxu0
  %v88 = vmax.f32 %v82, 0.0
  %v89 = vmax.f32 %v85, 0.0
  %v90 = vpack.c.bf16 %v89, %v88
  %v91 = vld [vmem:[%s3] sm:$0xff]
  %v92 = vld [vmem:[%s3 + $0x8] sm:$0xff]
  %v93 = vld [vmem:[%s3 + $0x10] sm:$0xff]
  %v94 = vld [vmem:[%s3 + $0x18] sm:$0xff]
  %v95 = vld [vmem:[%s3 + $0x20] sm:$0xff]
  %v96 = vld [vmem:[%s3 + $0x28] sm:$0xff]
  %v97 = vld [vmem:[%s3 + $0x30] sm:$0xff]
  %v98 = vld [vmem:[%s3 + $0x38] sm:$0xff]
  %v99 = vpack.c.bf16 %v92, %v91
  %v100 = vpack.c.bf16 %v94, %v93
  %v101 = vpack.c.bf16 %v96, %v95
  %v102 = vpack.c.bf16 %v98, %v97
  %v103 = vld [vmem:[%s4] sm:$0x1]
  %v105 = vlaneseq
  %v106 = vshrl.u32 %v105, 7
  %v107 = vsub.s32 0, %v106
  %v108 = vrot.slane %v103, %v107
  %vm110 = vcmask 523264
  %v112 = vsel %vm110, %v90, 0
  %114 = vmatprep.subr.bf16.mxu0 0
  %115 = vmatpush1.bf16.msra.mxu0 0
  %116 = vmatprep.subr.bf16.mxu0 0
  %117 = vmatpush1.bf16.msra.mxu0 0
  %118 = vmatprep.subr.bf16.mxu0 0
  %119 = vmatpush1.bf16.msra.mxu0 0
  %120 = vmatprep.subr.bf16.mxu0 0
  %121 = vmatpush1.bf16.msra.mxu0 0
  %122 = vmatprep.subr.bf16.mxu0 0
  %123 = vmatpush1.bf16.msra.mxu0 %v102
  %124 = vmatprep.subr.bf16.mxu0 0
  %125 = vmatpush1.bf16.msra.mxu0 %v101
  %126 = vmatprep.subr.bf16.mxu0 0
  %127 = vmatpush1.bf16.msra.mxu0 %v100
  %128 = vmatprep.subr.bf16.mxu0 0
  %129 = vmatpush1.bf16.msra.mxu0 %v99
  %130 = vmatprep.subr.bf16.mxu0 0
  %131 = vmatpush2.bf16.msra.mxu0 0
  %132 = vmatprep.subr.bf16.mxu0 0
  %133 = vmatpush2.bf16.msra.mxu0 0
  %134 = vmatprep.subr.bf16.mxu0 0
  %135 = vmatpush2.bf16.msra.mxu0 0
  %136 = vmatprep.subr.bf16.mxu0 0
  %137 = vmatpush2.bf16.msra.mxu0 0
  %138 = vmatprep.subr.bf16.mxu0 0
  %139 = vmatpush2.bf16.msra.mxu0 0
  %140 = vmatprep.subr.bf16.mxu0 0
  %141 = vmatpush2.bf16.msra.mxu0 0
  %142 = vmatprep.subr.bf16.mxu0 0
  %143 = vmatpush2.bf16.msra.mxu0 0
  %144 = vmatprep.subr.bf16.mxu0 0
  %145 = vmatpush2.bf16.msra.mxu0 0
  %146 = vmatprep.mubr.bf16.mxu0 0
  %147 = vmatmul.mubr.bf16.gmra.mxu0 %v112
  %v148 = vpop.f32.mrf.mxu0
  %v149 = vadd.f32 %v108, %v148
  %v150 = vpop.f32.mrf.mxu0
  %v151 = vpop.f32.mrf.mxu0
  %v152 = vadd.f32 %v108, %v151
  %v153 = vpop.f32.mrf.mxu0
  %154 = vdwg.mxu0
  %v155 = vadd.f32 %v149, %v27
  %v156 = vadd.f32 %v152, %v28
  %v157 = vsel %vm43, %v155, 0.0
  %158 = vadd.xlane.f32.xlu0 %v157
  %v159 = vpop.xlane.xlu0 %158
  %v160 = vsel %vm43, %v156, 0.0
  %161 = vadd.xlane.f32.xlu0 %v160
  %v162 = vpop.xlane.xlu0 %161
  %v163 = vrcp.pop 32.0
  %v164 = vmul.f32 %v159, %v163
  %v165 = vmul.f32 %v162, %v163
  %v166 = vsub.f32 %v155, %v164
  %v167 = vsub.f32 %v156, %v165
  %v168 = vmul.f32 %v166, %v166
  %v169 = vmul.f32 %v167, %v167
  %v170 = vsel %vm43, %v168, 0.0
  %171 = vadd.xlane.f32.xlu0 %v170
  %v172 = vpop.xlane.xlu0 %171
  %v173 = vsel %vm43, %v169, 0.0
  %174 = vadd.xlane.f32.xlu0 %v173
  %v175 = vpop.xlane.xlu0 %174
  %v176 = vmul.f32 %v172, %v163
  %v177 = vmul.f32 %v175, %v163
  %v178 = vadd.f32 %v176, 1e-05
  %v179 = vadd.f32 %v177, 1e-05
  %v180 = vrsqrt.pop %v178
  %v181 = vrsqrt.pop %v179
  %v182 = vmul.f32 %v166, %v180
  %v183 = vmul.f32 %v167, %v181
  %v184 = vld [vmem:[%s5] sm:$0x1]
  %v186 = vlaneseq
  %v187 = vshrl.u32 %v186, 7
  %v188 = vsub.s32 0, %v187
  %v189 = vrot.slane %v184, %v188
  %v191 = vmul.f32 %v182, %v189
  %v192 = vmul.f32 %v183, %v189
  %v193 = vld [vmem:[%s6] sm:$0x1]
  %v195 = vlaneseq
  %v196 = vshrl.u32 %v195, 7
  %v197 = vsub.s32 0, %v196
  %v198 = vrot.slane %v193, %v197
  %v200 = vadd.f32 %v191, %v198
  %v201 = vadd.f32 %v192, %v198
  %202 = vst.msk [vmem:[%s7] sm:$0xff] %vm43, %v200
  %203 = vst.msk [vmem:[%s7 + $0x8] sm:$0xff] %vm43, %v201
  // Predicated region
  $region30: #{natransformer_forward.18} parent=0 // pred_check
    _
  $region31: #{natransformer_forward.18} parent=0 // pred_check_branch
    %205 = sbr.rel (0) target = $region33
  $region32: #{natransformer_forward.18} parent=0 // pred_region
    _
  $region33: #{natransformer_forward.18} parent=0 // pred_fallthru
    _
  // Predicated region
  $region34: #{natransformer_forward.18} parent=0 // pred_check
    _
  $region35: #{natransformer_forward.18} parent=0 // pred_check_branch
    %207 = sbr.rel (0) target = $region37
  $region36: #{natransformer_forward.18} parent=0 // pred_region
    _
  $region37: #{natransformer_forward.18} parent=0 // pred_fallthru
    _

// kernel: natransformer_forward.20
$region0: #{natransformer_forward.20}
  #allocation0 [shape = 'u32[]', space=smem, size = 0x4, offset = 0x4, fixed_abs, tag = 'smem constant byte address 0x4 - core index']
  #allocation1 [shape = 'u32[144,128]{1,0:T(1,128)}', space=vmem, size = 0x12000, scoped, tag = 'internal scratch']
  %s0 = inlined_call_operand.vmem [shape: f32[2,8,32], index: 0, kind: input, shape index: {}]
  %s1 = inlined_call_operand.vmem [shape: f32[2,8,8], index: 1, kind: input, shape index: {}]
  %s2 = inlined_call_operand.vmem [shape: f32[32,96], index: 2, kind: input, shape index: {}]
  %s3 = inlined_call_operand.vmem [shape: f32[1,96], index: 3, kind: input, shape index: {}]
  %s4 = inlined_call_operand.vmem [shape: f32[32,32], index: 4, kind: input, shape index: {}]
  %s5 = inlined_call_operand.vmem [shape: f32[1,32], index: 5, kind: input, shape index: {}]
  %s6 = inlined_call_operand.vmem [shape: f32[1,32], index: 6, kind: input, shape index: {}]
  %s7 = inlined_call_operand.vmem [shape: f32[1,32], index: 7, kind: input, shape index: {}]
  %s8 = inlined_call_operand.vmem [shape: f32[2,8,32], index: 8, kind: output, shape index: {}]
  %s9 = sld [smem:[#allocation0]]
  $region65: #{natransformer_forward.20} parent=0
    _
  %s11 = ssub.s32 1, %s9
  %s12 = scalar_select 0, %s11, %s9
  loop: start=0, step=1, limit=4
  $region2: #{natransformer_forward.20} parent=0 // loop_pre_header
    _
  $region3: #{natransformer_forward.20} parent=0 // loop_header
    %s14 = sphi 0, %s18
    %p15 = scmp.ge.s32.totalorder %s14, 4
    %s24 = sphi 0, %s26
    %s27 = sphi 0, %s24
    %s28 = sphi 0, %s27
    %s44 = sphi 0, %s28
    %s50 = sphi 0, %s52
    %s53 = sphi 0, %s50
    %s54 = sphi 0, %s53
    %s70 = sphi 0, %s54
    %s74 = sphi 0, %s74
    %s76 = sphi 0, %s74
    %s77 = sphi 0, %s76
    %s91 = sphi 0, %s77
    %s95 = sphi 0, %s95
    %s97 = sphi 0, %s95
    %s98 = sphi 0, %s97
    %s112 = sphi 0, %s98
    %s116 = sphi 0, %s116
    %s118 = sphi 0, %s116
    %s119 = sphi 0, %s118
    %s133 = sphi 0, %s119
    %s137 = sphi 0, %s137
    %s139 = sphi 0, %s137
    %s140 = sphi 0, %s139
    %s154 = sphi 0, %s140
    %s158 = sphi 0, %s158
    %s160 = sphi 0, %s158
    %s161 = sphi 0, %s160
    %s175 = sphi 0, %s161
    %s179 = sphi 0, %s179
    %s181 = sphi 0, %s179
    %s182 = sphi 0, %s181
    %s196 = sphi 0, %s182
    %s202 = sphi 0, %s204
    %s205 = sphi 0, %s202
    %s206 = sphi 0, %s205
    %s222 = sphi 0, %s206
  $region4: #{natransformer_forward.20} parent=0 // loop_header_branch
    %17 = sbr.rel (%p15) target = $region8
  $region5: #{natransformer_forward.20} parent=0 // loop_body
    %s19 = ssub.s32 %s14, 1
    %s20 = ssub.s32 %s14, 2
    %s21 = sadd.s32 %s14, 1
    %s22 = ssub.s32 %s14, %s21
    %p23 = scmp.eq.s32.totalorder %s22, 0
    %s25 = sadd.s32 %s24, 1
    %s26 = scalar_select %p23, %s24, %s25
    %p29 = pneg %p23
    %p30 = scmp.eq.s32.totalorder %s14, 1
    %p31 = por %p29, %p30
    %p32 = scmp.ne.s32.totalorder %s24, %s27
    %p33 = scmp.eq.s32.totalorder %s14, 0
    %p34 = por %p32, %p33
    %p35 = scmp.ne.s32.totalorder %s24, %s27
    %p36 = scmp.eq.s32.totalorder %s19, 1
    %p37 = por %p35, %p36
    %p38 = scmp.ne.s32.totalorder %s27, %s28
    %p39 = scmp.eq.s32.totalorder %s19, 0
    %p40 = por %p38, %p39
    %p41 = scmp.ne.s32.totalorder %s27, %s28
    %p42 = scmp.eq.s32.totalorder %s20, 1
    %p43 = por %p41, %p42
    %p45 = scmp.ne.s32.totalorder %s28, %s44
    %p46 = scmp.eq.s32.totalorder %s20, 0
    %p47 = por %p45, %p46
    %s48 = ssub.s32 %s14, %s21
    %p49 = scmp.eq.s32.totalorder %s48, 0
    %s51 = sadd.s32 %s50, 1
    %s52 = scalar_select %p49, %s50, %s51
    %p55 = pneg %p49
    %p56 = scmp.eq.s32.totalorder %s14, 1
    %p57 = por %p55, %p56
    %p58 = scmp.ne.s32.totalorder %s50, %s53
    %p59 = scmp.eq.s32.totalorder %s14, 0
    %p60 = por %p58, %p59
    %p61 = scmp.ne.s32.totalorder %s50, %s53
    %p62 = scmp.eq.s32.totalorder %s19, 1
    %p63 = por %p61, %p62
    %p64 = scmp.ne.s32.totalorder %s53, %s54
    %p65 = scmp.eq.s32.totalorder %s19, 0
    %p66 = por %p64, %p65
    %p67 = scmp.ne.s32.totalorder %s53, %s54
    %p68 = scmp.eq.s32.totalorder %s20, 1
    %p69 = por %p67, %p68
    %p71 = scmp.ne.s32.totalorder %s54, %s70
    %p72 = scmp.eq.s32.totalorder %s20, 0
    %p73 = por %p71, %p72
    %s75 = sadd.s32 %s74, 1
    %p78 = scmp.eq.s32.totalorder %s14, 1
    %p79 = scmp.ne.s32.totalorder %s74, %s76
    %p80 = scmp.eq.s32.totalorder %s14, 0
    %p81 = por %p79, %p80
    %p82 = scmp.ne.s32.totalorder %s74, %s76
    %p83 = scmp.eq.s32.totalorder %s19, 1
    %p84 = por %p82, %p83
    %p85 = scmp.ne.s32.totalorder %s76, %s77
    %p86 = scmp.eq.s32.totalorder %s19, 0
    %p87 = por %p85, %p86
    %p88 = scmp.ne.s32.totalorder %s76, %s77
    %p89 = scmp.eq.s32.totalorder %s20, 1
    %p90 = por %p88, %p89
    %p92 = scmp.ne.s32.totalorder %s77, %s91
    %p93 = scmp.eq.s32.totalorder %s20, 0
    %p94 = por %p92, %p93
    %s96 = sadd.s32 %s95, 1
    %p99 = scmp.eq.s32.totalorder %s14, 1
    %p100 = scmp.ne.s32.totalorder %s95, %s97
    %p101 = scmp.eq.s32.totalorder %s14, 0
    %p102 = por %p100, %p101
    %p103 = scmp.ne.s32.totalorder %s95, %s97
    %p104 = scmp.eq.s32.totalorder %s19, 1
    %p105 = por %p103, %p104
    %p106 = scmp.ne.s32.totalorder %s97, %s98
    %p107 = scmp.eq.s32.totalorder %s19, 0
    %p108 = por %p106, %p107
    %p109 = scmp.ne.s32.totalorder %s97, %s98
    %p110 = scmp.eq.s32.totalorder %s20, 1
    %p111 = por %p109, %p110
    %p113 = scmp.ne.s32.totalorder %s98, %s112
    %p114 = scmp.eq.s32.totalorder %s20, 0
    %p115 = por %p113, %p114
    %s117 = sadd.s32 %s116, 1
    %p120 = scmp.eq.s32.totalorder %s14, 1
    %p121 = scmp.ne.s32.totalorder %s116, %s118
    %p122 = scmp.eq.s32.totalorder %s14, 0
    %p123 = por %p121, %p122
    %p124 = scmp.ne.s32.totalorder %s116, %s118
    %p125 = scmp.eq.s32.totalorder %s19, 1
    %p126 = por %p124, %p125
    %p127 = scmp.ne.s32.totalorder %s118, %s119
    %p128 = scmp.eq.s32.totalorder %s19, 0
    %p129 = por %p127, %p128
    %p130 = scmp.ne.s32.totalorder %s118, %s119
    %p131 = scmp.eq.s32.totalorder %s20, 1
    %p132 = por %p130, %p131
    %p134 = scmp.ne.s32.totalorder %s119, %s133
    %p135 = scmp.eq.s32.totalorder %s20, 0
    %p136 = por %p134, %p135
    %s138 = sadd.s32 %s137, 1
    %p141 = scmp.eq.s32.totalorder %s14, 1
    %p142 = scmp.ne.s32.totalorder %s137, %s139
    %p143 = scmp.eq.s32.totalorder %s14, 0
    %p144 = por %p142, %p143
    %p145 = scmp.ne.s32.totalorder %s137, %s139
    %p146 = scmp.eq.s32.totalorder %s19, 1
    %p147 = por %p145, %p146
    %p148 = scmp.ne.s32.totalorder %s139, %s140
    %p149 = scmp.eq.s32.totalorder %s19, 0
    %p150 = por %p148, %p149
    %p151 = scmp.ne.s32.totalorder %s139, %s140
    %p152 = scmp.eq.s32.totalorder %s20, 1
    %p153 = por %p151, %p152
    %p155 = scmp.ne.s32.totalorder %s140, %s154
    %p156 = scmp.eq.s32.totalorder %s20, 0
    %p157 = por %p155, %p156
    %s159 = sadd.s32 %s158, 1
    %p162 = scmp.eq.s32.totalorder %s14, 1
    %p163 = scmp.ne.s32.totalorder %s158, %s160
    %p164 = scmp.eq.s32.totalorder %s14, 0
    %p165 = por %p163, %p164
    %p166 = scmp.ne.s32.totalorder %s158, %s160
    %p167 = scmp.eq.s32.totalorder %s19, 1
    %p168 = por %p166, %p167
    %p169 = scmp.ne.s32.totalorder %s160, %s161
    %p170 = scmp.eq.s32.totalorder %s19, 0
    %p171 = por %p169, %p170
    %p172 = scmp.ne.s32.totalorder %s160, %s161
    %p173 = scmp.eq.s32.totalorder %s20, 1
    %p174 = por %p172, %p173
    %p176 = scmp.ne.s32.totalorder %s161, %s175
    %p177 = scmp.eq.s32.totalorder %s20, 0
    %p178 = por %p176, %p177
    %s180 = sadd.s32 %s179, 1
    %p183 = scmp.eq.s32.totalorder %s14, 1
    %p184 = scmp.ne.s32.totalorder %s179, %s181
    %p185 = scmp.eq.s32.totalorder %s14, 0
    %p186 = por %p184, %p185
    %p187 = scmp.ne.s32.totalorder %s179, %s181
    %p188 = scmp.eq.s32.totalorder %s19, 1
    %p189 = por %p187, %p188
    %p190 = scmp.ne.s32.totalorder %s181, %s182
    %p191 = scmp.eq.s32.totalorder %s19, 0
    %p192 = por %p190, %p191
    %p193 = scmp.ne.s32.totalorder %s181, %s182
    %p194 = scmp.eq.s32.totalorder %s20, 1
    %p195 = por %p193, %p194
    %p197 = scmp.ne.s32.totalorder %s182, %s196
    %p198 = scmp.eq.s32.totalorder %s20, 0
    %p199 = por %p197, %p198
    %s200 = ssub.s32 %s14, %s21
    %p201 = scmp.eq.s32.totalorder %s200, 0
    %s203 = sadd.s32 %s202, 1
    %s204 = scalar_select %p201, %s202, %s203
    %p207 = pneg %p201
    %p208 = scmp.eq.s32.totalorder %s14, 1
    %p209 = por %p207, %p208
    %p210 = scmp.ne.s32.totalorder %s202, %s205
    %p211 = scmp.eq.s32.totalorder %s14, 0
    %p212 = por %p210, %p211
    %p213 = scmp.ne.s32.totalorder %s202, %s205
    %p214 = scmp.eq.s32.totalorder %s19, 1
    %p215 = por %p213, %p214
    %p216 = scmp.ne.s32.totalorder %s205, %s206
    %p217 = scmp.eq.s32.totalorder %s19, 0
    %p218 = por %p216, %p217
    %p219 = scmp.ne.s32.totalorder %s205, %s206
    %p220 = scmp.eq.s32.totalorder %s20, 1
    %p221 = por %p219, %p220
    %p223 = scmp.ne.s32.totalorder %s206, %s222
    %p224 = scmp.eq.s32.totalorder %s20, 0
    %p225 = por %p223, %p224
    %p226 = scmp.le.s32.totalorder 1, %s14
    %p227 = scmp.lt.s32.totalorder %s14, 3
    %p228 = pnand %p226, %p227
    %p229 = pneg %p228
    // Predicated region
    $region9: #{natransformer_forward.20} parent=5 // pred_check
      _
    $region10: #{natransformer_forward.20} parent=5 // pred_check_branch
      %231 = sbr.rel (%p228) target = $region12
    $region11: #{natransformer_forward.20} parent=5 // pred_region
      %s232 = ssub.s32 %s14, 1
      // Predicated region
      $region13: #{natransformer_forward.20} parent=11 // pred_check
        %p233 = pneg %p87
      $region14: #{natransformer_forward.20} parent=11 // pred_check_branch
        %235 = sbr.rel (%p233) target = $region16
      $region15: #{natransformer_forward.20} parent=11 // pred_region
        _
      $region16: #{natransformer_forward.20} parent=11 // pred_fallthru
        _
      // Predicated region
      $region17: #{natransformer_forward.20} parent=11 // pred_check
        %p236 = pneg %p108
      $region18: #{natransformer_forward.20} parent=11 // pred_check_branch
        %238 = sbr.rel (%p236) target = $region20
      $region19: #{natransformer_forward.20} parent=11 // pred_region
        _
      $region20: #{natransformer_forward.20} parent=11 // pred_fallthru
        _
      // Predicated region
      $region21: #{natransformer_forward.20} parent=11 // pred_check
        %p239 = pneg %p129
      $region22: #{natransformer_forward.20} parent=11 // pred_check_branch
        %241 = sbr.rel (%p239) target = $region24
      $region23: #{natransformer_forward.20} parent=11 // pred_region
        _
      $region24: #{natransformer_forward.20} parent=11 // pred_fallthru
        _
      // Predicated region
      $region25: #{natransformer_forward.20} parent=11 // pred_check
        %p242 = pneg %p150
      $region26: #{natransformer_forward.20} parent=11 // pred_check_branch
        %244 = sbr.rel (%p242) target = $region28
      $region27: #{natransformer_forward.20} parent=11 // pred_region
        _
      $region28: #{natransformer_forward.20} parent=11 // pred_fallthru
        _
      // Predicated region
      $region29: #{natransformer_forward.20} parent=11 // pred_check
        %p245 = pneg %p171
      $region30: #{natransformer_forward.20} parent=11 // pred_check_branch
        %247 = sbr.rel (%p245) target = $region32
      $region31: #{natransformer_forward.20} parent=11 // pred_region
        _
      $region32: #{natransformer_forward.20} parent=11 // pred_fallthru
        _
      // Predicated region
      $region33: #{natransformer_forward.20} parent=11 // pred_check
        %p248 = pneg %p192
      $region34: #{natransformer_forward.20} parent=11 // pred_check_branch
        %250 = sbr.rel (%p248) target = $region36
      $region35: #{natransformer_forward.20} parent=11 // pred_region
        _
      $region36: #{natransformer_forward.20} parent=11 // pred_fallthru
        _
    $region12: #{natransformer_forward.20} parent=5 // pred_fallthru
      _
    %p251 = scmp.lt.s32.totalorder %s14, 2
    // Predicated region
    $region37: #{natransformer_forward.20} parent=5 // pred_check
      %p252 = pneg %p251
    $region38: #{natransformer_forward.20} parent=5 // pred_check_branch
      %254 = sbr.rel (%p252) target = $region40
    $region39: #{natransformer_forward.20} parent=5 // pred_region
      // Predicated region
      $region41: #{natransformer_forward.20} parent=39 // pred_check
        %p255 = pneg %p34
      $region42: #{natransformer_forward.20} parent=39 // pred_check_branch
        %257 = sbr.rel (%p255) target = $region44
      $region43: #{natransformer_forward.20} parent=39 // pred_region
        %p258 = scmp.lt.s32.totalorder %s14, 1
        %s259 = scalar_select %p258, %s14, 1
        %s260 = smul.addr %s259, 8
        %s261 = scalar_lea.vmem %s0, %s260
      $region44: #{natransformer_forward.20} parent=39 // pred_fallthru
        _
      // Predicated region
      $region45: #{natransformer_forward.20} parent=39 // pred_check
        %p262 = pneg %p60
      $region46: #{natransformer_forward.20} parent=39 // pred_check_branch
        %264 = sbr.rel (%p262) target = $region48
      $region47: #{natransformer_forward.20} parent=39 // pred_region
        %p265 = scmp.lt.s32.totalorder %s14, 1
        %s266 = scalar_select %p265, %s14, 1
        %s267 = smul.addr %s266, 8
        %s268 = scalar_lea.vmem %s1, %s267
      $region48: #{natransformer_forward.20} parent=39 // pred_fallthru
        _
    $region40: #{natransformer_forward.20} parent=5 // pred_fallthru
      _
    %p269 = scmp.le.s32.totalorder 1, %s14
    %p270 = scmp.lt.s32.totalorder %s14, 3
    %p271 = pnand %p269, %p270
    %p272 = pneg %p271
    // Predicated region
    $region49: #{natransformer_forward.20} parent=5 // pred_check
      _
    $region50: #{natransformer_forward.20} parent=5 // pred_check_branch
      %274 = sbr.rel (%p271) target = $region52
    $region51: #{natransformer_forward.20} parent=5 // pred_region
      %s275 = ssub.s32 %s14, 1
      %p276 = scmp.lt.s32.totalorder %s19, 1
      %s277 = scalar_select %p276, %s19, 1
      %s278 = smul.addr %s277, 8
      %s279 = scalar_lea.vmem %s0, %s278
      %p280 = pneg %p40
      %p281 = pneg %p37
      %p282 = scmp.lt.s32.totalorder %s19, 1
      %s283 = scalar_select %p282, %s19, 1
      %s284 = smul.addr %s283, 8
      %s285 = scalar_lea.vmem %s1, %s284
      %p286 = pneg %p66
      %p287 = pneg %p63
      %p288 = pneg %p87
      %p289 = pneg %p84
      %p290 = pneg %p108
      %p291 = pneg %p105
      %p292 = pneg %p129
      %p293 = pneg %p126
      %p294 = pneg %p150
      %p295 = pneg %p147
      %p296 = pneg %p171
      %p297 = pneg %p168
      %p298 = pneg %p192
      %p299 = pneg %p189
      %p300 = pneg %p218
      %p301 = pneg %p215
      %p302 = scmp.lt.s32.totalorder %s19, 1
      %s303 = scalar_select %p302, %s19, 1
      %s304 = smul.addr %s303, 8
      %s305 = scalar_lea.vmem %s8, %s304
      %p306 = scmp.lt.s32.totalorder %s19, 1
      %s307 = scalar_select %p306, %s19, 1
      %s308 = smul.addr %s307, 8
      %s309 = scalar_lea.vmem %s0, %s308
      %p310 = scmp.lt.s32.totalorder %s19, 1
      %s311 = scalar_select %p310, %s19, 1
      %s312 = smul.addr %s311, 8
      %s313 = scalar_lea.vmem %s1, %s312
      %p314 = scmp.lt.s32.totalorder %s19, 1
      %s315 = scalar_select %p314, %s19, 1
      %s316 = smul.addr %s315, 8
      %s317 = scalar_lea.vmem %s8, %s316
      %v319 = vld [vmem:[%s309] sm:$0xff]
      %v320 = vpack.c.bf16 %v319, %v319
      %v321 = vld [vmem:[%s2] sm:$0xff]
      %v322 = vld [vmem:[%s2 + $0x8] sm:$0xff]
      %v323 = vld [vmem:[%s2 + $0x10] sm:$0xff]
      %v324 = vld [vmem:[%s2 + $0x18] sm:$0xff]
      %v325 = vpack.c.bf16 %v322, %v321
      %v326 = vpack.c.bf16 %v324, %v323
      %v327 = vld [vmem:[%s3] sm:$0x1]
      %v329 = vlaneseq
      %v330 = vshrl.u32 %v329, 7
      %v331 = vsub.s32 0, %v330
      %v332 = vrot.slane %v327, %v331
      %vm334 = vcmask 261120
      %v336 = vsel %vm334, %v320, 0
      %338 = vmatprep.subr.bf16.mxu0 0
      %339 = vmatpush1.bf16.msra.mxu0 0
      %340 = vmatprep.subr.bf16.mxu0 0
      %341 = vmatpush1.bf16.msra.mxu0 0
      %342 = vmatprep.subr.bf16.mxu0 0
      %343 = vmatpush1.bf16.msra.mxu0 0
      %344 = vmatprep.subr.bf16.mxu0 0
      %345 = vmatpush1.bf16.msra.mxu0 0
      %346 = vmatprep.subr.bf16.mxu0 0
      %347 = vmatpush1.bf16.msra.mxu0 0
      %348 = vmatprep.subr.bf16.mxu0 0
      %349 = vmatpush1.bf16.msra.mxu0 0
      %350 = vmatprep.subr.bf16.mxu0 0
      %351 = vmatpush1.bf16.msra.mxu0 %v326
      %352 = vmatprep.subr.bf16.mxu0 0
      %353 = vmatpush1.bf16.msra.mxu0 %v325
      %354 = vmatprep.subr.bf16.mxu0 0
      %355 = vmatpush2.bf16.msra.mxu0 0
      %356 = vmatprep.subr.bf16.mxu0 0
      %357 = vmatpush2.bf16.msra.mxu0 0
      %358 = vmatprep.subr.bf16.mxu0 0
      %359 = vmatpush2.bf16.msra.mxu0 0
      %360 = vmatprep.subr.bf16.mxu0 0
      %361 = vmatpush2.bf16.msra.mxu0 0
      %362 = vmatprep.subr.bf16.mxu0 0
      %363 = vmatpush2.bf16.msra.mxu0 0
      %364 = vmatprep.subr.bf16.mxu0 0
      %365 = vmatpush2.bf16.msra.mxu0 0
      %366 = vmatprep.subr.bf16.mxu0 0
      %367 = vmatpush2.bf16.msra.mxu0 0
      %368 = vmatprep.subr.bf16.mxu0 0
      %369 = vmatpush2.bf16.msra.mxu0 0
      %370 = vmatprep.mubr.bf16.mxu0 0
      %371 = vmatmul.mubr.bf16.gmra.mxu0 %v336
      %v372 = vpop.f32.mrf.mxu0
      %v373 = vadd.f32 %v332, %v372
      %v374 = vpop.f32.mrf.mxu0
      %v375 = vpop.f32.mrf.mxu0
      %v376 = vpop.f32.mrf.mxu0
      %377 = vdwg.mxu0
      %v378 = vld [vmem:[%s313] sm:$0xff]
      %v379 = vmul.f32 %v373, 0.35355338
      %v380 = vpack.c.bf16 %v379, %v379
      %v381 = vpack.c.bf16 %v373, %v373
      %383 = vrot.lane.b32.xlu0 %v381, 96
      %v384 = vpop.permute.xlu0 %383
      %vm385 = vcmask 64512
      %v387 = vsel %vm385, %v380, 0
      %v390 = vsel %vm385, %v384, 0
      %392 = vmatprep.subr.bf16.mxu0 0
      %393 = vmatpush1.bf16.xpose.msra.mxu0 0
      %394 = vmatprep.subr.bf16.mxu0 0
      %395 = vmatpush1.bf16.xpose.msra.mxu0 0
      %396 = vmatprep.subr.bf16.mxu0 0
      %397 = vmatpush1.bf16.xpose.msra.mxu0 0
      %398 = vmatprep.subr.bf16.mxu0 0
      %399 = vmatpush1.bf16.xpose.msra.mxu0 0
      %400 = vmatprep.subr.bf16.mxu0 0
      %401 = vmatpush1.bf16.xpose.msra.mxu0 0
      %402 = vmatprep.subr.bf16.mxu0 0
      %403 = vmatpush1.bf16.xpose.msra.mxu0 0
      %404 = vmatprep.subr.bf16.mxu0 0
      %405 = vmatpush1.bf16.xpose.msra.mxu0 0
      %406 = vmatprep.subr.bf16.mxu0 0
      %407 = vmatpush1.bf16.xpose.msra.mxu0 %v390
      %408 = vmatprep.subr.bf16.mxu0 0
      %409 = vmatpush2.bf16.xpose.msra.mxu0 0
      %410 = vmatprep.subr.bf16.mxu0 0
      %411 = vmatpush2.bf16.xpose.msra.mxu0 0
      %412 = vmatprep.subr.bf16.mxu0 0
      %413 = vmatpush2.bf16.xpose.msra.mxu0 0
      %414 = vmatprep.subr.bf16.mxu0 0
      %415 = vmatpush2.bf16.xpose.msra.mxu0 0
      %416 = vmatprep.subr.bf16.mxu0 0
      %417 = vmatpush2.bf16.xpose.msra.mxu0 0
      %418 = vmatprep.subr.bf16.mxu0 0
      %419 = vmatpush2.bf16.xpose.msra.mxu0 0
      %420 = vmatprep.subr.bf16.mxu0 0
      %421 = vmatpush2.bf16.xpose.msra.mxu0 0
      %422 = vmatprep.subr.bf16.mxu0 0
      %423 = vmatpush2.bf16.xpose.msra.mxu0 0
      %424 = vmatprep.mubr.bf16.mxu0 0
      %425 = vmatmul.mubr.bf16.gmra.mxu0 %v387
      %v426 = vpop.f32.mrf.mxu0
      %v427 = vadd.f32 %v378, %v426
      %v428 = vpop.f32.mrf.mxu0
      %v429 = vpop.f32.mrf.mxu0
      %v430 = vpop.f32.mrf.mxu0
      %431 = vdwg.mxu0
      %v432 = vsel %vm385, %v427, -inf
      %433 = vmax.xlane.f32.xlu0 %v432
      %v434 = vpop.xlane.xlu0 %433
      %v435 = vsub.f32 %v427, %v434
      %v436 = vmul.f32 %v435, 1.442695
      %v437 = vpow.pop %v436
      %v438 = vsel %vm385, %v437, 0.0
      %439 = vadd.xlane.f32.xlu0 %v438
      %v440 = vpop.xlane.xlu0 %439
      %v441 = vrcp.pop %v440
      %v442 = vmul.f32 %v437, %v441
      %v443 = vpack.c.bf16 %v442, %v442
      %444 = vrot.lane.b32.xlu0 %v381, 64
      %v445 = vpop.permute.xlu0 %444
      %v447 = vsel %vm385, %v443, 0
      %vm449 = vcmask 1043456
      %v451 = vsel %vm449, %v445, 0
      %453 = vmatprep.subr.bf16.mxu0 0
      %454 = vmatpush1.bf16.msra.mxu0 0
      %455 = vmatprep.subr.bf16.mxu0 0
      %456 = vmatpush1.bf16.msra.mxu0 0
      %457 = vmatprep.subr.bf16.mxu0 0
      %458 = vmatpush1.bf16.msra.mxu0 0
      %459 = vmatprep.subr.bf16.mxu0 0
      %460 = vmatpush1.bf16.msra.mxu0 0
      %461 = vmatprep.subr.bf16.mxu0 0
      %462 = vmatpush1.bf16.msra.mxu0 0
      %463 = vmatprep.subr.bf16.mxu0 0
      %464 = vmatpush1.bf16.msra.mxu0 0
      %465 = vmatprep.subr.bf16.mxu0 0
      %466 = vmatpush1.bf16.msra.mxu0 0
      %467 = vmatprep.subr.bf16.mxu0 0
      %468 = vmatpush1.bf16.msra.mxu0 %v451
      %469 = vmatprep.subr.bf16.mxu0 0
      %470 = vmatpush2.bf16.msra.mxu0 0
      %471 = vmatprep.subr.bf16.mxu0 0
      %472 = vmatpush2.bf16.msra.mxu0 0
      %473 = vmatprep.subr.bf16.mxu0 0
      %474 = vmatpush2.bf16.msra.mxu0 0
      %475 = vmatprep.subr.bf16.mxu0 0
      %476 = vmatpush2.bf16.msra.mxu0 0
      %477 = vmatprep.subr.bf16.mxu0 0
      %478 = vmatpush2.bf16.msra.mxu0 0
      %479 = vmatprep.subr.bf16.mxu0 0
      %480 = vmatpush2.bf16.msra.mxu0 0
      %481 = vmatprep.subr.bf16.mxu0 0
      %482 = vmatpush2.bf16.msra.mxu0 0
      %483 = vmatprep.subr.bf16.mxu0 0
      %484 = vmatpush2.bf16.msra.mxu0 0
      %485 = vmatprep.mubr.bf16.mxu0 0
      %486 = vmatmul.mubr.bf16.gmra.mxu0 %v447
      %v487 = vpop.f32.mrf.mxu0
      %v488 = vadd.f32 0.0, %v487
      %v489 = vpop.f32.mrf.mxu0
      %v490 = vpop.f32.mrf.mxu0
      %v491 = vpop.f32.mrf.mxu0
      %492 = vdwg.mxu0
      %494 = vrot.lane.b32.xlu0 %v380, 120
      %v495 = vpop.permute.xlu0 %494
      %496 = vrot.lane.b32.xlu0 %v381, 88
      %v497 = vpop.permute.xlu0 %496
      %v499 = vsel %vm385, %v495, 0
      %v502 = vsel %vm385, %v497, 0
      %504 = vmatprep.subr.bf16.mxu0 0
      %505 = vmatpush1.bf16.xpose.msra.mxu0 0
      %506 = vmatprep.subr.bf16.mxu0 0
      %507 = vmatpush1.bf16.xpose.msra.mxu0 0
      %508 = vmatprep.subr.bf16.mxu0 0
      %509 = vmatpush1.bf16.xpose.msra.mxu0 0
      %510 = vmatprep.subr.bf16.mxu0 0
      %511 = vmatpush1.bf16.xpose.msra.mxu0 0
      %512 = vmatprep.subr.bf16.mxu0 0
      %513 = vmatpush1.bf16.xpose.msra.mxu0 0
      %514 = vmatprep.subr.bf16.mxu0 0
      %515 = vmatpush1.bf16.xpose.msra.mxu0 0
      %516 = vmatprep.subr.bf16.mxu0 0
      %517 = vmatpush1.bf16.xpose.msra.mxu0 0
      %518 = vmatprep.subr.bf16.mxu0 0
      %519 = vmatpush1.bf16.xpose.msra.mxu0 %v502
      %520 = vmatprep.subr.bf16.mxu0 0
      %521 = vmatpush2.bf16.xpose.msra.mxu0 0
      %522 = vmatprep.subr.bf16.mxu0 0
      %523 = vmatpush2.bf16.xpose.msra.mxu0 0
      %524 = vmatprep.subr.bf16.mxu0 0
      %525 = vmatpush2.bf16.xpose.msra.mxu0 0
      %526 = vmatprep.subr.bf16.mxu0 0
      %527 = vmatpush2.bf16.xpose.msra.mxu0 0
      %528 = vmatprep.subr.bf16.mxu0 0
      %529 = vmatpush2.bf16.xpose.msra.mxu0 0
      %530 = vmatprep.subr.bf16.mxu0 0
      %531 = vmatpush2.bf16.xpose.msra.mxu0 0
      %532 = vmatprep.subr.bf16.mxu0 0
      %533 = vmatpush2.bf16.xpose.msra.mxu0 0
      %534 = vmatprep.subr.bf16.mxu0 0
      %535 = vmatpush2.bf16.xpose.msra.mxu0 0
      %536 = vmatprep.mubr.bf16.mxu0 0
      %537 = vmatmul.mubr.bf16.gmra.mxu0 %v499
      %v538 = vpop.f32.mrf.mxu0
      %v539 = vadd.f32 %v378, %v538
      %v540 = vpop.f32.mrf.mxu0
      %v541 = vpop.f32.mrf.mxu0
      %v542 = vpop.f32.mrf.mxu0
      %543 = vdwg.mxu0
      %v544 = vsel %vm385, %v539, -inf
      %545 = vmax.xlane.f32.xlu0 %v544
      %v546 = vpop.xlane.xlu0 %545
      %v547 = vsub.f32 %v539, %v546
      %v548 = vmul.f32 %v547, 1.442695
      %v549 = vpow.pop %v548
      %v550 = vsel %vm385, %v549, 0.0
      %551 = vadd.xlane.f32.xlu0 %v550
      %v552 = vpop.xlane.xlu0 %551
      %v553 = vrcp.pop %v552
      %v554 = vmul.f32 %v549, %v553
      %v555 = vpack.c.bf16 %v554, %v554
      %556 = vrot.lane.b32.xlu0 %v381, 56
      %v557 = vpop.permute.xlu0 %556
      %v559 = vsel %vm385, %v555, 0
      %v562 = vsel %vm449, %v557, 0
      %564 = vmatprep.subr.bf16.mxu0 0
      %565 = vmatpush1.bf16.msra.mxu0 0
      %566 = vmatprep.subr.bf16.mxu0 0
      %567 = vmatpush1.bf16.msra.mxu0 0
      %568 = vmatprep.subr.bf16.mxu0 0
      %569 = vmatpush1.bf16.msra.mxu0 0
      %570 = vmatprep.subr.bf16.mxu0 0
      %571 = vmatpush1.bf16.msra.mxu0 0
      %572 = vmatprep.subr.bf16.mxu0 0
      %573 = vmatpush1.bf16.msra.mxu0 0
      %574 = vmatprep.subr.bf16.mxu0 0
      %575 = vmatpush1.bf16.msra.mxu0 0
      %576 = vmatprep.subr.bf16.mxu0 0
      %577 = vmatpush1.bf16.msra.mxu0 0
      %578 = vmatprep.subr.bf16.mxu0 0
      %579 = vmatpush1.bf16.msra.mxu0 %v562
      %580 = vmatprep.subr.bf16.mxu0 0
      %581 = vmatpush2.bf16.msra.mxu0 0
      %582 = vmatprep.subr.bf16.mxu0 0
      %583 = vmatpush2.bf16.msra.mxu0 0
      %584 = vmatprep.subr.bf16.mxu0 0
      %585 = vmatpush2.bf16.msra.mxu0 0
      %586 = vmatprep.subr.bf16.mxu0 0
      %587 = vmatpush2.bf16.msra.mxu0 0
      %588 = vmatprep.subr.bf16.mxu0 0
      %589 = vmatpush2.bf16.msra.mxu0 0
      %590 = vmatprep.subr.bf16.mxu0 0
      %591 = vmatpush2.bf16.msra.mxu0 0
      %592 = vmatprep.subr.bf16.mxu0 0
      %593 = vmatpush2.bf16.msra.mxu0 0
      %594 = vmatprep.subr.bf16.mxu0 0
      %595 = vmatpush2.bf16.msra.mxu0 0
      %596 = vmatprep.mubr.bf16.mxu0 0
      %597 = vmatmul.mubr.bf16.gmra.mxu0 %v559
      %v598 = vpop.f32.mrf.mxu0
      %v599 = vadd.f32 0.0, %v598
      %v600 = vpop.f32.mrf.mxu0
      %v601 = vpop.f32.mrf.mxu0
      %v602 = vpop.f32.mrf.mxu0
      %603 = vdwg.mxu0
      %604 = vrot.lane.b32.xlu0 %v380, 112
      %v605 = vpop.permute.xlu0 %604
      %606 = vrot.lane.b32.xlu0 %v381, 80
      %v607 = vpop.permute.xlu0 %606
      %v609 = vsel %vm385, %v605, 0
      %v612 = vsel %vm385, %v607, 0
      %614 = vmatprep.subr.bf16.mxu0 0
      %615 = vmatpush1.bf16.xpose.msra.mxu0 0
      %616 = vmatprep.subr.bf16.mxu0 0
      %617 = vmatpush1.bf16.xpose.msra.mxu0 0
      %618 = vmatprep.subr.bf16.mxu0 0
      %619 = vmatpush1.bf16.xpose.msra.mxu0 0
      %620 = vmatprep.subr.bf16.mxu0 0
      %621 = vmatpush1.bf16.xpose.msra.mxu0 0
      %622 = vmatprep.subr.bf16.mxu0 0
      %623 = vmatpush1.bf16.xpose.msra.mxu0 0
      %624 = vmatprep.subr.bf16.mxu0 0
      %625 = vmatpush1.bf16.xpose.msra.mxu0 0
      %626 = vmatprep.subr.bf16.mxu0 0
      %627 = vmatpush1.bf16.xpose.msra.mxu0 0
      %628 = vmatprep.subr.bf16.mxu0 0
      %629 = vmatpush1.bf16.xpose.msra.mxu0 %v612
      %630 = vmatprep.subr.bf16.mxu0 0
      %631 = vmatpush2.bf16.xpose.msra.mxu0 0
      %632 = vmatprep.subr.bf16.mxu0 0
      %633 = vmatpush2.bf16.xpose.msra.mxu0 0
      %634 = vmatprep.subr.bf16.mxu0 0
      %635 = vmatpush2.bf16.xpose.msra.mxu0 0
      %636 = vmatprep.subr.bf16.mxu0 0
      %637 = vmatpush2.bf16.xpose.msra.mxu0 0
      %638 = vmatprep.subr.bf16.mxu0 0
      %639 = vmatpush2.bf16.xpose.msra.mxu0 0
      %640 = vmatprep.subr.bf16.mxu0 0
      %641 = vmatpush2.bf16.xpose.msra.mxu0 0
      %642 = vmatprep.subr.bf16.mxu0 0
      %643 = vmatpush2.bf16.xpose.msra.mxu0 0
      %644 = vmatprep.subr.bf16.mxu0 0
      %645 = vmatpush2.bf16.xpose.msra.mxu0 0
      %646 = vmatprep.mubr.bf16.mxu0 0
      %647 = vmatmul.mubr.bf16.gmra.mxu0 %v609
      %v648 = vpop.f32.mrf.mxu0
      %v649 = vadd.f32 %v378, %v648
      %v650 = vpop.f32.mrf.mxu0
      %v651 = vpop.f32.mrf.mxu0
      %v652 = vpop.f32.mrf.mxu0
      %653 = vdwg.mxu0
      %v654 = vsel %vm385, %v649, -inf
      %655 = vmax.xlane.f32.xlu0 %v654
      %v656 = vpop.xlane.xlu0 %655
      %v657 = vsub.f32 %v649, %v656
      %v658 = vmul.f32 %v657, 1.442695
      %v659 = vpow.pop %v658
      %v660 = vsel %vm385, %v659, 0.0
      %661 = vadd.xlane.f32.xlu0 %v660
      %v662 = vpop.xlane.xlu0 %661
      %v663 = vrcp.pop %v662
      %v664 = vmul.f32 %v659, %v663
      %v665 = vpack.c.bf16 %v664, %v664
      %666 = vrot.lane.b32.xlu0 %v381, 48
      %v667 = vpop.permute.xlu0 %666
      %v669 = vsel %vm385, %v665, 0
      %v672 = vsel %vm449, %v667, 0
      %674 = vmatprep.subr.bf16.mxu0 0
      %675 = vmatpush1.bf16.msra.mxu0 0
      %676 = vmatprep.subr.bf16.mxu0 0
      %677 = vmatpush1.bf16.msra.mxu0 0
      %678 = vmatprep.subr.bf16.mxu0 0
      %679 = vmatpush1.bf16.msra.mxu0 0
      %680 = vmatprep.subr.bf16.mxu0 0
      %681 = vmatpush1.bf16.msra.mxu0 0
      %682 = vmatprep.subr.bf16.mxu0 0
      %683 = vmatpush1.bf16.msra.mxu0 0
      %684 = vmatprep.subr.bf16.mxu0 0
      %685 = vmatpush1.bf16.msra.mxu0 0
      %686 = vmatprep.subr.bf16.mxu0 0
      %687 = vmatpush1.bf16.msra.mxu0 0
      %688 = vmatprep.subr.bf16.mxu0 0
      %689 = vmatpush1.bf16.msra.mxu0 %v672
      %690 = vmatprep.subr.bf16.mxu0 0
      %691 = vmatpush2.bf16.msra.mxu0 0
      %692 = vmatprep.subr.bf16.mxu0 0
      %693 = vmatpush2.bf16.msra.mxu0 0
      %694 = vmatprep.subr.bf16.mxu0 0
      %695 = vmatpush2.bf16.msra.mxu0 0
      %696 = vmatprep.subr.bf16.mxu0 0
      %697 = vmatpush2.bf16.msra.mxu0 0
      %698 = vmatprep.subr.bf16.mxu0 0
      %699 = vmatpush2.bf16.msra.mxu0 0
      %700 = vmatprep.subr.bf16.mxu0 0
      %701 = vmatpush2.bf16.msra.mxu0 0
      %702 = vmatprep.subr.bf16.mxu0 0
      %703 = vmatpush2.bf16.msra.mxu0 0
      %704 = vmatprep.subr.bf16.mxu0 0
      %705 = vmatpush2.bf16.msra.mxu0 0
      %706 = vmatprep.mubr.bf16.mxu0 0
      %707 = vmatmul.mubr.bf16.gmra.mxu0 %v669
      %v708 = vpop.f32.mrf.mxu0
      %v709 = vadd.f32 0.0, %v708
      %v710 = vpop.f32.mrf.mxu0
      %v711 = vpop.f32.mrf.mxu0
      %v712 = vpop.f32.mrf.mxu0
      %713 = vdwg.mxu0
      %714 = vrot.lane.b32.xlu0 %v380, 104
      %v715 = vpop.permute.xlu0 %714
      %716 = vrot.lane.b32.xlu0 %v381, 72
      %v717 = vpop.permute.xlu0 %716
      %v719 = vsel %vm385, %v715, 0
      %v722 = vsel %vm385, %v717, 0
      %724 = vmatprep.subr.bf16.mxu0 0
      %725 = vmatpush1.bf16.xpose.msra.mxu0 0
      %726 = vmatprep.subr.bf16.mxu0 0
      %727 = vmatpush1.bf16.xpose.msra.mxu0 0
      %728 = vmatprep.subr.bf16.mxu0 0
      %729 = vmatpush1.bf16.xpose.msra.mxu0 0
      %730 = vmatprep.subr.bf16.mxu0 0
      %731 = vmatpush1.bf16.xpose.msra.mxu0 0
      %732 = vmatprep.subr.bf16.mxu0 0
      %733 = vmatpush1.bf16.xpose.msra.mxu0 0
      %734 = vmatprep.subr.bf16.mxu0 0
      %735 = vmatpush1.bf16.xpose.msra.mxu0 0
      %736 = vmatprep.subr.bf16.mxu0 0
      %737 = vmatpush1.bf16.xpose.msra.mxu0 0
      %738 = vmatprep.subr.bf16.mxu0 0
      %739 = vmatpush1.bf16.xpose.msra.mxu0 %v722
      %740 = vmatprep.subr.bf16.mxu0 0
      %741 = vmatpush2.bf16.xpose.msra.mxu0 0
      %742 = vmatprep.subr.bf16.mxu0 0
      %743 = vmatpush2.bf16.xpose.msra.mxu0 0
      %744 = vmatprep.subr.bf16.mxu0 0
      %745 = vmatpush2.bf16.xpose.msra.mxu0 0
      %746 = vmatprep.subr.bf16.mxu0 0
      %747 = vmatpush2.bf16.xpose.msra.mxu0 0
      %748 = vmatprep.subr.bf16.mxu0 0
      %749 = vmatpush2.bf16.xpose.msra.mxu0 0
      %750 = vmatprep.subr.bf16.mxu0 0
      %751 = vmatpush2.bf16.xpose.msra.mxu0 0
      %752 = vmatprep.subr.bf16.mxu0 0
      %753 = vmatpush2.bf16.xpose.msra.mxu0 0
      %754 = vmatprep.subr.bf16.mxu0 0
      %755 = vmatpush2.bf16.xpose.msra.mxu0 0
      %756 = vmatprep.mubr.bf16.mxu0 0
      %757 = vmatmul.mubr.bf16.gmra.mxu0 %v719
      %v758 = vpop.f32.mrf.mxu0
      %v759 = vadd.f32 %v378, %v758
      %v760 = vpop.f32.mrf.mxu0
      %v761 = vpop.f32.mrf.mxu0
      %v762 = vpop.f32.mrf.mxu0
      %763 = vdwg.mxu0
      %v764 = vsel %vm385, %v759, -inf
      %765 = vmax.xlane.f32.xlu0 %v764
      %v766 = vpop.xlane.xlu0 %765
      %v767 = vsub.f32 %v759, %v766
      %v768 = vmul.f32 %v767, 1.442695
      %v769 = vpow.pop %v768
      %v770 = vsel %vm385, %v769, 0.0
      %771 = vadd.xlane.f32.xlu0 %v770
      %v772 = vpop.xlane.xlu0 %771
      %v773 = vrcp.pop %v772
      %v774 = vmul.f32 %v769, %v773
      %v775 = vpack.c.bf16 %v774, %v774
      %776 = vrot.lane.b32.xlu0 %v381, 40
      %v777 = vpop.permute.xlu0 %776
      %v779 = vsel %vm385, %v775, 0
      %v782 = vsel %vm449, %v777, 0
      %784 = vmatprep.subr.bf16.mxu0 0
      %785 = vmatpush1.bf16.msra.mxu0 0
      %786 = vmatprep.subr.bf16.mxu0 0
      %787 = vmatpush1.bf16.msra.mxu0 0
      %788 = vmatprep.subr.bf16.mxu0 0
      %789 = vmatpush1.bf16.msra.mxu0 0
      %790 = vmatprep.subr.bf16.mxu0 0
      %791 = vmatpush1.bf16.msra.mxu0 0
      %792 = vmatprep.subr.bf16.mxu0 0
      %793 = vmatpush1.bf16.msra.mxu0 0
      %794 = vmatprep.subr.bf16.mxu0 0
      %795 = vmatpush1.bf16.msra.mxu0 0
      %796 = vmatprep.subr.bf16.mxu0 0
      %797 = vmatpush1.bf16.msra.mxu0 0
      %798 = vmatprep.subr.bf16.mxu0 0
      %799 = vmatpush1.bf16.msra.mxu0 %v782
      %800 = vmatprep.subr.bf16.mxu0 0
      %801 = vmatpush2.bf16.msra.mxu0 0
      %802 = vmatprep.subr.bf16.mxu0 0
      %803 = vmatpush2.bf16.msra.mxu0 0
      %804 = vmatprep.subr.bf16.mxu0 0
      %805 = vmatpush2.bf16.msra.mxu0 0
      %806 = vmatprep.subr.bf16.mxu0 0
      %807 = vmatpush2.bf16.msra.mxu0 0
      %808 = vmatprep.subr.bf16.mxu0 0
      %809 = vmatpush2.bf16.msra.mxu0 0
      %810 = vmatprep.subr.bf16.mxu0 0
      %811 = vmatpush2.bf16.msra.mxu0 0
      %812 = vmatprep.subr.bf16.mxu0 0
      %813 = vmatpush2.bf16.msra.mxu0 0
      %814 = vmatprep.subr.bf16.mxu0 0
      %815 = vmatpush2.bf16.msra.mxu0 0
      %816 = vmatprep.mubr.bf16.mxu0 0
      %817 = vmatmul.mubr.bf16.gmra.mxu0 %v779
      %v818 = vpop.f32.mrf.mxu0
      %v819 = vadd.f32 0.0, %v818
      %v820 = vpop.f32.mrf.mxu0
      %v821 = vpop.f32.mrf.mxu0
      %v822 = vpop.f32.mrf.mxu0
      %823 = vdwg.mxu0
      %825 = vrot.lane.b32.xlu0 %v599, 8
      %v826 = vpop.permute.xlu0 %825
      %829 = vrot.lane.b32.xlu0 %v709, 16
      %v830 = vpop.permute.xlu0 %829
      %833 = vrot.lane.b32.xlu0 %v819, 24
      %v834 = vpop.permute.xlu0 %833
      %v836 = vsel %vm385, %v488, %v826
      %vm837 = vcmask 130048
      %v838 = vsel %vm837, %v836, %v830
      %vm839 = vcmask 195584
      %v840 = vsel %vm839, %v838, %v834
      %v841 = vpack.c.bf16 %v840, %v840
      %v842 = vld [vmem:[%s4] sm:$0xff]
      %v843 = vld [vmem:[%s4 + $0x8] sm:$0xff]
      %v844 = vld [vmem:[%s4 + $0x10] sm:$0xff]
      %v845 = vld [vmem:[%s4 + $0x18] sm:$0xff]
      %v846 = vpack.c.bf16 %v843, %v842
      %v847 = vpack.c.bf16 %v845, %v844
      %v848 = vld [vmem:[%s5] sm:$0x1]
      %v850 = vlaneseq
      %v851 = vshrl.u32 %v850, 7
      %v852 = vsub.s32 0, %v851
      %v853 = vrot.slane %v848, %v852
      %v856 = vsel %vm334, %v841, 0
      %858 = vmatprep.subr.bf16.mxu0 0
      %859 = vmatpush1.bf16.msra.mxu0 0
      %860 = vmatprep.subr.bf16.mxu0 0
      %861 = vmatpush1.bf16.msra.mxu0 0
      %862 = vmatprep.subr.bf16.mxu0 0
      %863 = vmatpush1.bf16.msra.mxu0 0
      %864 = vmatprep.subr.bf16.mxu0 0
      %865 = vmatpush1.bf16.msra.mxu0 0
      %866 = vmatprep.subr.bf16.mxu0 0
      %867 = vmatpush1.bf16.msra.mxu0 0
      %868 = vmatprep.subr.bf16.mxu0 0
      %869 = vmatpush1.bf16.msra.mxu0 0
      %870 = vmatprep.subr.bf16.mxu0 0
      %871 = vmatpush1.bf16.msra.mxu0 %v847
      %872 = vmatprep.subr.bf16.mxu0 0
      %873 = vmatpush1.bf16.msra.mxu0 %v846
      %874 = vmatprep.subr.bf16.mxu0 0
      %875 = vmatpush2.bf16.msra.mxu0 0
      %876 = vmatprep.subr.bf16.mxu0 0
      %877 = vmatpush2.bf16.msra.mxu0 0
      %878 = vmatprep.subr.bf16.mxu0 0
      %879 = vmatpush2.bf16.msra.mxu0 0
      %880 = vmatprep.subr.bf16.mxu0 0
      %881 = vmatpush2.bf16.msra.mxu0 0
      %882 = vmatprep.subr.bf16.mxu0 0
      %883 = vmatpush2.bf16.msra.mxu0 0
      %884 = vmatprep.subr.bf16.mxu0 0
      %885 = vmatpush2.bf16.msra.mxu0 0
      %886 = vmatprep.subr.bf16.mxu0 0
      %887 = vmatpush2.bf16.msra.mxu0 0
      %888 = vmatprep.subr.bf16.mxu0 0
      %889 = vmatpush2.bf16.msra.mxu0 0
      %890 = vmatprep.mubr.bf16.mxu0 0
      %891 = vmatmul.mubr.bf16.gmra.mxu0 %v856
      %v892 = vpop.f32.mrf.mxu0
      %v893 = vadd.f32 %v853, %v892
      %v894 = vpop.f32.mrf.mxu0
      %v895 = vpop.f32.mrf.mxu0
      %v896 = vpop.f32.mrf.mxu0
      %897 = vdwg.mxu0
      %v898 = vadd.f32 %v319, %v893
      %v899 = vsel %vm334, %v898, 0.0
      %900 = vadd.xlane.f32.xlu0 %v899
      %v901 = vpop.xlane.xlu0 %900
      %v902 = vrcp.pop 32.0
      %v903 = vmul.f32 %v901, %v902
      %v904 = vsub.f32 %v898, %v903
      %v905 = vmul.f32 %v904, %v904
      %v906 = vsel %vm334, %v905, 0.0
      %907 = vadd.xlane.f32.xlu0 %v906
      %v908 = vpop.xlane.xlu0 %907
      %v909 = vmul.f32 %v908, %v902
      %v910 = vadd.f32 %v909, 1e-05
      %v911 = vrsqrt.pop %v910
      %v912 = vmul.f32 %v904, %v911
      %v913 = vld [vmem:[%s6] sm:$0x1]
      %v915 = vlaneseq
      %v916 = vshrl.u32 %v915, 7
      %v917 = vsub.s32 0, %v916
      %v918 = vrot.slane %v913, %v917
      %v920 = vmul.f32 %v912, %v918
      %v921 = vld [vmem:[%s7] sm:$0x1]
      %v923 = vlaneseq
      %v924 = vshrl.u32 %v923, 7
      %v925 = vsub.s32 0, %v924
      %v926 = vrot.slane %v921, %v925
      %v928 = vadd.f32 %v920, %v926
      %929 = vst.msk [vmem:[%s317] sm:$0xff] %vm334, %v928
      %p930 = scmp.lt.s32.totalorder %s19, 1
      %s931 = scalar_select %p930, %s19, 1
      %s932 = smul.addr %s931, 8
      %s933 = scalar_lea.vmem %s8, %s932
      // Predicated region
      $region53: #{natransformer_forward.20} parent=51 // pred_check
        %p934 = pneg %p215
      $region54: #{natransformer_forward.20} parent=51 // pred_check_branch
        %936 = sbr.rel (%p934) target = $region56
      $region55: #{natransformer_forward.20} parent=51 // pred_region
        _
      $region56: #{natransformer_forward.20} parent=51 // pred_fallthru
        _
    $region52: #{natransformer_forward.20} parent=5 // pred_fallthru
      _
    %p937 = scmp.le.s32.totalorder 2, %s14
    // Predicated region
    $region57: #{natransformer_forward.20} parent=5 // pred_check
      %p938 = pneg %p937
    $region58: #{natransformer_forward.20} parent=5 // pred_check_branch
      %940 = sbr.rel (%p938) target = $region60
    $region59: #{natransformer_forward.20} parent=5 // pred_region
      %s941 = ssub.s32 %s14, 2
      // Predicated region
      $region61: #{natransformer_forward.20} parent=59 // pred_check
        %p942 = pneg %p221
      $region62: #{natransformer_forward.20} parent=59 // pred_check_branch
        %944 = sbr.rel (%p942) target = $region64
      $region63: #{natransformer_forward.20} parent=59 // pred_region
        %p945 = scmp.lt.s32.totalorder %s20, 1
        %s946 = scalar_select %p945, %s20, 1
        %s947 = smul.addr %s946, 8
        %s948 = scalar_lea.vmem %s8, %s947
      $region64: #{natransformer_forward.20} parent=59 // pred_fallthru
        _
    $region60: #{natransformer_forward.20} parent=5 // pred_fallthru
      _
  $region6: #{natransformer_forward.20} parent=0 // loop_footer
    %s18 = sadd.s32 1, %s14
  $region7: #{natransformer_forward.20} parent=0 // loop_footer_branch
    %13 = sbr.rel target = $region3
  $region8: #{natransformer_forward.20} parent=0 // loop_exit
    _

// kernel: natransformer_forward.21
$region0: #{natransformer_forward.21}
  #allocation0 [shape = 'u32[]', space=smem, size = 0x4, offset = 0x4, fixed_abs, tag = 'smem constant byte address 0x4 - core index']
  #allocation1 [shape = 'u32[144,128]{1,0:T(1,128)}', space=vmem, size = 0x12000, scoped, tag = 'internal scratch']
  %s0 = inlined_call_operand.vmem [shape: f32[2,8,32], index: 0, kind: input, shape index: {}]
  %s1 = inlined_call_operand.vmem [shape: f32[2,8,32], index: 1, kind: input, shape index: {}]
  %s2 = inlined_call_operand.vmem [shape: f32[2,8,8], index: 2, kind: input, shape index: {}]
  %s3 = inlined_call_operand.vmem [shape: f32[32,32], index: 3, kind: input, shape index: {}]
  %s4 = inlined_call_operand.vmem [shape: f32[1,32], index: 4, kind: input, shape index: {}]
  %s5 = inlined_call_operand.vmem [shape: f32[32,64], index: 5, kind: input, shape index: {}]
  %s6 = inlined_call_operand.vmem [shape: f32[1,64], index: 6, kind: input, shape index: {}]
  %s7 = inlined_call_operand.vmem [shape: f32[32,32], index: 7, kind: input, shape index: {}]
  %s8 = inlined_call_operand.vmem [shape: f32[1,32], index: 8, kind: input, shape index: {}]
  %s9 = inlined_call_operand.vmem [shape: f32[1,32], index: 9, kind: input, shape index: {}]
  %s10 = inlined_call_operand.vmem [shape: f32[1,32], index: 10, kind: input, shape index: {}]
  %s11 = inlined_call_operand.vmem [shape: f32[2,8,32], index: 11, kind: output, shape index: {}]
  %s12 = sld [smem:[#allocation0]]
  $region77: #{natransformer_forward.21} parent=0
    _
  %s14 = ssub.s32 1, %s12
  %s15 = scalar_select 0, %s14, %s12
  loop: start=0, step=1, limit=4
  $region2: #{natransformer_forward.21} parent=0 // loop_pre_header
    _
  $region3: #{natransformer_forward.21} parent=0 // loop_header
    %s17 = sphi 0, %s21
    %p18 = scmp.ge.s32.totalorder %s17, 4
    %s27 = sphi 0, %s29
    %s30 = sphi 0, %s27
    %s31 = sphi 0, %s30
    %s47 = sphi 0, %s31
    %s53 = sphi 0, %s55
    %s56 = sphi 0, %s53
    %s57 = sphi 0, %s56
    %s73 = sphi 0, %s57
    %s79 = sphi 0, %s81
    %s82 = sphi 0, %s79
    %s83 = sphi 0, %s82
    %s99 = sphi 0, %s83
    %s103 = sphi 0, %s103
    %s105 = sphi 0, %s103
    %s106 = sphi 0, %s105
    %s120 = sphi 0, %s106
    %s124 = sphi 0, %s124
    %s126 = sphi 0, %s124
    %s127 = sphi 0, %s126
    %s141 = sphi 0, %s127
    %s145 = sphi 0, %s145
    %s147 = sphi 0, %s145
    %s148 = sphi 0, %s147
    %s162 = sphi 0, %s148
    %s166 = sphi 0, %s166
    %s168 = sphi 0, %s166
    %s169 = sphi 0, %s168
    %s183 = sphi 0, %s169
    %s187 = sphi 0, %s187
    %s189 = sphi 0, %s187
    %s190 = sphi 0, %s189
    %s204 = sphi 0, %s190
    %s208 = sphi 0, %s208
    %s210 = sphi 0, %s208
    %s211 = sphi 0, %s210
    %s225 = sphi 0, %s211
    %s229 = sphi 0, %s229
    %s231 = sphi 0, %s229
    %s232 = sphi 0, %s231
    %s246 = sphi 0, %s232
    %s250 = sphi 0, %s250
    %s252 = sphi 0, %s250
    %s253 = sphi 0, %s252
    %s267 = sphi 0, %s253
    %s273 = sphi 0, %s275
    %s276 = sphi 0, %s273
    %s277 = sphi 0, %s276
    %s293 = sphi 0, %s277
  $region4: #{natransformer_forward.21} parent=0 // loop_header_branch
    %20 = sbr.rel (%p18) target = $region8
  $region5: #{natransformer_forward.21} parent=0 // loop_body
    %s22 = ssub.s32 %s17, 1
    %s23 = ssub.s32 %s17, 2
    %s24 = sadd.s32 %s17, 1
    %s25 = ssub.s32 %s17, %s24
    %p26 = scmp.eq.s32.totalorder %s25, 0
    %s28 = sadd.s32 %s27, 1
    %s29 = scalar_select %p26, %s27, %s28
    %p32 = pneg %p26
    %p33 = scmp.eq.s32.totalorder %s17, 1
    %p34 = por %p32, %p33
    %p35 = scmp.ne.s32.totalorder %s27, %s30
    %p36 = scmp.eq.s32.totalorder %s17, 0
    %p37 = por %p35, %p36
    %p38 = scmp.ne.s32.totalorder %s27, %s30
    %p39 = scmp.eq.s32.totalorder %s22, 1
    %p40 = por %p38, %p39
    %p41 = scmp.ne.s32.totalorder %s30, %s31
    %p42 = scmp.eq.s32.totalorder %s22, 0
    %p43 = por %p41, %p42
    %p44 = scmp.ne.s32.totalorder %s30, %s31
    %p45 = scmp.eq.s32.totalorder %s23, 1
    %p46 = por %p44, %p45
    %p48 = scmp.ne.s32.totalorder %s31, %s47
    %p49 = scmp.eq.s32.totalorder %s23, 0
    %p50 = por %p48, %p49
    %s51 = ssub.s32 %s17, %s24
    %p52 = scmp.eq.s32.totalorder %s51, 0
    %s54 = sadd.s32 %s53, 1
    %s55 = scalar_select %p52, %s53, %s54
    %p58 = pneg %p52
    %p59 = scmp.eq.s32.totalorder %s17, 1
    %p60 = por %p58, %p59
    %p61 = scmp.ne.s32.totalorder %s53, %s56
    %p62 = scmp.eq.s32.totalorder %s17, 0
    %p63 = por %p61, %p62
    %p64 = scmp.ne.s32.totalorder %s53, %s56
    %p65 = scmp.eq.s32.totalorder %s22, 1
    %p66 = por %p64, %p65
    %p67 = scmp.ne.s32.totalorder %s56, %s57
    %p68 = scmp.eq.s32.totalorder %s22, 0
    %p69 = por %p67, %p68
    %p70 = scmp.ne.s32.totalorder %s56, %s57
    %p71 = scmp.eq.s32.totalorder %s23, 1
    %p72 = por %p70, %p71
    %p74 = scmp.ne.s32.totalorder %s57, %s73
    %p75 = scmp.eq.s32.totalorder %s23, 0
    %p76 = por %p74, %p75
    %s77 = ssub.s32 %s17, %s24
    %p78 = scmp.eq.s32.totalorder %s77, 0
    %s80 = sadd.s32 %s79, 1
    %s81 = scalar_select %p78, %s79, %s80
    %p84 = pneg %p78
    %p85 = scmp.eq.s32.totalorder %s17, 1
    %p86 = por %p84, %p85
    %p87 = scmp.ne.s32.totalorder %s79, %s82
    %p88 = scmp.eq.s32.totalorder %s17, 0
    %p89 = por %p87, %p88
    %p90 = scmp.ne.s32.totalorder %s79, %s82
    %p91 = scmp.eq.s32.totalorder %s22, 1
    %p92 = por %p90, %p91
    %p93 = scmp.ne.s32.totalorder %s82, %s83
    %p94 = scmp.eq.s32.totalorder %s22, 0
    %p95 = por %p93, %p94
    %p96 = scmp.ne.s32.totalorder %s82, %s83
    %p97 = scmp.eq.s32.totalorder %s23, 1
    %p98 = por %p96, %p97
    %p100 = scmp.ne.s32.totalorder %s83, %s99
    %p101 = scmp.eq.s32.totalorder %s23, 0
    %p102 = por %p100, %p101
    %s104 = sadd.s32 %s103, 1
    %p107 = scmp.eq.s32.totalorder %s17, 1
    %p108 = scmp.ne.s32.totalorder %s103, %s105
    %p109 = scmp.eq.s32.totalorder %s17, 0
    %p110 = por %p108, %p109
    %p111 = scmp.ne.s32.totalorder %s103, %s105
    %p112 = scmp.eq.s32.totalorder %s22, 1
    %p113 = por %p111, %p112
    %p114 = scmp.ne.s32.totalorder %s105, %s106
    %p115 = scmp.eq.s32.totalorder %s22, 0
    %p116 = por %p114, %p115
    %p117 = scmp.ne.s32.totalorder %s105, %s106
    %p118 = scmp.eq.s32.totalorder %s23, 1
    %p119 = por %p117, %p118
    %p121 = scmp.ne.s32.totalorder %s106, %s120
    %p122 = scmp.eq.s32.totalorder %s23, 0
    %p123 = por %p121, %p122
    %s125 = sadd.s32 %s124, 1
    %p128 = scmp.eq.s32.totalorder %s17, 1
    %p129 = scmp.ne.s32.totalorder %s124, %s126
    %p130 = scmp.eq.s32.totalorder %s17, 0
    %p131 = por %p129, %p130
    %p132 = scmp.ne.s32.totalorder %s124, %s126
    %p133 = scmp.eq.s32.totalorder %s22, 1
    %p134 = por %p132, %p133
    %p135 = scmp.ne.s32.totalorder %s126, %s127
    %p136 = scmp.eq.s32.totalorder %s22, 0
    %p137 = por %p135, %p136
    %p138 = scmp.ne.s32.totalorder %s126, %s127
    %p139 = scmp.eq.s32.totalorder %s23, 1
    %p140 = por %p138, %p139
    %p142 = scmp.ne.s32.totalorder %s127, %s141
    %p143 = scmp.eq.s32.totalorder %s23, 0
    %p144 = por %p142, %p143
    %s146 = sadd.s32 %s145, 1
    %p149 = scmp.eq.s32.totalorder %s17, 1
    %p150 = scmp.ne.s32.totalorder %s145, %s147
    %p151 = scmp.eq.s32.totalorder %s17, 0
    %p152 = por %p150, %p151
    %p153 = scmp.ne.s32.totalorder %s145, %s147
    %p154 = scmp.eq.s32.totalorder %s22, 1
    %p155 = por %p153, %p154
    %p156 = scmp.ne.s32.totalorder %s147, %s148
    %p157 = scmp.eq.s32.totalorder %s22, 0
    %p158 = por %p156, %p157
    %p159 = scmp.ne.s32.totalorder %s147, %s148
    %p160 = scmp.eq.s32.totalorder %s23, 1
    %p161 = por %p159, %p160
    %p163 = scmp.ne.s32.totalorder %s148, %s162
    %p164 = scmp.eq.s32.totalorder %s23, 0
    %p165 = por %p163, %p164
    %s167 = sadd.s32 %s166, 1
    %p170 = scmp.eq.s32.totalorder %s17, 1
    %p171 = scmp.ne.s32.totalorder %s166, %s168
    %p172 = scmp.eq.s32.totalorder %s17, 0
    %p173 = por %p171, %p172
    %p174 = scmp.ne.s32.totalorder %s166, %s168
    %p175 = scmp.eq.s32.totalorder %s22, 1
    %p176 = por %p174, %p175
    %p177 = scmp.ne.s32.totalorder %s168, %s169
    %p178 = scmp.eq.s32.totalorder %s22, 0
    %p179 = por %p177, %p178
    %p180 = scmp.ne.s32.totalorder %s168, %s169
    %p181 = scmp.eq.s32.totalorder %s23, 1
    %p182 = por %p180, %p181
    %p184 = scmp.ne.s32.totalorder %s169, %s183
    %p185 = scmp.eq.s32.totalorder %s23, 0
    %p186 = por %p184, %p185
    %s188 = sadd.s32 %s187, 1
    %p191 = scmp.eq.s32.totalorder %s17, 1
    %p192 = scmp.ne.s32.totalorder %s187, %s189
    %p193 = scmp.eq.s32.totalorder %s17, 0
    %p194 = por %p192, %p193
    %p195 = scmp.ne.s32.totalorder %s187, %s189
    %p196 = scmp.eq.s32.totalorder %s22, 1
    %p197 = por %p195, %p196
    %p198 = scmp.ne.s32.totalorder %s189, %s190
    %p199 = scmp.eq.s32.totalorder %s22, 0
    %p200 = por %p198, %p199
    %p201 = scmp.ne.s32.totalorder %s189, %s190
    %p202 = scmp.eq.s32.totalorder %s23, 1
    %p203 = por %p201, %p202
    %p205 = scmp.ne.s32.totalorder %s190, %s204
    %p206 = scmp.eq.s32.totalorder %s23, 0
    %p207 = por %p205, %p206
    %s209 = sadd.s32 %s208, 1
    %p212 = scmp.eq.s32.totalorder %s17, 1
    %p213 = scmp.ne.s32.totalorder %s208, %s210
    %p214 = scmp.eq.s32.totalorder %s17, 0
    %p215 = por %p213, %p214
    %p216 = scmp.ne.s32.totalorder %s208, %s210
    %p217 = scmp.eq.s32.totalorder %s22, 1
    %p218 = por %p216, %p217
    %p219 = scmp.ne.s32.totalorder %s210, %s211
    %p220 = scmp.eq.s32.totalorder %s22, 0
    %p221 = por %p219, %p220
    %p222 = scmp.ne.s32.totalorder %s210, %s211
    %p223 = scmp.eq.s32.totalorder %s23, 1
    %p224 = por %p222, %p223
    %p226 = scmp.ne.s32.totalorder %s211, %s225
    %p227 = scmp.eq.s32.totalorder %s23, 0
    %p228 = por %p226, %p227
    %s230 = sadd.s32 %s229, 1
    %p233 = scmp.eq.s32.totalorder %s17, 1
    %p234 = scmp.ne.s32.totalorder %s229, %s231
    %p235 = scmp.eq.s32.totalorder %s17, 0
    %p236 = por %p234, %p235
    %p237 = scmp.ne.s32.totalorder %s229, %s231
    %p238 = scmp.eq.s32.totalorder %s22, 1
    %p239 = por %p237, %p238
    %p240 = scmp.ne.s32.totalorder %s231, %s232
    %p241 = scmp.eq.s32.totalorder %s22, 0
    %p242 = por %p240, %p241
    %p243 = scmp.ne.s32.totalorder %s231, %s232
    %p244 = scmp.eq.s32.totalorder %s23, 1
    %p245 = por %p243, %p244
    %p247 = scmp.ne.s32.totalorder %s232, %s246
    %p248 = scmp.eq.s32.totalorder %s23, 0
    %p249 = por %p247, %p248
    %s251 = sadd.s32 %s250, 1
    %p254 = scmp.eq.s32.totalorder %s17, 1
    %p255 = scmp.ne.s32.totalorder %s250, %s252
    %p256 = scmp.eq.s32.totalorder %s17, 0
    %p257 = por %p255, %p256
    %p258 = scmp.ne.s32.totalorder %s250, %s252
    %p259 = scmp.eq.s32.totalorder %s22, 1
    %p260 = por %p258, %p259
    %p261 = scmp.ne.s32.totalorder %s252, %s253
    %p262 = scmp.eq.s32.totalorder %s22, 0
    %p263 = por %p261, %p262
    %p264 = scmp.ne.s32.totalorder %s252, %s253
    %p265 = scmp.eq.s32.totalorder %s23, 1
    %p266 = por %p264, %p265
    %p268 = scmp.ne.s32.totalorder %s253, %s267
    %p269 = scmp.eq.s32.totalorder %s23, 0
    %p270 = por %p268, %p269
    %s271 = ssub.s32 %s17, %s24
    %p272 = scmp.eq.s32.totalorder %s271, 0
    %s274 = sadd.s32 %s273, 1
    %s275 = scalar_select %p272, %s273, %s274
    %p278 = pneg %p272
    %p279 = scmp.eq.s32.totalorder %s17, 1
    %p280 = por %p278, %p279
    %p281 = scmp.ne.s32.totalorder %s273, %s276
    %p282 = scmp.eq.s32.totalorder %s17, 0
    %p283 = por %p281, %p282
    %p284 = scmp.ne.s32.totalorder %s273, %s276
    %p285 = scmp.eq.s32.totalorder %s22, 1
    %p286 = por %p284, %p285
    %p287 = scmp.ne.s32.totalorder %s276, %s277
    %p288 = scmp.eq.s32.totalorder %s22, 0
    %p289 = por %p287, %p288
    %p290 = scmp.ne.s32.totalorder %s276, %s277
    %p291 = scmp.eq.s32.totalorder %s23, 1
    %p292 = por %p290, %p291
    %p294 = scmp.ne.s32.totalorder %s277, %s293
    %p295 = scmp.eq.s32.totalorder %s23, 0
    %p296 = por %p294, %p295
    %p297 = scmp.le.s32.totalorder 1, %s17
    %p298 = scmp.lt.s32.totalorder %s17, 3
    %p299 = pnand %p297, %p298
    %p300 = pneg %p299
    // Predicated region
    $region9: #{natransformer_forward.21} parent=5 // pred_check
      _
    $region10: #{natransformer_forward.21} parent=5 // pred_check_branch
      %302 = sbr.rel (%p299) target = $region12
    $region11: #{natransformer_forward.21} parent=5 // pred_region
      %s303 = ssub.s32 %s17, 1
      // Predicated region
      $region13: #{natransformer_forward.21} parent=11 // pred_check
        %p304 = pneg %p116
      $region14: #{natransformer_forward.21} parent=11 // pred_check_branch
        %306 = sbr.rel (%p304) target = $region16
      $region15: #{natransformer_forward.21} parent=11 // pred_region
        _
      $region16: #{natransformer_forward.21} parent=11 // pred_fallthru
        _
      // Predicated region
      $region17: #{natransformer_forward.21} parent=11 // pred_check
        %p307 = pneg %p137
      $region18: #{natransformer_forward.21} parent=11 // pred_check_branch
        %309 = sbr.rel (%p307) target = $region20
      $region19: #{natransformer_forward.21} parent=11 // pred_region
        _
      $region20: #{natransformer_forward.21} parent=11 // pred_fallthru
        _
      // Predicated region
      $region21: #{natransformer_forward.21} parent=11 // pred_check
        %p310 = pneg %p158
      $region22: #{natransformer_forward.21} parent=11 // pred_check_branch
        %312 = sbr.rel (%p310) target = $region24
      $region23: #{natransformer_forward.21} parent=11 // pred_region
        _
      $region24: #{natransformer_forward.21} parent=11 // pred_fallthru
        _
      // Predicated region
      $region25: #{natransformer_forward.21} parent=11 // pred_check
        %p313 = pneg %p179
      $region26: #{natransformer_forward.21} parent=11 // pred_check_branch
        %315 = sbr.rel (%p313) target = $region28
      $region27: #{natransformer_forward.21} parent=11 // pred_region
        _
      $region28: #{natransformer_forward.21} parent=11 // pred_fallthru
        _
      // Predicated region
      $region29: #{natransformer_forward.21} parent=11 // pred_check
        %p316 = pneg %p200
      $region30: #{natransformer_forward.21} parent=11 // pred_check_branch
        %318 = sbr.rel (%p316) target = $region32
      $region31: #{natransformer_forward.21} parent=11 // pred_region
        _
      $region32: #{natransformer_forward.21} parent=11 // pred_fallthru
        _
      // Predicated region
      $region33: #{natransformer_forward.21} parent=11 // pred_check
        %p319 = pneg %p221
      $region34: #{natransformer_forward.21} parent=11 // pred_check_branch
        %321 = sbr.rel (%p319) target = $region36
      $region35: #{natransformer_forward.21} parent=11 // pred_region
        _
      $region36: #{natransformer_forward.21} parent=11 // pred_fallthru
        _
      // Predicated region
      $region37: #{natransformer_forward.21} parent=11 // pred_check
        %p322 = pneg %p242
      $region38: #{natransformer_forward.21} parent=11 // pred_check_branch
        %324 = sbr.rel (%p322) target = $region40
      $region39: #{natransformer_forward.21} parent=11 // pred_region
        _
      $region40: #{natransformer_forward.21} parent=11 // pred_fallthru
        _
      // Predicated region
      $region41: #{natransformer_forward.21} parent=11 // pred_check
        %p325 = pneg %p263
      $region42: #{natransformer_forward.21} parent=11 // pred_check_branch
        %327 = sbr.rel (%p325) target = $region44
      $region43: #{natransformer_forward.21} parent=11 // pred_region
        _
      $region44: #{natransformer_forward.21} parent=11 // pred_fallthru
        _
    $region12: #{natransformer_forward.21} parent=5 // pred_fallthru
      _
    %p328 = scmp.lt.s32.totalorder %s17, 2
    // Predicated region
    $region45: #{natransformer_forward.21} parent=5 // pred_check
      %p329 = pneg %p328
    $region46: #{natransformer_forward.21} parent=5 // pred_check_branch
      %331 = sbr.rel (%p329) target = $region48
    $region47: #{natransformer_forward.21} parent=5 // pred_region
      // Predicated region
      $region49: #{natransformer_forward.21} parent=47 // pred_check
        %p332 = pneg %p37
      $region50: #{natransformer_forward.21} parent=47 // pred_check_branch
        %334 = sbr.rel (%p332) target = $region52
      $region51: #{natransformer_forward.21} parent=47 // pred_region
        %p335 = scmp.lt.s32.totalorder %s17, 1
        %s336 = scalar_select %p335, %s17, 1
        %s337 = smul.addr %s336, 8
        %s338 = scalar_lea.vmem %s0, %s337
      $region52: #{natransformer_forward.21} parent=47 // pred_fallthru
        _
      // Predicated region
      $region53: #{natransformer_forward.21} parent=47 // pred_check
        %p339 = pneg %p63
      $region54: #{natransformer_forward.21} parent=47 // pred_check_branch
        %341 = sbr.rel (%p339) target = $region56
      $region55: #{natransformer_forward.21} parent=47 // pred_region
        %p342 = scmp.lt.s32.totalorder %s17, 1
        %s343 = scalar_select %p342, %s17, 1
        %s344 = smul.addr %s343, 8
        %s345 = scalar_lea.vmem %s1, %s344
      $region56: #{natransformer_forward.21} parent=47 // pred_fallthru
        _
      // Predicated region
      $region57: #{natransformer_forward.21} parent=47 // pred_check
        %p346 = pneg %p89
      $region58: #{natransformer_forward.21} parent=47 // pred_check_branch
        %348 = sbr.rel (%p346) target = $region60
      $region59: #{natransformer_forward.21} parent=47 // pred_region
        %p349 = scmp.lt.s32.totalorder %s17, 1
        %s350 = scalar_select %p349, %s17, 1
        %s351 = smul.addr %s350, 8
        %s352 = scalar_lea.vmem %s2, %s351
      $region60: #{natransformer_forward.21} parent=47 // pred_fallthru
        _
    $region48: #{natransformer_forward.21} parent=5 // pred_fallthru
      _
    %p353 = scmp.le.s32.totalorder 1, %s17
    %p354 = scmp.lt.s32.totalorder %s17, 3
    %p355 = pnand %p353, %p354
    %p356 = pneg %p355
    // Predicated region
    $region61: #{natransformer_forward.21} parent=5 // pred_check
      _
    $region62: #{natransformer_forward.21} parent=5 // pred_check_branch
      %358 = sbr.rel (%p355) target = $region64
    $region63: #{natransformer_forward.21} parent=5 // pred_region
      %s359 = ssub.s32 %s17, 1
      %p360 = scmp.lt.s32.totalorder %s22, 1
      %s361 = scalar_select %p360, %s22, 1
      %s362 = smul.addr %s361, 8
      %s363 = scalar_lea.vmem %s0, %s362
      %p364 = pneg %p43
      %p365 = pneg %p40
      %p366 = scmp.lt.s32.totalorder %s22, 1
      %s367 = scalar_select %p366, %s22, 1
      %s368 = smul.addr %s367, 8
      %s369 = scalar_lea.vmem %s1, %s368
      %p370 = pneg %p69
      %p371 = pneg %p66
      %p372 = scmp.lt.s32.totalorder %s22, 1
      %s373 = scalar_select %p372, %s22, 1
      %s374 = smul.addr %s373, 8
      %s375 = scalar_lea.vmem %s2, %s374
      %p376 = pneg %p95
      %p377 = pneg %p92
      %p378 = pneg %p116
      %p379 = pneg %p113
      %p380 = pneg %p137
      %p381 = pneg %p134
      %p382 = pneg %p158
      %p383 = pneg %p155
      %p384 = pneg %p179
      %p385 = pneg %p176
      %p386 = pneg %p200
      %p387 = pneg %p197
      %p388 = pneg %p221
      %p389 = pneg %p218
      %p390 = pneg %p242
      %p391 = pneg %p239
      %p392 = pneg %p263
      %p393 = pneg %p260
      %p394 = pneg %p289
      %p395 = pneg %p286
      %p396 = scmp.lt.s32.totalorder %s22, 1
      %s397 = scalar_select %p396, %s22, 1
      %s398 = smul.addr %s397, 8
      %s399 = scalar_lea.vmem %s11, %s398
      %p400 = scmp.lt.s32.totalorder %s22, 1
      %s401 = scalar_select %p400, %s22, 1
      %s402 = smul.addr %s401, 8
      %s403 = scalar_lea.vmem %s0, %s402
      %p404 = scmp.lt.s32.totalorder %s22, 1
      %s405 = scalar_select %p404, %s22, 1
      %s406 = smul.addr %s405, 8
      %s407 = scalar_lea.vmem %s1, %s406
      %p408 = scmp.lt.s32.totalorder %s22, 1
      %s409 = scalar_select %p408, %s22, 1
      %s410 = smul.addr %s409, 8
      %s411 = scalar_lea.vmem %s2, %s410
      %p412 = scmp.lt.s32.totalorder %s22, 1
      %s413 = scalar_select %p412, %s22, 1
      %s414 = smul.addr %s413, 8
      %s415 = scalar_lea.vmem %s11, %s414
      %v417 = vld [vmem:[%s403] sm:$0xff]
      %v418 = vld [vmem:[%s407] sm:$0xff]
      %v419 = vpack.c.bf16 %v417, %v417
      %v420 = vld [vmem:[%s3] sm:$0xff]
      %v421 = vld [vmem:[%s3 + $0x8] sm:$0xff]
      %v422 = vld [vmem:[%s3 + $0x10] sm:$0xff]
      %v423 = vld [vmem:[%s3 + $0x18] sm:$0xff]
      %v424 = vpack.c.bf16 %v421, %v420
      %v425 = vpack.c.bf16 %v423, %v422
      %v426 = vld [vmem:[%s4] sm:$0x1]
      %v428 = vlaneseq
      %v429 = vshrl.u32 %v428, 7
      %v430 = vsub.s32 0, %v429
      %v431 = vrot.slane %v426, %v430
      %vm433 = vcmask 261120
      %v435 = vsel %vm433, %v419, 0
      %437 = vmatprep.subr.bf16.mxu0 0
      %438 = vmatpush1.bf16.msra.mxu0 0
      %439 = vmatprep.subr.bf16.mxu0 0
      %440 = vmatpush1.bf16.msra.mxu0 0
      %441 = vmatprep.subr.bf16.mxu0 0
      %442 = vmatpush1.bf16.msra.mxu0 0
      %443 = vmatprep.subr.bf16.mxu0 0
      %444 = vmatpush1.bf16.msra.mxu0 0
      %445 = vmatprep.subr.bf16.mxu0 0
      %446 = vmatpush1.bf16.msra.mxu0 0
      %447 = vmatprep.subr.bf16.mxu0 0
      %448 = vmatpush1.bf16.msra.mxu0 0
      %449 = vmatprep.subr.bf16.mxu0 0
      %450 = vmatpush1.bf16.msra.mxu0 %v425
      %451 = vmatprep.subr.bf16.mxu0 0
      %452 = vmatpush1.bf16.msra.mxu0 %v424
      %453 = vmatprep.subr.bf16.mxu0 0
      %454 = vmatpush2.bf16.msra.mxu0 0
      %455 = vmatprep.subr.bf16.mxu0 0
      %456 = vmatpush2.bf16.msra.mxu0 0
      %457 = vmatprep.subr.bf16.mxu0 0
      %458 = vmatpush2.bf16.msra.mxu0 0
      %459 = vmatprep.subr.bf16.mxu0 0
      %460 = vmatpush2.bf16.msra.mxu0 0
      %461 = vmatprep.subr.bf16.mxu0 0
      %462 = vmatpush2.bf16.msra.mxu0 0
      %463 = vmatprep.subr.bf16.mxu0 0
      %464 = vmatpush2.bf16.msra.mxu0 0
      %465 = vmatprep.subr.bf16.mxu0 0
      %466 = vmatpush2.bf16.msra.mxu0 0
      %467 = vmatprep.subr.bf16.mxu0 0
      %468 = vmatpush2.bf16.msra.mxu0 0
      %469 = vmatprep.mubr.bf16.mxu0 0
      %470 = vmatmul.mubr.bf16.gmra.mxu0 %v435
      %v471 = vpop.f32.mrf.mxu0
      %v472 = vadd.f32 %v431, %v471
      %v473 = vpop.f32.mrf.mxu0
      %v474 = vpop.f32.mrf.mxu0
      %v475 = vpop.f32.mrf.mxu0
      %476 = vdwg.mxu0
      %v477 = vpack.c.bf16 %v418, %v418
      %v478 = vld [vmem:[%s5] sm:$0xff]
      %v479 = vld [vmem:[%s5 + $0x8] sm:$0xff]
      %v480 = vld [vmem:[%s5 + $0x10] sm:$0xff]
      %v481 = vld [vmem:[%s5 + $0x18] sm:$0xff]
      %v482 = vpack.c.bf16 %v479, %v478
      %v483 = vpack.c.bf16 %v481, %v480
      %v484 = vld [vmem:[%s6] sm:$0x1]
      %v486 = vlaneseq
      %v487 = vshrl.u32 %v486, 7
      %v488 = vsub.s32 0, %v487
      %v489 = vrot.slane %v484, %v488
      %v492 = vsel %vm433, %v477, 0
      %494 = vmatprep.subr.bf16.mxu0 0
      %495 = vmatpush1.bf16.msra.mxu0 0
      %496 = vmatprep.subr.bf16.mxu0 0
      %497 = vmatpush1.bf16.msra.mxu0 0
      %498 = vmatprep.subr.bf16.mxu0 0
      %499 = vmatpush1.bf16.msra.mxu0 0
      %500 = vmatprep.subr.bf16.mxu0 0
      %501 = vmatpush1.bf16.msra.mxu0 0
      %502 = vmatprep.subr.bf16.mxu0 0
      %503 = vmatpush1.bf16.msra.mxu0 0
      %504 = vmatprep.subr.bf16.mxu0 0
      %505 = vmatpush1.bf16.msra.mxu0 0
      %506 = vmatprep.subr.bf16.mxu0 0
      %507 = vmatpush1.bf16.msra.mxu0 %v483
      %508 = vmatprep.subr.bf16.mxu0 0
      %509 = vmatpush1.bf16.msra.mxu0 %v482
      %510 = vmatprep.subr.bf16.mxu0 0
      %511 = vmatpush2.bf16.msra.mxu0 0
      %512 = vmatprep.subr.bf16.mxu0 0
      %513 = vmatpush2.bf16.msra.mxu0 0
      %514 = vmatprep.subr.bf16.mxu0 0
      %515 = vmatpush2.bf16.msra.mxu0 0
      %516 = vmatprep.subr.bf16.mxu0 0
      %517 = vmatpush2.bf16.msra.mxu0 0
      %518 = vmatprep.subr.bf16.mxu0 0
      %519 = vmatpush2.bf16.msra.mxu0 0
      %520 = vmatprep.subr.bf16.mxu0 0
      %521 = vmatpush2.bf16.msra.mxu0 0
      %522 = vmatprep.subr.bf16.mxu0 0
      %523 = vmatpush2.bf16.msra.mxu0 0
      %524 = vmatprep.subr.bf16.mxu0 0
      %525 = vmatpush2.bf16.msra.mxu0 0
      %526 = vmatprep.mubr.bf16.mxu0 0
      %527 = vmatmul.mubr.bf16.gmra.mxu0 %v492
      %v528 = vpop.f32.mrf.mxu0
      %v529 = vadd.f32 %v489, %v528
      %v530 = vpop.f32.mrf.mxu0
      %v531 = vpop.f32.mrf.mxu0
      %v532 = vpop.f32.mrf.mxu0
      %533 = vdwg.mxu0
      %v534 = vld [vmem:[%s411] sm:$0xff]
      %v535 = vmul.f32 %v472, 0.35355338
      %v536 = vpack.c.bf16 %v535, %v535
      %v537 = vpack.c.bf16 %v529, %v529
      %vm538 = vcmask 64512
      %v540 = vsel %vm538, %v536, 0
      %v543 = vsel %vm538, %v537, 0
      %545 = vmatprep.subr.bf16.mxu0 0
      %546 = vmatpush1.bf16.xpose.msra.mxu0 0
      %547 = vmatprep.subr.bf16.mxu0 0
      %548 = vmatpush1.bf16.xpose.msra.mxu0 0
      %549 = vmatprep.subr.bf16.mxu0 0
      %550 = vmatpush1.bf16.xpose.msra.mxu0 0
      %551 = vmatprep.subr.bf16.mxu0 0
      %552 = vmatpush1.bf16.xpose.msra.mxu0 0
      %553 = vmatprep.subr.bf16.mxu0 0
      %554 = vmatpush1.bf16.xpose.msra.mxu0 0
      %555 = vmatprep.subr.bf16.mxu0 0
      %556 = vmatpush1.bf16.xpose.msra.mxu0 0
      %557 = vmatprep.subr.bf16.mxu0 0
      %558 = vmatpush1.bf16.xpose.msra.mxu0 0
      %559 = vmatprep.subr.bf16.mxu0 0
      %560 = vmatpush1.bf16.xpose.msra.mxu0 %v543
      %561 = vmatprep.subr.bf16.mxu0 0
      %562 = vmatpush2.bf16.xpose.msra.mxu0 0
      %563 = vmatprep.subr.bf16.mxu0 0
      %564 = vmatpush2.bf16.xpose.msra.mxu0 0
      %565 = vmatprep.subr.bf16.mxu0 0
      %566 = vmatpush2.bf16.xpose.msra.mxu0 0
      %567 = vmatprep.subr.bf16.mxu0 0
      %568 = vmatpush2.bf16.xpose.msra.mxu0 0
      %569 = vmatprep.subr.bf16.mxu0 0
      %570 = vmatpush2.bf16.xpose.msra.mxu0 0
      %571 = vmatprep.subr.bf16.mxu0 0
      %572 = vmatpush2.bf16.xpose.msra.mxu0 0
      %573 = vmatprep.subr.bf16.mxu0 0
      %574 = vmatpush2.bf16.xpose.msra.mxu0 0
      %575 = vmatprep.subr.bf16.mxu0 0
      %576 = vmatpush2.bf16.xpose.msra.mxu0 0
      %577 = vmatprep.mubr.bf16.mxu0 0
      %578 = vmatmul.mubr.bf16.gmra.mxu0 %v540
      %v579 = vpop.f32.mrf.mxu0
      %v580 = vadd.f32 %v534, %v579
      %v581 = vpop.f32.mrf.mxu0
      %v582 = vpop.f32.mrf.mxu0
      %v583 = vpop.f32.mrf.mxu0
      %584 = vdwg.mxu0
      %v585 = vsel %vm538, %v580, -inf
      %586 = vmax.xlane.f32.xlu0 %v585
      %v587 = vpop.xlane.xlu0 %586
      %v588 = vsub.f32 %v580, %v587
      %v589 = vmul.f32 %v588, 1.442695
      %v590 = vpow.pop %v589
      %v591 = vsel %vm538, %v590, 0.0
      %592 = vadd.xlane.f32.xlu0 %v591
      %v593 = vpop.xlane.xlu0 %592
      %v594 = vrcp.pop %v593
      %v595 = vmul.f32 %v590, %v594
      %v596 = vpack.c.bf16 %v595, %v595
      %598 = vrot.lane.b32.xlu0 %v537, 96
      %v599 = vpop.permute.xlu0 %598
      %v601 = vsel %vm538, %v596, 0
      %vm603 = vcmask 1043456
      %v605 = vsel %vm603, %v599, 0
      %607 = vmatprep.subr.bf16.mxu0 0
      %608 = vmatpush1.bf16.msra.mxu0 0
      %609 = vmatprep.subr.bf16.mxu0 0
      %610 = vmatpush1.bf16.msra.mxu0 0
      %611 = vmatprep.subr.bf16.mxu0 0
      %612 = vmatpush1.bf16.msra.mxu0 0
      %613 = vmatprep.subr.bf16.mxu0 0
      %614 = vmatpush1.bf16.msra.mxu0 0
      %615 = vmatprep.subr.bf16.mxu0 0
      %616 = vmatpush1.bf16.msra.mxu0 0
      %617 = vmatprep.subr.bf16.mxu0 0
      %618 = vmatpush1.bf16.msra.mxu0 0
      %619 = vmatprep.subr.bf16.mxu0 0
      %620 = vmatpush1.bf16.msra.mxu0 0
      %621 = vmatprep.subr.bf16.mxu0 0
      %622 = vmatpush1.bf16.msra.mxu0 %v605
      %623 = vmatprep.subr.bf16.mxu0 0
      %624 = vmatpush2.bf16.msra.mxu0 0
      %625 = vmatprep.subr.bf16.mxu0 0
      %626 = vmatpush2.bf16.msra.mxu0 0
      %627 = vmatprep.subr.bf16.mxu0 0
      %628 = vmatpush2.bf16.msra.mxu0 0
      %629 = vmatprep.subr.bf16.mxu0 0
      %630 = vmatpush2.bf16.msra.mxu0 0
      %631 = vmatprep.subr.bf16.mxu0 0
      %632 = vmatpush2.bf16.msra.mxu0 0
      %633 = vmatprep.subr.bf16.mxu0 0
      %634 = vmatpush2.bf16.msra.mxu0 0
      %635 = vmatprep.subr.bf16.mxu0 0
      %636 = vmatpush2.bf16.msra.mxu0 0
      %637 = vmatprep.subr.bf16.mxu0 0
      %638 = vmatpush2.bf16.msra.mxu0 0
      %639 = vmatprep.mubr.bf16.mxu0 0
      %640 = vmatmul.mubr.bf16.gmra.mxu0 %v601
      %v641 = vpop.f32.mrf.mxu0
      %v642 = vadd.f32 0.0, %v641
      %v643 = vpop.f32.mrf.mxu0
      %v644 = vpop.f32.mrf.mxu0
      %v645 = vpop.f32.mrf.mxu0
      %646 = vdwg.mxu0
      %648 = vrot.lane.b32.xlu0 %v536, 120
      %v649 = vpop.permute.xlu0 %648
      %650 = vrot.lane.b32.xlu0 %v537, 120
      %v651 = vpop.permute.xlu0 %650
      %v653 = vsel %vm538, %v649, 0
      %v656 = vsel %vm538, %v651, 0
      %658 = vmatprep.subr.bf16.mxu0 0
      %659 = vmatpush1.bf16.xpose.msra.mxu0 0
      %660 = vmatprep.subr.bf16.mxu0 0
      %661 = vmatpush1.bf16.xpose.msra.mxu0 0
      %662 = vmatprep.subr.bf16.mxu0 0
      %663 = vmatpush1.bf16.xpose.msra.mxu0 0
      %664 = vmatprep.subr.bf16.mxu0 0
      %665 = vmatpush1.bf16.xpose.msra.mxu0 0
      %666 = vmatprep.subr.bf16.mxu0 0
      %667 = vmatpush1.bf16.xpose.msra.mxu0 0
      %668 = vmatprep.subr.bf16.mxu0 0
      %669 = vmatpush1.bf16.xpose.msra.mxu0 0
      %670 = vmatprep.subr.bf16.mxu0 0
      %671 = vmatpush1.bf16.xpose.msra.mxu0 0
      %672 = vmatprep.subr.bf16.mxu0 0
      %673 = vmatpush1.bf16.xpose.msra.mxu0 %v656
      %674 = vmatprep.subr.bf16.mxu0 0
      %675 = vmatpush2.bf16.xpose.msra.mxu0 0
      %676 = vmatprep.subr.bf16.mxu0 0
      %677 = vmatpush2.bf16.xpose.msra.mxu0 0
      %678 = vmatprep.subr.bf16.mxu0 0
      %679 = vmatpush2.bf16.xpose.msra.mxu0 0
      %680 = vmatprep.subr.bf16.mxu0 0
      %681 = vmatpush2.bf16.xpose.msra.mxu0 0
      %682 = vmatprep.subr.bf16.mxu0 0
      %683 = vmatpush2.bf16.xpose.msra.mxu0 0
      %684 = vmatprep.subr.bf16.mxu0 0
      %685 = vmatpush2.bf16.xpose.msra.mxu0 0
      %686 = vmatprep.subr.bf16.mxu0 0
      %687 = vmatpush2.bf16.xpose.msra.mxu0 0
      %688 = vmatprep.subr.bf16.mxu0 0
      %689 = vmatpush2.bf16.xpose.msra.mxu0 0
      %690 = vmatprep.mubr.bf16.mxu0 0
      %691 = vmatmul.mubr.bf16.gmra.mxu0 %v653
      %v692 = vpop.f32.mrf.mxu0
      %v693 = vadd.f32 %v534, %v692
      %v694 = vpop.f32.mrf.mxu0
      %v695 = vpop.f32.mrf.mxu0
      %v696 = vpop.f32.mrf.mxu0
      %697 = vdwg.mxu0
      %v698 = vsel %vm538, %v693, -inf
      %699 = vmax.xlane.f32.xlu0 %v698
      %v700 = vpop.xlane.xlu0 %699
      %v701 = vsub.f32 %v693, %v700
      %v702 = vmul.f32 %v701, 1.442695
      %v703 = vpow.pop %v702
      %v704 = vsel %vm538, %v703, 0.0
      %705 = vadd.xlane.f32.xlu0 %v704
      %v706 = vpop.xlane.xlu0 %705
      %v707 = vrcp.pop %v706
      %v708 = vmul.f32 %v703, %v707
      %v709 = vpack.c.bf16 %v708, %v708
      %710 = vrot.lane.b32.xlu0 %v537, 88
      %v711 = vpop.permute.xlu0 %710
      %v713 = vsel %vm538, %v709, 0
      %v716 = vsel %vm603, %v711, 0
      %718 = vmatprep.subr.bf16.mxu0 0
      %719 = vmatpush1.bf16.msra.mxu0 0
      %720 = vmatprep.subr.bf16.mxu0 0
      %721 = vmatpush1.bf16.msra.mxu0 0
      %722 = vmatprep.subr.bf16.mxu0 0
      %723 = vmatpush1.bf16.msra.mxu0 0
      %724 = vmatprep.subr.bf16.mxu0 0
      %725 = vmatpush1.bf16.msra.mxu0 0
      %726 = vmatprep.subr.bf16.mxu0 0
      %727 = vmatpush1.bf16.msra.mxu0 0
      %728 = vmatprep.subr.bf16.mxu0 0
      %729 = vmatpush1.bf16.msra.mxu0 0
      %730 = vmatprep.subr.bf16.mxu0 0
      %731 = vmatpush1.bf16.msra.mxu0 0
      %732 = vmatprep.subr.bf16.mxu0 0
      %733 = vmatpush1.bf16.msra.mxu0 %v716
      %734 = vmatprep.subr.bf16.mxu0 0
      %735 = vmatpush2.bf16.msra.mxu0 0
      %736 = vmatprep.subr.bf16.mxu0 0
      %737 = vmatpush2.bf16.msra.mxu0 0
      %738 = vmatprep.subr.bf16.mxu0 0
      %739 = vmatpush2.bf16.msra.mxu0 0
      %740 = vmatprep.subr.bf16.mxu0 0
      %741 = vmatpush2.bf16.msra.mxu0 0
      %742 = vmatprep.subr.bf16.mxu0 0
      %743 = vmatpush2.bf16.msra.mxu0 0
      %744 = vmatprep.subr.bf16.mxu0 0
      %745 = vmatpush2.bf16.msra.mxu0 0
      %746 = vmatprep.subr.bf16.mxu0 0
      %747 = vmatpush2.bf16.msra.mxu0 0
      %748 = vmatprep.subr.bf16.mxu0 0
      %749 = vmatpush2.bf16.msra.mxu0 0
      %750 = vmatprep.mubr.bf16.mxu0 0
      %751 = vmatmul.mubr.bf16.gmra.mxu0 %v713
      %v752 = vpop.f32.mrf.mxu0
      %v753 = vadd.f32 0.0, %v752
      %v754 = vpop.f32.mrf.mxu0
      %v755 = vpop.f32.mrf.mxu0
      %v756 = vpop.f32.mrf.mxu0
      %757 = vdwg.mxu0
      %758 = vrot.lane.b32.xlu0 %v536, 112
      %v759 = vpop.permute.xlu0 %758
      %760 = vrot.lane.b32.xlu0 %v537, 112
      %v761 = vpop.permute.xlu0 %760
      %v763 = vsel %vm538, %v759, 0
      %v766 = vsel %vm538, %v761, 0
      %768 = vmatprep.subr.bf16.mxu0 0
      %769 = vmatpush1.bf16.xpose.msra.mxu0 0
      %770 = vmatprep.subr.bf16.mxu0 0
      %771 = vmatpush1.bf16.xpose.msra.mxu0 0
      %772 = vmatprep.subr.bf16.mxu0 0
      %773 = vmatpush1.bf16.xpose.msra.mxu0 0
      %774 = vmatprep.subr.bf16.mxu0 0
      %775 = vmatpush1.bf16.xpose.msra.mxu0 0
      %776 = vmatprep.subr.bf16.mxu0 0
      %777 = vmatpush1.bf16.xpose.msra.mxu0 0
      %778 = vmatprep.subr.bf16.mxu0 0
      %779 = vmatpush1.bf16.xpose.msra.mxu0 0
      %780 = vmatprep.subr.bf16.mxu0 0
      %781 = vmatpush1.bf16.xpose.msra.mxu0 0
      %782 = vmatprep.subr.bf16.mxu0 0
      %783 = vmatpush1.bf16.xpose.msra.mxu0 %v766
      %784 = vmatprep.subr.bf16.mxu0 0
      %785 = vmatpush2.bf16.xpose.msra.mxu0 0
      %786 = vmatprep.subr.bf16.mxu0 0
      %787 = vmatpush2.bf16.xpose.msra.mxu0 0
      %788 = vmatprep.subr.bf16.mxu0 0
      %789 = vmatpush2.bf16.xpose.msra.mxu0 0
      %790 = vmatprep.subr.bf16.mxu0 0
      %791 = vmatpush2.bf16.xpose.msra.mxu0 0
      %792 = vmatprep.subr.bf16.mxu0 0
      %793 = vmatpush2.bf16.xpose.msra.mxu0 0
      %794 = vmatprep.subr.bf16.mxu0 0
      %795 = vmatpush2.bf16.xpose.msra.mxu0 0
      %796 = vmatprep.subr.bf16.mxu0 0
      %797 = vmatpush2.bf16.xpose.msra.mxu0 0
      %798 = vmatprep.subr.bf16.mxu0 0
      %799 = vmatpush2.bf16.xpose.msra.mxu0 0
      %800 = vmatprep.mubr.bf16.mxu0 0
      %801 = vmatmul.mubr.bf16.gmra.mxu0 %v763
      %v802 = vpop.f32.mrf.mxu0
      %v803 = vadd.f32 %v534, %v802
      %v804 = vpop.f32.mrf.mxu0
      %v805 = vpop.f32.mrf.mxu0
      %v806 = vpop.f32.mrf.mxu0
      %807 = vdwg.mxu0
      %v808 = vsel %vm538, %v803, -inf
      %809 = vmax.xlane.f32.xlu0 %v808
      %v810 = vpop.xlane.xlu0 %809
      %v811 = vsub.f32 %v803, %v810
      %v812 = vmul.f32 %v811, 1.442695
      %v813 = vpow.pop %v812
      %v814 = vsel %vm538, %v813, 0.0
      %815 = vadd.xlane.f32.xlu0 %v814
      %v816 = vpop.xlane.xlu0 %815
      %v817 = vrcp.pop %v816
      %v818 = vmul.f32 %v813, %v817
      %v819 = vpack.c.bf16 %v818, %v818
      %820 = vrot.lane.b32.xlu0 %v537, 80
      %v821 = vpop.permute.xlu0 %820
      %v823 = vsel %vm538, %v819, 0
      %v826 = vsel %vm603, %v821, 0
      %828 = vmatprep.subr.bf16.mxu0 0
      %829 = vmatpush1.bf16.msra.mxu0 0
      %830 = vmatprep.subr.bf16.mxu0 0
      %831 = vmatpush1.bf16.msra.mxu0 0
      %832 = vmatprep.subr.bf16.mxu0 0
      %833 = vmatpush1.bf16.msra.mxu0 0
      %834 = vmatprep.subr.bf16.mxu0 0
      %835 = vmatpush1.bf16.msra.mxu0 0
      %836 = vmatprep.subr.bf16.mxu0 0
      %837 = vmatpush1.bf16.msra.mxu0 0
      %838 = vmatprep.subr.bf16.mxu0 0
      %839 = vmatpush1.bf16.msra.mxu0 0
      %840 = vmatprep.subr.bf16.mxu0 0
      %841 = vmatpush1.bf16.msra.mxu0 0
      %842 = vmatprep.subr.bf16.mxu0 0
      %843 = vmatpush1.bf16.msra.mxu0 %v826
      %844 = vmatprep.subr.bf16.mxu0 0
      %845 = vmatpush2.bf16.msra.mxu0 0
      %846 = vmatprep.subr.bf16.mxu0 0
      %847 = vmatpush2.bf16.msra.mxu0 0
      %848 = vmatprep.subr.bf16.mxu0 0
      %849 = vmatpush2.bf16.msra.mxu0 0
      %850 = vmatprep.subr.bf16.mxu0 0
      %851 = vmatpush2.bf16.msra.mxu0 0
      %852 = vmatprep.subr.bf16.mxu0 0
      %853 = vmatpush2.bf16.msra.mxu0 0
      %854 = vmatprep.subr.bf16.mxu0 0
      %855 = vmatpush2.bf16.msra.mxu0 0
      %856 = vmatprep.subr.bf16.mxu0 0
      %857 = vmatpush2.bf16.msra.mxu0 0
      %858 = vmatprep.subr.bf16.mxu0 0
      %859 = vmatpush2.bf16.msra.mxu0 0
      %860 = vmatprep.mubr.bf16.mxu0 0
      %861 = vmatmul.mubr.bf16.gmra.mxu0 %v823
      %v862 = vpop.f32.mrf.mxu0
      %v863 = vadd.f32 0.0, %v862
      %v864 = vpop.f32.mrf.mxu0
      %v865 = vpop.f32.mrf.mxu0
      %v866 = vpop.f32.mrf.mxu0
      %867 = vdwg.mxu0
      %868 = vrot.lane.b32.xlu0 %v536, 104
      %v869 = vpop.permute.xlu0 %868
      %870 = vrot.lane.b32.xlu0 %v537, 104
      %v871 = vpop.permute.xlu0 %870
      %v873 = vsel %vm538, %v869, 0
      %v876 = vsel %vm538, %v871, 0
      %878 = vmatprep.subr.bf16.mxu0 0
      %879 = vmatpush1.bf16.xpose.msra.mxu0 0
      %880 = vmatprep.subr.bf16.mxu0 0
      %881 = vmatpush1.bf16.xpose.msra.mxu0 0
      %882 = vmatprep.subr.bf16.mxu0 0
      %883 = vmatpush1.bf16.xpose.msra.mxu0 0
      %884 = vmatprep.subr.bf16.mxu0 0
      %885 = vmatpush1.bf16.xpose.msra.mxu0 0
      %886 = vmatprep.subr.bf16.mxu0 0
      %887 = vmatpush1.bf16.xpose.msra.mxu0 0
      %888 = vmatprep.subr.bf16.mxu0 0
      %889 = vmatpush1.bf16.xpose.msra.mxu0 0
      %890 = vmatprep.subr.bf16.mxu0 0
      %891 = vmatpush1.bf16.xpose.msra.mxu0 0
      %892 = vmatprep.subr.bf16.mxu0 0
      %893 = vmatpush1.bf16.xpose.msra.mxu0 %v876
      %894 = vmatprep.subr.bf16.mxu0 0
      %895 = vmatpush2.bf16.xpose.msra.mxu0 0
      %896 = vmatprep.subr.bf16.mxu0 0
      %897 = vmatpush2.bf16.xpose.msra.mxu0 0
      %898 = vmatprep.subr.bf16.mxu0 0
      %899 = vmatpush2.bf16.xpose.msra.mxu0 0
      %900 = vmatprep.subr.bf16.mxu0 0
      %901 = vmatpush2.bf16.xpose.msra.mxu0 0
      %902 = vmatprep.subr.bf16.mxu0 0
      %903 = vmatpush2.bf16.xpose.msra.mxu0 0
      %904 = vmatprep.subr.bf16.mxu0 0
      %905 = vmatpush2.bf16.xpose.msra.mxu0 0
      %906 = vmatprep.subr.bf16.mxu0 0
      %907 = vmatpush2.bf16.xpose.msra.mxu0 0
      %908 = vmatprep.subr.bf16.mxu0 0
      %909 = vmatpush2.bf16.xpose.msra.mxu0 0
      %910 = vmatprep.mubr.bf16.mxu0 0
      %911 = vmatmul.mubr.bf16.gmra.mxu0 %v873
      %v912 = vpop.f32.mrf.mxu0
      %v913 = vadd.f32 %v534, %v912
      %v914 = vpop.f32.mrf.mxu0
      %v915 = vpop.f32.mrf.mxu0
      %v916 = vpop.f32.mrf.mxu0
      %917 = vdwg.mxu0
      %v918 = vsel %vm538, %v913, -inf
      %919 = vmax.xlane.f32.xlu0 %v918
      %v920 = vpop.xlane.xlu0 %919
      %v921 = vsub.f32 %v913, %v920
      %v922 = vmul.f32 %v921, 1.442695
      %v923 = vpow.pop %v922
      %v924 = vsel %vm538, %v923, 0.0
      %925 = vadd.xlane.f32.xlu0 %v924
      %v926 = vpop.xlane.xlu0 %925
      %v927 = vrcp.pop %v926
      %v928 = vmul.f32 %v923, %v927
      %v929 = vpack.c.bf16 %v928, %v928
      %930 = vrot.lane.b32.xlu0 %v537, 72
      %v931 = vpop.permute.xlu0 %930
      %v933 = vsel %vm538, %v929, 0
      %v936 = vsel %vm603, %v931, 0
      %938 = vmatprep.subr.bf16.mxu0 0
      %939 = vmatpush1.bf16.msra.mxu0 0
      %940 = vmatprep.subr.bf16.mxu0 0
      %941 = vmatpush1.bf16.msra.mxu0 0
      %942 = vmatprep.subr.bf16.mxu0 0
      %943 = vmatpush1.bf16.msra.mxu0 0
      %944 = vmatprep.subr.bf16.mxu0 0
      %945 = vmatpush1.bf16.msra.mxu0 0
      %946 = vmatprep.subr.bf16.mxu0 0
      %947 = vmatpush1.bf16.msra.mxu0 0
      %948 = vmatprep.subr.bf16.mxu0 0
      %949 = vmatpush1.bf16.msra.mxu0 0
      %950 = vmatprep.subr.bf16.mxu0 0
      %951 = vmatpush1.bf16.msra.mxu0 0
      %952 = vmatprep.subr.bf16.mxu0 0
      %953 = vmatpush1.bf16.msra.mxu0 %v936
      %954 = vmatprep.subr.bf16.mxu0 0
      %955 = vmatpush2.bf16.msra.mxu0 0
      %956 = vmatprep.subr.bf16.mxu0 0
      %957 = vmatpush2.bf16.msra.mxu0 0
      %958 = vmatprep.subr.bf16.mxu0 0
      %959 = vmatpush2.bf16.msra.mxu0 0
      %960 = vmatprep.subr.bf16.mxu0 0
      %961 = vmatpush2.bf16.msra.mxu0 0
      %962 = vmatprep.subr.bf16.mxu0 0
      %963 = vmatpush2.bf16.msra.mxu0 0
      %964 = vmatprep.subr.bf16.mxu0 0
      %965 = vmatpush2.bf16.msra.mxu0 0
      %966 = vmatprep.subr.bf16.mxu0 0
      %967 = vmatpush2.bf16.msra.mxu0 0
      %968 = vmatprep.subr.bf16.mxu0 0
      %969 = vmatpush2.bf16.msra.mxu0 0
      %970 = vmatprep.mubr.bf16.mxu0 0
      %971 = vmatmul.mubr.bf16.gmra.mxu0 %v933
      %v972 = vpop.f32.mrf.mxu0
      %v973 = vadd.f32 0.0, %v972
      %v974 = vpop.f32.mrf.mxu0
      %v975 = vpop.f32.mrf.mxu0
      %v976 = vpop.f32.mrf.mxu0
      %977 = vdwg.mxu0
      %979 = vrot.lane.b32.xlu0 %v753, 8
      %v980 = vpop.permute.xlu0 %979
      %983 = vrot.lane.b32.xlu0 %v863, 16
      %v984 = vpop.permute.xlu0 %983
      %987 = vrot.lane.b32.xlu0 %v973, 24
      %v988 = vpop.permute.xlu0 %987
      %v990 = vsel %vm538, %v642, %v980
      %vm991 = vcmask 130048
      %v992 = vsel %vm991, %v990, %v984
      %vm993 = vcmask 195584
      %v994 = vsel %vm993, %v992, %v988
      %v995 = vpack.c.bf16 %v994, %v994
      %v996 = vld [vmem:[%s7] sm:$0xff]
      %v997 = vld [vmem:[%s7 + $0x8] sm:$0xff]
      %v998 = vld [vmem:[%s7 + $0x10] sm:$0xff]
      %v999 = vld [vmem:[%s7 + $0x18] sm:$0xff]
      %v1000 = vpack.c.bf16 %v997, %v996
      %v1001 = vpack.c.bf16 %v999, %v998
      %v1002 = vld [vmem:[%s8] sm:$0x1]
      %v1004 = vlaneseq
      %v1005 = vshrl.u32 %v1004, 7
      %v1006 = vsub.s32 0, %v1005
      %v1007 = vrot.slane %v1002, %v1006
      %v1010 = vsel %vm433, %v995, 0
      %1012 = vmatprep.subr.bf16.mxu0 0
      %1013 = vmatpush1.bf16.msra.mxu0 0
      %1014 = vmatprep.subr.bf16.mxu0 0
      %1015 = vmatpush1.bf16.msra.mxu0 0
      %1016 = vmatprep.subr.bf16.mxu0 0
      %1017 = vmatpush1.bf16.msra.mxu0 0
      %1018 = vmatprep.subr.bf16.mxu0 0
      %1019 = vmatpush1.bf16.msra.mxu0 0
      %1020 = vmatprep.subr.bf16.mxu0 0
      %1021 = vmatpush1.bf16.msra.mxu0 0
      %1022 = vmatprep.subr.bf16.mxu0 0
      %1023 = vmatpush1.bf16.msra.mxu0 0
      %1024 = vmatprep.subr.bf16.mxu0 0
      %1025 = vmatpush1.bf16.msra.mxu0 %v1001
      %1026 = vmatprep.subr.bf16.mxu0 0
      %1027 = vmatpush1.bf16.msra.mxu0 %v1000
      %1028 = vmatprep.subr.bf16.mxu0 0
      %1029 = vmatpush2.bf16.msra.mxu0 0
      %1030 = vmatprep.subr.bf16.mxu0 0
      %1031 = vmatpush2.bf16.msra.mxu0 0
      %1032 = vmatprep.subr.bf16.mxu0 0
      %1033 = vmatpush2.bf16.msra.mxu0 0
      %1034 = vmatprep.subr.bf16.mxu0 0
      %1035 = vmatpush2.bf16.msra.mxu0 0
      %1036 = vmatprep.subr.bf16.mxu0 0
      %1037 = vmatpush2.bf16.msra.mxu0 0
      %1038 = vmatprep.subr.bf16.mxu0 0
      %1039 = vmatpush2.bf16.msra.mxu0 0
      %1040 = vmatprep.subr.bf16.mxu0 0
      %1041 = vmatpush2.bf16.msra.mxu0 0
      %1042 = vmatprep.subr.bf16.mxu0 0
      %1043 = vmatpush2.bf16.msra.mxu0 0
      %1044 = vmatprep.mubr.bf16.mxu0 0
      %1045 = vmatmul.mubr.bf16.gmra.mxu0 %v1010
      %v1046 = vpop.f32.mrf.mxu0
      %v1047 = vadd.f32 %v1007, %v1046
      %v1048 = vpop.f32.mrf.mxu0
      %v1049 = vpop.f32.mrf.mxu0
      %v1050 = vpop.f32.mrf.mxu0
      %1051 = vdwg.mxu0
      %v1052 = vadd.f32 %v417, %v1047
      %v1053 = vsel %vm433, %v1052, 0.0
      %1054 = vadd.xlane.f32.xlu0 %v1053
      %v1055 = vpop.xlane.xlu0 %1054
      %v1056 = vrcp.pop 32.0
      %v1057 = vmul.f32 %v1055, %v1056
      %v1058 = vsub.f32 %v1052, %v1057
      %v1059 = vmul.f32 %v1058, %v1058
      %v1060 = vsel %vm433, %v1059, 0.0
      %1061 = vadd.xlane.f32.xlu0 %v1060
      %v1062 = vpop.xlane.xlu0 %1061
      %v1063 = vmul.f32 %v1062, %v1056
      %v1064 = vadd.f32 %v1063, 1e-05
      %v1065 = vrsqrt.pop %v1064
      %v1066 = vmul.f32 %v1058, %v1065
      %v1067 = vld [vmem:[%s9] sm:$0x1]
      %v1069 = vlaneseq
      %v1070 = vshrl.u32 %v1069, 7
      %v1071 = vsub.s32 0, %v1070
      %v1072 = vrot.slane %v1067, %v1071
      %v1074 = vmul.f32 %v1066, %v1072
      %v1075 = vld [vmem:[%s10] sm:$0x1]
      %v1077 = vlaneseq
      %v1078 = vshrl.u32 %v1077, 7
      %v1079 = vsub.s32 0, %v1078
      %v1080 = vrot.slane %v1075, %v1079
      %v1082 = vadd.f32 %v1074, %v1080
      %1083 = vst.msk [vmem:[%s415] sm:$0xff] %vm433, %v1082
      %p1084 = scmp.lt.s32.totalorder %s22, 1
      %s1085 = scalar_select %p1084, %s22, 1
      %s1086 = smul.addr %s1085, 8
      %s1087 = scalar_lea.vmem %s11, %s1086
      // Predicated region
      $region65: #{natransformer_forward.21} parent=63 // pred_check
        %p1088 = pneg %p286
      $region66: #{natransformer_forward.21} parent=63 // pred_check_branch
        %1090 = sbr.rel (%p1088) target = $region68
      $region67: #{natransformer_forward.21} parent=63 // pred_region
        _
      $region68: #{natransformer_forward.21} parent=63 // pred_fallthru
        _
    $region64: #{natransformer_forward.21} parent=5 // pred_fallthru
      _
    %p1091 = scmp.le.s32.totalorder 2, %s17
    // Predicated region
    $region69: #{natransformer_forward.21} parent=5 // pred_check
      %p1092 = pneg %p1091
    $region70: #{natransformer_forward.21} parent=5 // pred_check_branch
      %1094 = sbr.rel (%p1092) target = $region72
    $region71: #{natransformer_forward.21} parent=5 // pred_region
      %s1095 = ssub.s32 %s17, 2
      // Predicated region
      $region73: #{natransformer_forward.21} parent=71 // pred_check
        %p1096 = pneg %p292
      $region74: #{natransformer_forward.21} parent=71 // pred_check_branch
        %1098 = sbr.rel (%p1096) target = $region76
      $region75: #{natransformer_forward.21} parent=71 // pred_region
        %p1099 = scmp.lt.s32.totalorder %s23, 1
        %s1100 = scalar_select %p1099, %s23, 1
        %s1101 = smul.addr %s1100, 8
        %s1102 = scalar_lea.vmem %s11, %s1101
      $region76: #{natransformer_forward.21} parent=71 // pred_fallthru
        _
    $region72: #{natransformer_forward.21} parent=5 // pred_fallthru
      _
  $region6: #{natransformer_forward.21} parent=0 // loop_footer
    %s21 = sadd.s32 1, %s17
  $region7: #{natransformer_forward.21} parent=0 // loop_footer_branch
    %16 = sbr.rel target = $region3
  $region8: #{natransformer_forward.21} parent=0 // loop_exit
    _

</llo_original>
